<compile_context>
chip_gen: v6e
topology: v6e:2x2x1
jax: 0.10.0
libtpu: 0.0.40
codegen_flags: <defaults>
</compile_context>

<pallas_src>
import functools

import numpy as np
import jax
import jax.numpy as jnp
from jax.experimental import pallas as pl
from jax.experimental.pallas import tpu as pltpu


def _round_up(x, m):
    return ((x + m - 1) // m) * m


# ----------------------------- Pallas kernels ------------------------------ #

def _build_im2col(x_ref, im_ref, base, *, TL, Cin, Cp, offs, zero_pad):
    """Fill the (TL, K*K*Cp) bf16 im2col scratch for output rows [base, base+TL).

    x_ref: (R, Cin) f32 flat padded input for one batch (resident block).
    Each tap t is a dynamic-sublane slice of x_ref, cast to bf16 and stored at
    the 128-lane-aligned slot [t*Cp, t*Cp+Cin).  When Cin < Cp the scratch is
    zeroed first so the padded lanes (matched by zero weight rows) stay clean.
    """
    if zero_pad:
        im_ref[...] = jnp.zeros_like(im_ref)
    for t, d in enumerate(offs):                       # static unroll over K*K taps
        im_ref[:, t * Cp: t * Cp + Cin] = (
            x_ref[pl.ds(base + d, TL), :].astype(jnp.bfloat16))


def conv_stats_kernel(x_ref, w_ref, sum_ref, ssq_ref, im_ref, *,
                      TL, Cin, Cp, offs, L, W, Wp, zero_pad):
    """Grid=(N, RT, CT).  Partial BN stats of the bias-less conv for one tile."""
    r = pl.program_id(1)
    base = r * TL

    @pl.when(pl.program_id(2) == 0)                    # scratch reused across cout tiles
    def _():
        _build_im2col(x_ref, im_ref, base,
                      TL=TL, Cin=Cin, Cp=Cp, offs=offs, zero_pad=zero_pad)

    # One big MXU matmul: (TL, K*K*Cp) x (K*K*Cp, 128) with f32 accumulation.
    y = jnp.dot(im_ref[...], w_ref[...], preferred_element_type=jnp.float32)

    # Mask rows past the true output length and the 2*pad garbage columns.
    ridx = base + jax.lax.broadcasted_iota(jnp.int32, (TL, 1), 0)
    valid = (ridx < L) & ((ridx % Wp) < W)
    y = jnp.where(valid, y, 0.0)
    sum_ref[...] = jnp.sum(y, axis=0, keepdims=True)
    ssq_ref[...] = jnp.sum(y * y, axis=0, keepdims=True)


def conv_bn_relu_kernel(x_ref, w_ref, scale_ref, shift_ref, o_ref, im_ref, *,
                        TL, Cin, Cp, offs, zero_pad):
    """Grid=(N, RT, CT).  Recompute conv, fuse BN affine + ReLU into ONE store."""
    r = pl.program_id(1)
    base = r * TL

    @pl.when(pl.program_id(2) == 0)
    def _():
        _build_im2col(x_ref, im_ref, base,
                      TL=TL, Cin=Cin, Cp=Cp, offs=offs, zero_pad=zero_pad)

    acc = jnp.dot(im_ref[...], w_ref[...], preferred_element_type=jnp.float32)
    o_ref[...] = jnp.maximum(acc * scale_ref[...] + shift_ref[...], 0.0)


# ------------------------------ JAX wrapper -------------------------------- #

def convolution_forward(x_nchw, weight, bias, gamma, beta, eps=1e-5):
    """Forward pass of Conv-BN-ReLU (training-mode BatchNorm).

    Args:
      x_nchw: (N, Cin, H, W) float32      (PyTorch NCHW input)
      weight: (Cout, Cin, K, K) float32   (PyTorch Conv2d weight layout)
      bias:   (Cout,) float32             (cancels under training-mode BN)
      gamma, beta: (Cout,) float32        (BatchNorm affine params)
    Returns:
      (N, Cout, H, W) float32
    """
    N, Cin, H, W = x_nchw.shape
    Cout, _, KH, KW = weight.shape
    assert KH == KW and KH % 2 == 1, "odd square kernel (SAME padding, stride 1)"
    K = KH
    p = (K - 1) // 2
    Wp = W + 2 * p
    L = H * Wp                     # output rows per batch (incl. 2*pad garbage cols)
    KK = K * K
    offs = tuple(kh * Wp + kw for kh in range(K) for kw in range(K))
    max_off = offs[-1]

    # Tiling choices.
    TL = min(256, _round_up(L, 8))         # row tile (multiple of 8)
    RT = -(-L // TL)                       # row tiles
    L_pad = RT * TL
    TC = 128                               # Cout tile (lane-dense; 256 on v6e/v7x is a further tune)
    Cout_pad = _round_up(Cout, TC)
    CT = Cout_pad // TC
    Cp = _round_up(Cin, 128)               # per-tap slot width in the im2col scratch
    KKCp = KK * Cp
    zero_pad = Cin < Cp                    # no zeroing needed when Cin is a 128-multiple

    # Padded flat input must cover every tap slice of every (possibly padded) row tile.
    rows_needed = L_pad + max_off
    Himg = -(-rows_needed // Wp)           # padded image rows (>= H + 2p)
    R = Himg * Wp

    # --- glue: single padded copy in plain JAX (no HBM im2col materialization) ---
    x = jnp.transpose(x_nchw, (0, 2, 3, 1)).astype(jnp.float32)             # NHWC
    x = jnp.pad(x, ((0, 0), (p, Himg - H - p), (p, p), (0, 0)))             # (N, Himg, Wp, Cin)
    x = x.reshape(N, R, Cin)

    # weight -> (KK, Cp, Cout_pad) zero-padded -> flat (KK*Cp, Cout_pad) bf16.
    w = jnp.transpose(weight, (2, 3, 1, 0)).reshape(KK, Cin, Cout)
    w = jnp.pad(w, ((0, 0), (0, Cp - Cin), (0, Cout_pad - Cout))).astype(jnp.bfloat16)
    w = w.reshape(KKCp, Cout_pad)
    # NOTE: `bias` is intentionally not fed to the kernels -- a per-channel conv
    # bias shifts the batch mean identically and cancels in (y - mean).

    compiler_params = pltpu.CompilerParams(
        dimension_semantics=("parallel", "parallel", "arbitrary"),
        vmem_limit_bytes=64 * 1024 * 1024)

    x_spec = pl.BlockSpec((None, R, Cin), lambda n, r, c: (n, 0, 0))   # per-batch, resident over r/c
    w_spec = pl.BlockSpec((KKCp, TC), lambda n, r, c: (0, c))

    # --- pass 1: conv recompute -> per-(batch,row-tile) partial BN stats ---
    s, ss = pl.pallas_call(
        functools.partial(conv_stats_kernel, TL=TL, Cin=Cin, Cp=Cp, offs=offs,
                          L=L, W=W, Wp=Wp, zero_pad=zero_pad),
        out_shape=(
            jax.ShapeDtypeStruct((N, RT, 1, Cout_pad), jnp.float32),
            jax.ShapeDtypeStruct((N, RT, 1, Cout_pad), jnp.float32),
        ),
        grid=(N, RT, CT),
        in_specs=[x_spec, w_spec],
        out_specs=(
            pl.BlockSpec((None, None, 1, TC), lambda n, r, c: (n, r, 0, c)),
            pl.BlockSpec((None, None, 1, TC), lambda n, r, c: (n, r, 0, c)),
        ),
        scratch_shapes=[pltpu.VMEM((TL, KKCp), jnp.bfloat16)],
        compiler_params=compiler_params,
    )(x, w)

    # --- tiny scalar math: fold BN (batch stats, biased variance) into scale/shift ---
    cnt = float(N * H * W)
    g = jnp.pad(gamma.astype(jnp.float32), (0, Cout_pad - Cout))
    b = jnp.pad(beta.astype(jnp.float32), (0, Cout_pad - Cout))
    mean = jnp.sum(s, axis=(0, 1, 2)) / cnt
    var = jnp.sum(ss, axis=(0, 1, 2)) / cnt - mean * mean
    # TODO(synk): E[y^2]-E[y]^2 can cancel for channels with large mean/std ratio;
    #             a pivoted / Welford-style reduction would be more robust.
    inv_std = jax.lax.rsqrt(jnp.maximum(var, 0.0) + eps)
    scale = (g * inv_std).reshape(1, Cout_pad)
    shift = (b - mean * g * inv_std).reshape(1, Cout_pad)

    # --- pass 2: conv recompute fused with BN affine + ReLU (single lane-dense store) ---
    out = pl.pallas_call(
        functools.partial(conv_bn_relu_kernel, TL=TL, Cin=Cin, Cp=Cp, offs=offs,
                          zero_pad=zero_pad),
        out_shape=jax.ShapeDtypeStruct((N, L_pad, Cout_pad), jnp.float32),
        grid=(N, RT, CT),
        in_specs=[
            x_spec,
            w_spec,
            pl.BlockSpec((1, TC), lambda n, r, c: (0, c)),
            pl.BlockSpec((1, TC), lambda n, r, c: (0, c)),
        ],
        out_specs=pl.BlockSpec((None, TL, TC), lambda n, r, c: (n, r, c)),
        scratch_shapes=[pltpu.VMEM((TL, KKCp), jnp.bfloat16)],
        compiler_params=compiler_params,
    )(x, w, scale, shift)

    out = out[:, :L, :Cout].reshape(N, H, Wp, Cout)[:, :, :W, :]            # crop padding
    return jnp.transpose(out, (0, 3, 1, 2))                                 # NCHW


# ----------------------------- pure-JAX reference --------------------------- #

def reference(x_nchw, weight, bias, gamma, beta, eps=1e-5):
    N, Cin, H, W = x_nchw.shape
    Cout, _, K, _ = weight.shape
    p = (K - 1) // 2
    x = jnp.transpose(x_nchw, (0, 2, 3, 1)).astype(jnp.float32)
    xp = jnp.pad(x, ((0, 0), (p, p), (p, p), (0, 0)))
    y = jnp.zeros((N, H, W, Cout), jnp.float32) + bias
    for kh in range(K):
        for kw in range(K):
            patch = xp[:, kh:kh + H, kw:kw + W, :]
            y = y + jnp.einsum("nhwc,co->nhwo", patch, weight[:, :, kh, kw].T)
    mean = y.mean(axis=(0, 1, 2))
    var = y.var(axis=(0, 1, 2))                  # biased, as PyTorch BN training
    yn = (y - mean) * jax.lax.rsqrt(var + eps) * gamma + beta
    return jnp.transpose(jnp.maximum(yn, 0.0), (0, 3, 1, 2))


# ---------------------------------- main ------------------------------------ #

if __name__ == "__main__":
    # NOTE: tune at realistic channel counts (Cin, Cout >= 64-128); this small
    # shape only checks correctness -- wall time here is dominated by glue ops.
    N, Cin, Cout, H, W, K = 2, 4, 8, 16, 16, 3
    key = jax.random.PRNGKey(0)
    k1, k2, k3 = jax.random.split(key, 3)

    x = jax.random.normal(k1, (N, Cin, H, W), jnp.float32)

    # Deterministic synthetic parameters (Conv2d-like uniform init; BN defaults).
    bound = 1.0 / np.sqrt(Cin * K * K)
    weight = jax.random.uniform(k2, (Cout, Cin, K, K), jnp.float32, -bound, bound)
    bias = jax.random.uniform(k3, (Cout,), jnp.float32, -bound, bound)
    gamma = jnp.ones((Cout,), jnp.float32)
    beta = jnp.zeros((Cout,), jnp.float32)

    out = convolution_forward(x, weight, bias, gamma, beta)
    out = jax.block_until_ready(out)
    assert out.shape == (N, Cout, H, W) and out.dtype == jnp.float32

    ref = reference(x, weight, bias, gamma, beta)
    np.testing.assert_allclose(np.asarray(out), np.asarray(ref),
                               rtol=2e-2, atol=2e-2)
    print("KERNEL_OK")
</pallas_src>

<mosaic_0001>
module attributes {stable_mosaic.version = 11 : i64} {
  func.func @conv_stats_kernel(%arg0: i32, %arg1: i32, %arg2: i32, %arg3: memref<1x558x4xf32, #tpu.memory_space<vmem>>, %arg4: memref<1152x128xbf16, #tpu.memory_space<vmem>>, %arg5: memref<1x1x1x128xf32, #tpu.memory_space<vmem>>, %arg6: memref<1x1x1x128xf32, #tpu.memory_space<vmem>>, %arg7: memref<256x1152xbf16, #tpu.memory_space<vmem>>) attributes {dimension_semantics = [#tpu.dimension_semantics<parallel>, #tpu.dimension_semantics<parallel>, #tpu.dimension_semantics<arbitrary>], iteration_bounds = array<i64: 2, 2, 1>, scalar_prefetch = 0 : i64, scratch_operands = 1 : i64, tpu.core_type = #tpu.core_type<tc>, window_params = [{transform_indices = @transform_0, window_bounds = array<i64: 1, 558, 4>}, {transform_indices = @transform_1, window_bounds = array<i64: 1152, 128>}, {transform_indices = @transform_2, window_bounds = array<i64: 1, 1, 1, 128>}, {transform_indices = @transform_3, window_bounds = array<i64: 1, 1, 1, 128>}]} {
    %c256_i32 = arith.constant 256 : i32
    %0 = arith.muli %arg1, %c256_i32 : i32
    %c0_i32 = arith.constant 0 : i32
    %1 = arith.cmpi eq, %arg2, %c0_i32 : i32
    %2 = arith.extui %1 : i1 to i32
    %c0_i32_0 = arith.constant 0 : i32
    %3 = arith.cmpi ne, %2, %c0_i32_0 : i32
    scf.if %3 {
      %cst_19 = arith.constant 0.000000e+00 : bf16
      %46 = vector.broadcast %cst_19 : bf16 to vector<256x1152xbf16>
      %c0_20 = arith.constant 0 : index
      %c0_21 = arith.constant 0 : index
      %47 = vector.load %arg7[%c0_20, %c0_21] : memref<256x1152xbf16, #tpu.memory_space<vmem>>, vector<256x1152xbf16>
      tpu.vector_store %arg7[%c0_20, %c0_21], %46 {strides = array<i32>} : memref<256x1152xbf16, #tpu.memory_space<vmem>>, vector<256x1152xbf16>,
      %c0_i32_22 = arith.constant 0 : i32
      %48 = arith.addi %0, %c0_i32_22 : i32
      %c0_23 = arith.constant 0 : index
      %49 = arith.index_cast %48 : i32 to index
      %c0_24 = arith.constant 0 : index
      %50 = vector.load %arg3[%c0_23, %49, %c0_24] : memref<1x558x4xf32, #tpu.memory_space<vmem>>, vector<1x256x4xf32>
      %51 = vector.shape_cast %50 : vector<1x256x4xf32> to vector<256x4xf32>
      %52 = arith.truncf %51 : vector<256x4xf32> to vector<256x4xbf16>
      %c0_25 = arith.constant 0 : index
      %c0_26 = arith.constant 0 : index
      %53 = vector.load %arg7[%c0_25, %c0_26] : memref<256x1152xbf16, #tpu.memory_space<vmem>>, vector<256x4xbf16>
      tpu.vector_store %arg7[%c0_25, %c0_26], %52 {strides = array<i32>} : memref<256x1152xbf16, #tpu.memory_space<vmem>>, vector<256x4xbf16>,
      %c1_i32_27 = arith.constant 1 : i32
      %54 = arith.addi %0, %c1_i32_27 : i32
      %c0_28 = arith.constant 0 : index
      %55 = arith.index_cast %54 : i32 to index
      %c0_29 = arith.constant 0 : index
      %56 = vector.load %arg3[%c0_28, %55, %c0_29] : memref<1x558x4xf32, #tpu.memory_space<vmem>>, vector<1x256x4xf32>
      %57 = vector.shape_cast %56 : vector<1x256x4xf32> to vector<256x4xf32>
      %58 = arith.truncf %57 : vector<256x4xf32> to vector<256x4xbf16>
      %c0_30 = arith.constant 0 : index
      %c128 = arith.constant 128 : index
      %59 = vector.load %arg7[%c0_30, %c128] : memref<256x1152xbf16, #tpu.memory_space<vmem>>, vector<256x4xbf16>
      tpu.vector_store %arg7[%c0_30, %c128], %58 {strides = array<i32>} : memref<256x1152xbf16, #tpu.memory_space<vmem>>, vector<256x4xbf16>,
      %c2_i32 = arith.constant 2 : i32
      %60 = arith.addi %0, %c2_i32 : i32
      %c0_31 = arith.constant 0 : index
      %61 = arith.index_cast %60 : i32 to index
      %c0_32 = arith.constant 0 : index
      %62 = vector.load %arg3[%c0_31, %61, %c0_32] : memref<1x558x4xf32, #tpu.memory_space<vmem>>, vector<1x256x4xf32>
      %63 = vector.shape_cast %62 : vector<1x256x4xf32> to vector<256x4xf32>
      %64 = arith.truncf %63 : vector<256x4xf32> to vector<256x4xbf16>
      %c0_33 = arith.constant 0 : index
      %c256 = arith.constant 256 : index
      %65 = vector.load %arg7[%c0_33, %c256] : memref<256x1152xbf16, #tpu.memory_space<vmem>>, vector<256x4xbf16>
      tpu.vector_store %arg7[%c0_33, %c256], %64 {strides = array<i32>} : memref<256x1152xbf16, #tpu.memory_space<vmem>>, vector<256x4xbf16>,
      %c18_i32_34 = arith.constant 18 : i32
      %66 = arith.addi %0, %c18_i32_34 : i32
      %c0_35 = arith.constant 0 : index
      %67 = arith.index_cast %66 : i32 to index
      %c0_36 = arith.constant 0 : index
      %68 = vector.load %arg3[%c0_35, %67, %c0_36] : memref<1x558x4xf32, #tpu.memory_space<vmem>>, vector<1x256x4xf32>
      %69 = vector.shape_cast %68 : vector<1x256x4xf32> to vector<256x4xf32>
      %70 = arith.truncf %69 : vector<256x4xf32> to vector<256x4xbf16>
      %c0_37 = arith.constant 0 : index
      %c384 = arith.constant 384 : index
      %71 = vector.load %arg7[%c0_37, %c384] : memref<256x1152xbf16, #tpu.memory_space<vmem>>, vector<256x4xbf16>
      tpu.vector_store %arg7[%c0_37, %c384], %70 {strides = array<i32>} : memref<256x1152xbf16, #tpu.memory_space<vmem>>, vector<256x4xbf16>,
      %c19_i32 = arith.constant 19 : i32
      %72 = arith.addi %0, %c19_i32 : i32
      %c0_38 = arith.constant 0 : index
      %73 = arith.index_cast %72 : i32 to index
      %c0_39 = arith.constant 0 : index
      %74 = vector.load %arg3[%c0_38, %73, %c0_39] : memref<1x558x4xf32, #tpu.memory_space<vmem>>, vector<1x256x4xf32>
      %75 = vector.shape_cast %74 : vector<1x256x4xf32> to vector<256x4xf32>
      %76 = arith.truncf %75 : vector<256x4xf32> to vector<256x4xbf16>
      %c0_40 = arith.constant 0 : index
      %c512 = arith.constant 512 : index
      %77 = vector.load %arg7[%c0_40, %c512] : memref<256x1152xbf16, #tpu.memory_space<vmem>>, vector<256x4xbf16>
      tpu.vector_store %arg7[%c0_40, %c512], %76 {strides = array<i32>} : memref<256x1152xbf16, #tpu.memory_space<vmem>>, vector<256x4xbf16>,
      %c20_i32 = arith.constant 20 : i32
      %78 = arith.addi %0, %c20_i32 : i32
      %c0_41 = arith.constant 0 : index
      %79 = arith.index_cast %78 : i32 to index
      %c0_42 = arith.constant 0 : index
      %80 = vector.load %arg3[%c0_41, %79, %c0_42] : memref<1x558x4xf32, #tpu.memory_space<vmem>>, vector<1x256x4xf32>
      %81 = vector.shape_cast %80 : vector<1x256x4xf32> to vector<256x4xf32>
      %82 = arith.truncf %81 : vector<256x4xf32> to vector<256x4xbf16>
      %c0_43 = arith.constant 0 : index
      %c640 = arith.constant 640 : index
      %83 = vector.load %arg7[%c0_43, %c640] : memref<256x1152xbf16, #tpu.memory_space<vmem>>, vector<256x4xbf16>
      tpu.vector_store %arg7[%c0_43, %c640], %82 {strides = array<i32>} : memref<256x1152xbf16, #tpu.memory_space<vmem>>, vector<256x4xbf16>,
      %c36_i32 = arith.constant 36 : i32
      %84 = arith.addi %0, %c36_i32 : i32
      %c0_44 = arith.constant 0 : index
      %85 = arith.index_cast %84 : i32 to index
      %c0_45 = arith.constant 0 : index
      %86 = vector.load %arg3[%c0_44, %85, %c0_45] : memref<1x558x4xf32, #tpu.memory_space<vmem>>, vector<1x256x4xf32>
      %87 = vector.shape_cast %86 : vector<1x256x4xf32> to vector<256x4xf32>
      %88 = arith.truncf %87 : vector<256x4xf32> to vector<256x4xbf16>
      %c0_46 = arith.constant 0 : index
      %c768 = arith.constant 768 : index
      %89 = vector.load %arg7[%c0_46, %c768] : memref<256x1152xbf16, #tpu.memory_space<vmem>>, vector<256x4xbf16>
      tpu.vector_store %arg7[%c0_46, %c768], %88 {strides = array<i32>} : memref<256x1152xbf16, #tpu.memory_space<vmem>>, vector<256x4xbf16>,
      %c37_i32 = arith.constant 37 : i32
      %90 = arith.addi %0, %c37_i32 : i32
      %c0_47 = arith.constant 0 : index
      %91 = arith.index_cast %90 : i32 to index
      %c0_48 = arith.constant 0 : index
      %92 = vector.load %arg3[%c0_47, %91, %c0_48] : memref<1x558x4xf32, #tpu.memory_space<vmem>>, vector<1x256x4xf32>
      %93 = vector.shape_cast %92 : vector<1x256x4xf32> to vector<256x4xf32>
      %94 = arith.truncf %93 : vector<256x4xf32> to vector<256x4xbf16>
      %c0_49 = arith.constant 0 : index
      %c896 = arith.constant 896 : index
      %95 = vector.load %arg7[%c0_49, %c896] : memref<256x1152xbf16, #tpu.memory_space<vmem>>, vector<256x4xbf16>
      tpu.vector_store %arg7[%c0_49, %c896], %94 {strides = array<i32>} : memref<256x1152xbf16, #tpu.memory_space<vmem>>, vector<256x4xbf16>,
      %c38_i32 = arith.constant 38 : i32
      %96 = arith.addi %0, %c38_i32 : i32
      %c0_50 = arith.constant 0 : index
      %97 = arith.index_cast %96 : i32 to index
      %c0_51 = arith.constant 0 : index
      %98 = vector.load %arg3[%c0_50, %97, %c0_51] : memref<1x558x4xf32, #tpu.memory_space<vmem>>, vector<1x256x4xf32>
      %99 = vector.shape_cast %98 : vector<1x256x4xf32> to vector<256x4xf32>
      %100 = arith.truncf %99 : vector<256x4xf32> to vector<256x4xbf16>
      %c0_52 = arith.constant 0 : index
      %c1024 = arith.constant 1024 : index
      %101 = vector.load %arg7[%c0_52, %c1024] : memref<256x1152xbf16, #tpu.memory_space<vmem>>, vector<256x4xbf16>
      tpu.vector_store %arg7[%c0_52, %c1024], %100 {strides = array<i32>} : memref<256x1152xbf16, #tpu.memory_space<vmem>>, vector<256x4xbf16>,
    } else {
    }
    %c0 = arith.constant 0 : index
    %c0_1 = arith.constant 0 : index
    %4 = vector.load %arg7[%c0, %c0_1] : memref<256x1152xbf16, #tpu.memory_space<vmem>>, vector<256x1152xbf16>
    %c0_2 = arith.constant 0 : index
    %c0_3 = arith.constant 0 : index
    %5 = vector.load %arg4[%c0_2, %c0_3] : memref<1152x128xbf16, #tpu.memory_space<vmem>>, vector<1152x128xbf16>
    %cst = arith.constant dense<0.000000e+00> : vector<256x128xf32>
    %6 = tpu.matmul %4, %5, %cst {dimension_numbers = #tpu.dot_dimension_numbers<[1], [0], [0], [1], [0, 0, 1, 1], [], []>} : vector<256x1152xbf16>, vector<1152x128xbf16>, vector<256x128xf32> -> vector<256x128xf32>
    %7 = tpu.iota {dimensions = array<i32: 0>} : vector<256x1xi32>
    %8 = vector.broadcast %0 : i32 to vector<256x1xi32>
    %9 = arith.addi %8, %7 : vector<256x1xi32>
    %c288_i32 = arith.constant 288 : i32
    %10 = vector.broadcast %c288_i32 : i32 to vector<256x1xi32>
    %11 = arith.cmpi slt, %9, %10 : vector<256x1xi32>
    %c18_i32 = arith.constant 18 : i32
    %c0_i32_4 = arith.constant 0 : i32
    %12 = arith.cmpi eq, %c18_i32, %c0_i32_4 : i32
    %c1_i32 = arith.constant 1 : i32
    %13 = arith.select %12, %c1_i32, %c18_i32 : i32
    %14 = vector.broadcast %13 : i32 to vector<256x1xi32>
    %15 = arith.remsi %9, %14 : vector<256x1xi32>
    %c0_i32_5 = arith.constant 0 : i32
    %16 = vector.broadcast %c0_i32_5 : i32 to vector<256x1xi32>
    %17 = arith.cmpi ne, %15, %16 : vector<256x1xi32>
    %c0_i32_6 = arith.constant 0 : i32
    %18 = vector.broadcast %c0_i32_6 : i32 to vector<256x1xi32>
    %19 = arith.cmpi slt, %15, %18 : vector<256x1xi32>
    %c0_i32_7 = arith.constant 0 : i32
    %20 = arith.cmpi slt, %13, %c0_i32_7 : i32
    %21 = vector.broadcast %20 : i1 to vector<256x1xi1>
    %22 = vector.broadcast %21 : vector<256x1xi1> to vector<256x1xi1>
    %23 = arith.xori %19, %22 : vector<256x1xi1>
    %24 = arith.andi %23, %17 : vector<256x1xi1>
    %25 = vector.broadcast %13 : i32 to vector<256x1xi32>
    %26 = arith.addi %15, %25 : vector<256x1xi32>
    %27 = arith.select %24, %26, %15 : vector<256x1xi1>, vector<256x1xi32>
    %c16_i32 = arith.constant 16 : i32
    %28 = vector.broadcast %c16_i32 : i32 to vector<256x1xi32>
    %29 = arith.cmpi slt, %27, %28 : vector<256x1xi32>
    %30 = arith.andi %11, %29 : vector<256x1xi1>
    %cst_8 = arith.constant 0.000000e+00 : f32
    %31 = vector.shape_cast %30 : vector<256x1xi1> to vector<256x1xi1>
    %32 = vector.broadcast %31 : vector<256x1xi1> to vector<256x128xi1>
    %33 = vector.broadcast %cst_8 : f32 to vector<256x128xf32>
    %34 = arith.select %32, %6, %33 : vector<256x128xi1>, vector<256x128xf32>
    %cst_9 = arith.constant dense<0.000000e+00> : vector<128xf32>
    %35 = vector.multi_reduction <add>, %34, %cst_9 [0] : vector<256x128xf32> to vector<128xf32>
    %36 = vector.shape_cast %35 : vector<128xf32> to vector<1x128xf32>
    %c0_10 = arith.constant 0 : index
    %c0_11 = arith.constant 0 : index
    %c0_12 = arith.constant 0 : index
    %c0_13 = arith.constant 0 : index
    %37 = vector.load %arg5[%c0_10, %c0_11, %c0_12, %c0_13] : memref<1x1x1x128xf32, #tpu.memory_space<vmem>>, vector<1x1x1x128xf32>
    %38 = vector.shape_cast %37 : vector<1x1x1x128xf32> to vector<1x128xf32>
    %39 = vector.shape_cast %36 : vector<1x128xf32> to vector<1x1x1x128xf32>
    tpu.vector_store %arg5[%c0_10, %c0_11, %c0_12, %c0_13], %39 {strides = array<i32>} : memref<1x1x1x128xf32, #tpu.memory_space<vmem>>, vector<1x1x1x128xf32>,
    %40 = arith.mulf %34, %34 : vector<256x128xf32>
    %cst_14 = arith.constant dense<0.000000e+00> : vector<128xf32>
    %41 = vector.multi_reduction <add>, %40, %cst_14 [0] : vector<256x128xf32> to vector<128xf32>
    %42 = vector.shape_cast %41 : vector<128xf32> to vector<1x128xf32>
    %c0_15 = arith.constant 0 : index
    %c0_16 = arith.constant 0 : index
    %c0_17 = arith.constant 0 : index
    %c0_18 = arith.constant 0 : index
    %43 = vector.load %arg6[%c0_15, %c0_16, %c0_17, %c0_18] : memref<1x1x1x128xf32, #tpu.memory_space<vmem>>, vector<1x1x1x128xf32>
    %44 = vector.shape_cast %43 : vector<1x1x1x128xf32> to vector<1x128xf32>
    %45 = vector.shape_cast %42 : vector<1x128xf32> to vector<1x1x1x128xf32>
    tpu.vector_store %arg6[%c0_15, %c0_16, %c0_17, %c0_18], %45 {strides = array<i32>} : memref<1x1x1x128xf32, #tpu.memory_space<vmem>>, vector<1x1x1x128xf32>,
    return
  }
  func.func @transform_0(%arg0: i32, %arg1: i32, %arg2: i32) -> (i32, i32, i32) {
    %c0_i32 = arith.constant 0 : i32
    %c0_i32_0 = arith.constant 0 : i32
    %c0_i32_1 = arith.constant 0 : i32
    return %arg0, %c0_i32, %c0_i32_0 : i32, i32, i32
  }
  func.func @transform_1(%arg0: i32, %arg1: i32, %arg2: i32) -> (i32, i32) {
    %c0_i32 = arith.constant 0 : i32
    %c0_i32_0 = arith.constant 0 : i32
    return %c0_i32, %arg2 : i32, i32
  }
  func.func @transform_2(%arg0: i32, %arg1: i32, %arg2: i32) -> (i32, i32, i32, i32) {
    %c0_i32 = arith.constant 0 : i32
    %c0_i32_0 = arith.constant 0 : i32
    return %arg0, %arg1, %c0_i32, %arg2 : i32, i32, i32, i32
  }
  func.func @transform_3(%arg0: i32, %arg1: i32, %arg2: i32) -> (i32, i32, i32, i32) {
    %c0_i32 = arith.constant 0 : i32
    %c0_i32_0 = arith.constant 0 : i32
    return %arg0, %arg1, %c0_i32, %arg2 : i32, i32, i32, i32
  }
}

</mosaic_0001>

<llo_original>
// kernel: tpu_custom_call.1
$region0: #{tpu_custom_call.1}
  #allocation0 [shape = 'u32[]', space=smem, size = 0x4, offset = 0x4, fixed_abs, tag = 'smem constant byte address 0x4 - core index']
  #allocation1 [shape = 'u32[144,128]{1,0:T(1,128)}', space=vmem, size = 0x12000, scoped, tag = 'internal scratch']
  #allocation2 [shape = 'bf16[256,1152]{1,0:T(8,128)(2,1)}', space=vmem, size = 0x90000, scoped, tag = 'scratch operand']
  %s0 = inlined_call_operand.vmem [shape: f32[2,558,4], index: 0, kind: input, shape index: {}]
  %s1 = inlined_call_operand.vmem [shape: bf16[1152,128], index: 1, kind: input, shape index: {}]
  %s2 = inlined_call_operand.hbm [shape: f32[2,2,1,128], index: 2, kind: output, shape index: {0}]
  %s3 = inlined_call_operand.hbm [shape: f32[2,2,1,128], index: 3, kind: output, shape index: {1}]
  %4 = xla_tuple %s2, %s3
  %s5 = sld [smem:[#allocation0]]
  $region53: #{tpu_custom_call.1} parent=0
    _
  %s7 = ssub.s32 1, %s5
  %s8 = scalar_select 0, %s7, %s5
  $region1: #{tpu_custom_call.1} parent=0
    #allocation3 [shape = 'u8[1024]{0}', space=vmem, size = 0x400, scoped, tag = 'output window, operand 0']
    #allocation4 [shape = 's32[2]{0}', space=sflag, size = 0x8, scoped, tag = 'scoped memory for tpu_custom_call.1']
    #allocation5 [shape = 'u8[1024]{0}', space=vmem, size = 0x400, scoped, tag = 'output window, operand 1']
    #allocation6 [shape = 's32[2]{0}', space=sflag, size = 0x8, scoped, tag = 'scoped memory for tpu_custom_call.1']
    %9 = vsyncpa [#allocation4], 0
    %s10 = scalar_lea.sflag [#allocation4], 1
    %11 = vsyncpa %s10, 0
    %12 = vsyncpa [#allocation6], 0
    %s13 = scalar_lea.sflag [#allocation6], 1
    %14 = vsyncpa %s13, 0
    loop: start=0, step=1, limit=6
    $region2: #{tpu_custom_call.1} parent=1 // loop_pre_header
      _
    $region3: #{tpu_custom_call.1} parent=1 // loop_header
      %s16 = sphi 0, %s20
      %p17 = scmp.ge.s32.totalorder %s16, 6
      %s23 = sphi 0, %s42
      %s24 = sphi 0, %s38
      %s25 = sphi 0, %s34
      %s26 = sphi 0, %s23
      %s27 = sphi 0, %s24
      %s28 = sphi 0, %s25
      %s29 = sphi 0, %s26
      %s30 = sphi 0, %s27
      %s31 = sphi 0, %s28
      %s45 = sphi 0, %s47
      %s48 = sphi 0, %s45
      %s49 = sphi 0, %s48
      %s65 = sphi 0, %s49
      %s71 = sphi 0, %s73
      %s74 = sphi 0, %s71
      %s75 = sphi 0, %s74
      %s91 = sphi 0, %s75
      %s101 = sphi 0, %s103
      %s104 = sphi 0, %s101
      %s105 = sphi 0, %s104
      %s121 = sphi 0, %s105
      %s131 = sphi 0, %s133
      %s134 = sphi 0, %s131
      %s135 = sphi 0, %s134
      %s151 = sphi 0, %s135
    $region4: #{tpu_custom_call.1} parent=1 // loop_header_branch
      %19 = sbr.rel (%p17) target = $region8
    $region5: #{tpu_custom_call.1} parent=1 // loop_body
      %s21 = ssub.s32 %s16, 1
      %s22 = ssub.s32 %s16, 2
      %s32 = sadd.s32 1, %s25
      %p33 = scmp.ge.s32.totalorder %s32, 1
      %s34 = scalar_select %p33, 0, %s32
      %s35 = sadd.s32 1, %s24
      %s36 = scalar_select %p33, %s35, %s24
      %p37 = scmp.ge.s32.totalorder %s36, 2
      %s38 = scalar_select %p37, 0, %s36
      %s39 = sadd.s32 1, %s23
      %s40 = scalar_select %p37, %s39, %s23
      %p41 = scmp.ge.s32.totalorder %s40, 2
      %s42 = scalar_select %p41, 0, %s40
      %s43 = ssub.s32 %s23, %s42
      %p44 = scmp.eq.s32.totalorder %s43, 0
      %s46 = sadd.s32 %s45, 1
      %s47 = scalar_select %p44, %s45, %s46
      %p50 = pneg %p44
      %p51 = scmp.eq.s32.totalorder %s16, 3
      %p52 = por %p50, %p51
      %p53 = scmp.ne.s32.totalorder %s45, %s48
      %p54 = scmp.eq.s32.totalorder %s16, 0
      %p55 = por %p53, %p54
      %p56 = scmp.ne.s32.totalorder %s45, %s48
      %p57 = scmp.eq.s32.totalorder %s21, 3
      %p58 = por %p56, %p57
      %p59 = scmp.ne.s32.totalorder %s48, %s49
      %p60 = scmp.eq.s32.totalorder %s21, 0
      %p61 = por %p59, %p60
      %p62 = scmp.ne.s32.totalorder %s48, %s49
      %p63 = scmp.eq.s32.totalorder %s22, 3
      %p64 = por %p62, %p63
      %p66 = scmp.ne.s32.totalorder %s49, %s65
      %p67 = scmp.eq.s32.totalorder %s22, 0
      %p68 = por %p66, %p67
      %s69 = ssub.s32 %s25, %s34
      %p70 = scmp.eq.s32.totalorder %s69, 0
      %s72 = sadd.s32 %s71, 1
      %s73 = scalar_select %p70, %s71, %s72
      %p76 = pneg %p70
      %p77 = scmp.eq.s32.totalorder %s16, 3
      %p78 = por %p76, %p77
      %p79 = scmp.ne.s32.totalorder %s71, %s74
      %p80 = scmp.eq.s32.totalorder %s16, 0
      %p81 = por %p79, %p80
      %p82 = scmp.ne.s32.totalorder %s71, %s74
      %p83 = scmp.eq.s32.totalorder %s21, 3
      %p84 = por %p82, %p83
      %p85 = scmp.ne.s32.totalorder %s74, %s75
      %p86 = scmp.eq.s32.totalorder %s21, 0
      %p87 = por %p85, %p86
      %p88 = scmp.ne.s32.totalorder %s74, %s75
      %p89 = scmp.eq.s32.totalorder %s22, 3
      %p90 = por %p88, %p89
      %p92 = scmp.ne.s32.totalorder %s75, %s91
      %p93 = scmp.eq.s32.totalorder %s22, 0
      %p94 = por %p92, %p93
      %s95 = ssub.s32 %s23, %s42
      %s96 = ssub.s32 %s24, %s38
      %s97 = sor.u32 %s95, %s96
      %s98 = ssub.s32 %s25, %s34
      %s99 = sor.u32 %s97, %s98
      %p100 = scmp.eq.s32.totalorder %s99, 0
      %s102 = sadd.s32 %s101, 1
      %s103 = scalar_select %p100, %s101, %s102
      %p106 = pneg %p100
      %p107 = scmp.eq.s32.totalorder %s16, 3
      %p108 = por %p106, %p107
      %p109 = scmp.ne.s32.totalorder %s101, %s104
      %p110 = scmp.eq.s32.totalorder %s16, 0
      %p111 = por %p109, %p110
      %p112 = scmp.ne.s32.totalorder %s101, %s104
      %p113 = scmp.eq.s32.totalorder %s21, 3
      %p114 = por %p112, %p113
      %p115 = scmp.ne.s32.totalorder %s104, %s105
      %p116 = scmp.eq.s32.totalorder %s21, 0
      %p117 = por %p115, %p116
      %p118 = scmp.ne.s32.totalorder %s104, %s105
      %p119 = scmp.eq.s32.totalorder %s22, 3
      %p120 = por %p118, %p119
      %p122 = scmp.ne.s32.totalorder %s105, %s121
      %p123 = scmp.eq.s32.totalorder %s22, 0
      %p124 = por %p122, %p123
      %s125 = ssub.s32 %s23, %s42
      %s126 = ssub.s32 %s24, %s38
      %s127 = sor.u32 %s125, %s126
      %s128 = ssub.s32 %s25, %s34
      %s129 = sor.u32 %s127, %s128
      %p130 = scmp.eq.s32.totalorder %s129, 0
      %s132 = sadd.s32 %s131, 1
      %s133 = scalar_select %p130, %s131, %s132
      %p136 = pneg %p130
      %p137 = scmp.eq.s32.totalorder %s16, 3
      %p138 = por %p136, %p137
      %p139 = scmp.ne.s32.totalorder %s131, %s134
      %p140 = scmp.eq.s32.totalorder %s16, 0
      %p141 = por %p139, %p140
      %p142 = scmp.ne.s32.totalorder %s131, %s134
      %p143 = scmp.eq.s32.totalorder %s21, 3
      %p144 = por %p142, %p143
      %p145 = scmp.ne.s32.totalorder %s134, %s135
      %p146 = scmp.eq.s32.totalorder %s21, 0
      %p147 = por %p145, %p146
      %p148 = scmp.ne.s32.totalorder %s134, %s135
      %p149 = scmp.eq.s32.totalorder %s22, 3
      %p150 = por %p148, %p149
      %p152 = scmp.ne.s32.totalorder %s135, %s151
      %p153 = scmp.eq.s32.totalorder %s22, 0
      %p154 = por %p152, %p153
      %p155 = scmp.le.s32.totalorder 1, %s16
      %p156 = scmp.lt.s32.totalorder %s16, 5
      %p157 = pnand %p155, %p156
      %p158 = pneg %p157
      // Predicated region
      $region9: #{tpu_custom_call.1} parent=5 // pred_check
        _
      $region10: #{tpu_custom_call.1} parent=5 // pred_check_branch
        %160 = sbr.rel (%p157) target = $region12
      $region11: #{tpu_custom_call.1} parent=5 // pred_region
        %s161 = ssub.s32 %s16, 1
        // Predicated region
        $region13: #{tpu_custom_call.1} parent=11 // pred_check
          %p162 = pneg %p87
        $region14: #{tpu_custom_call.1} parent=11 // pred_check_branch
          %164 = sbr.rel (%p162) target = $region16
        $region15: #{tpu_custom_call.1} parent=11 // pred_region
          %p165 = scmp.lt.s32.totalorder %s28, 0
          %s166 = scalar_select %p165, %s28, 0
          %s167 = smul.addr %s166, 4
          %s168 = scalar_lea.vmem %s1, %s167
        $region16: #{tpu_custom_call.1} parent=11 // pred_fallthru
          _
      $region12: #{tpu_custom_call.1} parent=5 // pred_fallthru
        _
      %p169 = scmp.lt.s32.totalorder %s16, 4
      // Predicated region
      $region17: #{tpu_custom_call.1} parent=5 // pred_check
        %p170 = pneg %p169
      $region18: #{tpu_custom_call.1} parent=5 // pred_check_branch
        %172 = sbr.rel (%p170) target = $region20
      $region19: #{tpu_custom_call.1} parent=5 // pred_region
        // Predicated region
        $region21: #{tpu_custom_call.1} parent=19 // pred_check
          %p173 = pneg %p55
        $region22: #{tpu_custom_call.1} parent=19 // pred_check_branch
          %175 = sbr.rel (%p173) target = $region24
        $region23: #{tpu_custom_call.1} parent=19 // pred_region
          %p176 = scmp.lt.s32.totalorder %s23, 1
          %s177 = scalar_select %p176, %s23, 1
          %s178 = smul.addr %s177, 70
          %s179 = smul.addr %s178, 8
          %s180 = scalar_lea.vmem %s0, %s179
        $region24: #{tpu_custom_call.1} parent=19 // pred_fallthru
          _
      $region20: #{tpu_custom_call.1} parent=5 // pred_fallthru
        _
      %p181 = scmp.le.s32.totalorder 1, %s16
      %p182 = scmp.lt.s32.totalorder %s16, 5
      %p183 = pnand %p181, %p182
      %p184 = pneg %p183
      // Predicated region
      $region25: #{tpu_custom_call.1} parent=5 // pred_check
        _
      $region26: #{tpu_custom_call.1} parent=5 // pred_check_branch
        %186 = sbr.rel (%p183) target = $region28
      $region27: #{tpu_custom_call.1} parent=5 // pred_region
        %s187 = ssub.s32 %s16, 1
        %p188 = scmp.lt.s32.totalorder %s26, 1
        %s189 = scalar_select %p188, %s26, 1
        %s190 = smul.addr %s189, 70
        %s191 = smul.addr %s190, 8
        %s192 = scalar_lea.vmem %s0, %s191
        %p193 = pneg %p61
        %p194 = pneg %p58
        %p195 = scmp.lt.s32.totalorder %s28, 0
        %s196 = scalar_select %p195, %s28, 0
        %s197 = smul.addr %s196, 4
        %s198 = scalar_lea.vmem %s1, %s197
        %p199 = pneg %p87
        %p200 = pneg %p84
        %p201 = pneg %p117
        %p202 = pneg %p114
        %s203 = sand.u32 %s104, 1
        %s204 = scalar_lea.sflag [#allocation4], %s203
        %s205 = sand.u32 %s104, 1
        %s206 = scalar_lea.vmem [#allocation3], %s205
        %p207 = pneg %p147
        %p208 = pneg %p144
        %s209 = sand.u32 %s134, 1
        %s210 = scalar_lea.sflag [#allocation6], %s209
        %s211 = sand.u32 %s134, 1
        %s212 = scalar_lea.vmem [#allocation5], %s211
        %p213 = scmp.lt.s32.totalorder %s26, 1
        %s214 = scalar_select %p213, %s26, 1
        %s215 = smul.addr %s214, 70
        %s216 = smul.addr %s215, 8
        %s217 = scalar_lea.vmem %s0, %s216
        %p218 = scmp.lt.s32.totalorder %s28, 0
        %s219 = scalar_select %p218, %s28, 0
        %s220 = smul.addr %s219, 4
        %s221 = scalar_lea.vmem %s1, %s220
        %s223 = smul.u32 %s27, 256
        %p224 = scmp.eq.s32.totalorder %s28, 0
        // Predicated region
        $region29: #{tpu_custom_call.1} parent=27 // pred_check
          %p225 = pneg %p224
        $region30: #{tpu_custom_call.1} parent=27 // pred_check_branch
          %227 = sbr.rel (%p225) target = $region32
        $region31: #{tpu_custom_call.1} parent=27 // pred_region
          %228 = vst [vmem:[#allocation2] sm:$0xff] 0
          %229 = vst [vmem:[#allocation2 + $0x8] sm:$0xff] 0
          %230 = vst [vmem:[#allocation2 + $0x10] sm:$0xff] 0
          %231 = vst [vmem:[#allocation2 + $0x18] sm:$0xff] 0
          %232 = vst [vmem:[#allocation2 + $0x20] sm:$0xf] 0
          %233 = vst [vmem:[#allocation2 + $0x24] sm:$0xff] 0
          %234 = vst [vmem:[#allocation2 + $0x2c] sm:$0xff] 0
          %235 = vst [vmem:[#allocation2 + $0x34] sm:$0xff] 0
          %236 = vst [vmem:[#allocation2 + $0x3c] sm:$0xff] 0
          %237 = vst [vmem:[#allocation2 + $0x44] sm:$0xf] 0
          %238 = vst [vmem:[#allocation2 + $0x48] sm:$0xff] 0
          %239 = vst [vmem:[#allocation2 + $0x50] sm:$0xff] 0
          %240 = vst [vmem:[#allocation2 + $0x58] sm:$0xff] 0
          %241 = vst [vmem:[#allocation2 + $0x60] sm:$0xff] 0
          %242 = vst [vmem:[#allocation2 + $0x68] sm:$0xf] 0
          %243 = vst [vmem:[#allocation2 + $0x6c] sm:$0xff] 0
          %244 = vst [vmem:[#allocation2 + $0x74] sm:$0xff] 0
          %245 = vst [vmem:[#allocation2 + $0x7c] sm:$0xff] 0
          %246 = vst [vmem:[#allocation2 + $0x84] sm:$0xff] 0
          %247 = vst [vmem:[#allocation2 + $0x8c] sm:$0xf] 0
          %248 = vst [vmem:[#allocation2 + $0x90] sm:$0xff] 0
          %249 = vst [vmem:[#allocation2 + $0x98] sm:$0xff] 0
          %250 = vst [vmem:[#allocation2 + $0xa0] sm:$0xff] 0
          %251 = vst [vmem:[#allocation2 + $0xa8] sm:$0xff] 0
          %252 = vst [vmem:[#allocation2 + $0xb0] sm:$0xf] 0
          %253 = vst [vmem:[#allocation2 + $0xb4] sm:$0xff] 0
          %254 = vst [vmem:[#allocation2 + $0xbc] sm:$0xff] 0
          %255 = vst [vmem:[#allocation2 + $0xc4] sm:$0xff] 0
          %256 = vst [vmem:[#allocation2 + $0xcc] sm:$0xff] 0
          %257 = vst [vmem:[#allocation2 + $0xd4] sm:$0xf] 0
          %258 = vst [vmem:[#allocation2 + $0xd8] sm:$0xff] 0
          %259 = vst [vmem:[#allocation2 + $0xe0] sm:$0xff] 0
          %260 = vst [vmem:[#allocation2 + $0xe8] sm:$0xff] 0
          %261 = vst [vmem:[#allocation2 + $0xf0] sm:$0xff] 0
          %262 = vst [vmem:[#allocation2 + $0xf8] sm:$0xf] 0
          %263 = vst [vmem:[#allocation2 + $0xfc] sm:$0xff] 0
          %264 = vst [vmem:[#allocation2 + $0x104] sm:$0xff] 0
          %265 = vst [vmem:[#allocation2 + $0x10c] sm:$0xff] 0
          %266 = vst [vmem:[#allocation2 + $0x114] sm:$0xff] 0
          %267 = vst [vmem:[#allocation2 + $0x11c] sm:$0xf] 0
          %268 = vst [vmem:[#allocation2 + $0x120] sm:$0xff] 0
          %269 = vst [vmem:[#allocation2 + $0x128] sm:$0xff] 0
          %270 = vst [vmem:[#allocation2 + $0x130] sm:$0xff] 0
          %271 = vst [vmem:[#allocation2 + $0x138] sm:$0xff] 0
          %272 = vst [vmem:[#allocation2 + $0x140] sm:$0xf] 0
          %273 = vst [vmem:[#allocation2 + $0x144] sm:$0xff] 0
          %274 = vst [vmem:[#allocation2 + $0x14c] sm:$0xff] 0
          %275 = vst [vmem:[#allocation2 + $0x154] sm:$0xff] 0
          %276 = vst [vmem:[#allocation2 + $0x15c] sm:$0xff] 0
          %277 = vst [vmem:[#allocation2 + $0x164] sm:$0xf] 0
          %278 = vst [vmem:[#allocation2 + $0x168] sm:$0xff] 0
          %279 = vst [vmem:[#allocation2 + $0x170] sm:$0xff] 0
          %280 = vst [vmem:[#allocation2 + $0x178] sm:$0xff] 0
          %281 = vst [vmem:[#allocation2 + $0x180] sm:$0xff] 0
          %282 = vst [vmem:[#allocation2 + $0x188] sm:$0xf] 0
          %283 = vst [vmem:[#allocation2 + $0x18c] sm:$0xff] 0
          %284 = vst [vmem:[#allocation2 + $0x194] sm:$0xff] 0
          %285 = vst [vmem:[#allocation2 + $0x19c] sm:$0xff] 0
          %286 = vst [vmem:[#allocation2 + $0x1a4] sm:$0xff] 0
          %287 = vst [vmem:[#allocation2 + $0x1ac] sm:$0xf] 0
          %288 = vst [vmem:[#allocation2 + $0x1b0] sm:$0xff] 0
          %289 = vst [vmem:[#allocation2 + $0x1b8] sm:$0xff] 0
          %290 = vst [vmem:[#allocation2 + $0x1c0] sm:$0xff] 0
          %291 = vst [vmem:[#allocation2 + $0x1c8] sm:$0xff] 0
          %292 = vst [vmem:[#allocation2 + $0x1d0] sm:$0xf] 0
          %293 = vst [vmem:[#allocation2 + $0x1d4] sm:$0xff] 0
          %294 = vst [vmem:[#allocation2 + $0x1dc] sm:$0xff] 0
          %295 = vst [vmem:[#allocation2 + $0x1e4] sm:$0xff] 0
          %296 = vst [vmem:[#allocation2 + $0x1ec] sm:$0xff] 0
          %297 = vst [vmem:[#allocation2 + $0x1f4] sm:$0xf] 0
          %298 = vst [vmem:[#allocation2 + $0x1f8] sm:$0xff] 0
          %299 = vst [vmem:[#allocation2 + $0x200] sm:$0xff] 0
          %300 = vst [vmem:[#allocation2 + $0x208] sm:$0xff] 0
          %301 = vst [vmem:[#allocation2 + $0x210] sm:$0xff] 0
          %302 = vst [vmem:[#allocation2 + $0x218] sm:$0xf] 0
          %303 = vst [vmem:[#allocation2 + $0x21c] sm:$0xff] 0
          %304 = vst [vmem:[#allocation2 + $0x224] sm:$0xff] 0
          %305 = vst [vmem:[#allocation2 + $0x22c] sm:$0xff] 0
          %306 = vst [vmem:[#allocation2 + $0x234] sm:$0xff] 0
          %307 = vst [vmem:[#allocation2 + $0x23c] sm:$0xf] 0
          %308 = vst [vmem:[#allocation2 + $0x240] sm:$0xff] 0
          %309 = vst [vmem:[#allocation2 + $0x248] sm:$0xff] 0
          %310 = vst [vmem:[#allocation2 + $0x250] sm:$0xff] 0
          %311 = vst [vmem:[#allocation2 + $0x258] sm:$0xff] 0
          %312 = vst [vmem:[#allocation2 + $0x260] sm:$0xf] 0
          %313 = vst [vmem:[#allocation2 + $0x264] sm:$0xff] 0
          %314 = vst [vmem:[#allocation2 + $0x26c] sm:$0xff] 0
          %315 = vst [vmem:[#allocation2 + $0x274] sm:$0xff] 0
          %316 = vst [vmem:[#allocation2 + $0x27c] sm:$0xff] 0
          %317 = vst [vmem:[#allocation2 + $0x284] sm:$0xf] 0
          %318 = vst [vmem:[#allocation2 + $0x288] sm:$0xff] 0
          %319 = vst [vmem:[#allocation2 + $0x290] sm:$0xff] 0
          %320 = vst [vmem:[#allocation2 + $0x298] sm:$0xff] 0
          %321 = vst [vmem:[#allocation2 + $0x2a0] sm:$0xff] 0
          %322 = vst [vmem:[#allocation2 + $0x2a8] sm:$0xf] 0
          %323 = vst [vmem:[#allocation2 + $0x2ac] sm:$0xff] 0
          %324 = vst [vmem:[#allocation2 + $0x2b4] sm:$0xff] 0
          %325 = vst [vmem:[#allocation2 + $0x2bc] sm:$0xff] 0
          %326 = vst [vmem:[#allocation2 + $0x2c4] sm:$0xff] 0
          %327 = vst [vmem:[#allocation2 + $0x2cc] sm:$0xf] 0
          %328 = vst [vmem:[#allocation2 + $0x2d0] sm:$0xff] 0
          %329 = vst [vmem:[#allocation2 + $0x2d8] sm:$0xff] 0
          %330 = vst [vmem:[#allocation2 + $0x2e0] sm:$0xff] 0
          %331 = vst [vmem:[#allocation2 + $0x2e8] sm:$0xff] 0
          %332 = vst [vmem:[#allocation2 + $0x2f0] sm:$0xf] 0
          %333 = vst [vmem:[#allocation2 + $0x2f4] sm:$0xff] 0
          %334 = vst [vmem:[#allocation2 + $0x2fc] sm:$0xff] 0
          %335 = vst [vmem:[#allocation2 + $0x304] sm:$0xff] 0
          %336 = vst [vmem:[#allocation2 + $0x30c] sm:$0xff] 0
          %337 = vst [vmem:[#allocation2 + $0x314] sm:$0xf] 0
          %338 = vst [vmem:[#allocation2 + $0x318] sm:$0xff] 0
          %339 = vst [vmem:[#allocation2 + $0x320] sm:$0xff] 0
          %340 = vst [vmem:[#allocation2 + $0x328] sm:$0xff] 0
          %341 = vst [vmem:[#allocation2 + $0x330] sm:$0xff] 0
          %342 = vst [vmem:[#allocation2 + $0x338] sm:$0xf] 0
          %343 = vst [vmem:[#allocation2 + $0x33c] sm:$0xff] 0
          %344 = vst [vmem:[#allocation2 + $0x344] sm:$0xff] 0
          %345 = vst [vmem:[#allocation2 + $0x34c] sm:$0xff] 0
          %346 = vst [vmem:[#allocation2 + $0x354] sm:$0xff] 0
          %347 = vst [vmem:[#allocation2 + $0x35c] sm:$0xf] 0
          %348 = vst [vmem:[#allocation2 + $0x360] sm:$0xff] 0
          %349 = vst [vmem:[#allocation2 + $0x368] sm:$0xff] 0
          %350 = vst [vmem:[#allocation2 + $0x370] sm:$0xff] 0
          %351 = vst [vmem:[#allocation2 + $0x378] sm:$0xff] 0
          %352 = vst [vmem:[#allocation2 + $0x380] sm:$0xf] 0
          %353 = vst [vmem:[#allocation2 + $0x384] sm:$0xff] 0
          %354 = vst [vmem:[#allocation2 + $0x38c] sm:$0xff] 0
          %355 = vst [vmem:[#allocation2 + $0x394] sm:$0xff] 0
          %356 = vst [vmem:[#allocation2 + $0x39c] sm:$0xff] 0
          %357 = vst [vmem:[#allocation2 + $0x3a4] sm:$0xf] 0
          %358 = vst [vmem:[#allocation2 + $0x3a8] sm:$0xff] 0
          %359 = vst [vmem:[#allocation2 + $0x3b0] sm:$0xff] 0
          %360 = vst [vmem:[#allocation2 + $0x3b8] sm:$0xff] 0
          %361 = vst [vmem:[#allocation2 + $0x3c0] sm:$0xff] 0
          %362 = vst [vmem:[#allocation2 + $0x3c8] sm:$0xf] 0
          %363 = vst [vmem:[#allocation2 + $0x3cc] sm:$0xff] 0
          %364 = vst [vmem:[#allocation2 + $0x3d4] sm:$0xff] 0
          %365 = vst [vmem:[#allocation2 + $0x3dc] sm:$0xff] 0
          %366 = vst [vmem:[#allocation2 + $0x3e4] sm:$0xff] 0
          %367 = vst [vmem:[#allocation2 + $0x3ec] sm:$0xf] 0
          %368 = vst [vmem:[#allocation2 + $0x3f0] sm:$0xff] 0
          %369 = vst [vmem:[#allocation2 + $0x3f8] sm:$0xff] 0
          %370 = vst [vmem:[#allocation2 + $0x400] sm:$0xff] 0
          %371 = vst [vmem:[#allocation2 + $0x408] sm:$0xff] 0
          %372 = vst [vmem:[#allocation2 + $0x410] sm:$0xf] 0
          %373 = vst [vmem:[#allocation2 + $0x414] sm:$0xff] 0
          %374 = vst [vmem:[#allocation2 + $0x41c] sm:$0xff] 0
          %375 = vst [vmem:[#allocation2 + $0x424] sm:$0xff] 0
          %376 = vst [vmem:[#allocation2 + $0x42c] sm:$0xff] 0
          %377 = vst [vmem:[#allocation2 + $0x434] sm:$0xf] 0
          %378 = vst [vmem:[#allocation2 + $0x438] sm:$0xff] 0
          %379 = vst [vmem:[#allocation2 + $0x440] sm:$0xff] 0
          %380 = vst [vmem:[#allocation2 + $0x448] sm:$0xff] 0
          %381 = vst [vmem:[#allocation2 + $0x450] sm:$0xff] 0
          %382 = vst [vmem:[#allocation2 + $0x458] sm:$0xf] 0
          %383 = vst [vmem:[#allocation2 + $0x45c] sm:$0xff] 0
          %384 = vst [vmem:[#allocation2 + $0x464] sm:$0xff] 0
          %385 = vst [vmem:[#allocation2 + $0x46c] sm:$0xff] 0
          %386 = vst [vmem:[#allocation2 + $0x474] sm:$0xff] 0
          %387 = vst [vmem:[#allocation2 + $0x47c] sm:$0xf] 0
          %s388 = scalar_lea.vmem %s217, %s223
          %v389 = vld [vmem:[%s388] sm:$0xff]
          %v390 = vld [vmem:[%s388 + $0x8] sm:$0xff]
          %v391 = vld [vmem:[%s388 + $0x10] sm:$0xff]
          %v392 = vld [vmem:[%s388 + $0x18] sm:$0xff]
          %v393 = vld [vmem:[%s388 + $0x20] sm:$0xff]
          %v394 = vld [vmem:[%s388 + $0x28] sm:$0xff]
          %v395 = vld [vmem:[%s388 + $0x30] sm:$0xff]
          %v396 = vld [vmem:[%s388 + $0x38] sm:$0xff]
          %v397 = vld [vmem:[%s388 + $0x40] sm:$0xff]
          %v398 = vld [vmem:[%s388 + $0x48] sm:$0xff]
          %v399 = vld [vmem:[%s388 + $0x50] sm:$0xff]
          %v400 = vld [vmem:[%s388 + $0x58] sm:$0xff]
          %v401 = vld [vmem:[%s388 + $0x60] sm:$0xff]
          %v402 = vld [vmem:[%s388 + $0x68] sm:$0xff]
          %v403 = vld [vmem:[%s388 + $0x70] sm:$0xff]
          %v404 = vld [vmem:[%s388 + $0x78] sm:$0xff]
          %v405 = vld [vmem:[%s388 + $0x80] sm:$0xff]
          %v406 = vld [vmem:[%s388 + $0x88] sm:$0xff]
          %v407 = vld [vmem:[%s388 + $0x90] sm:$0xff]
          %v408 = vld [vmem:[%s388 + $0x98] sm:$0xff]
          %v409 = vld [vmem:[%s388 + $0xa0] sm:$0xff]
          %v410 = vld [vmem:[%s388 + $0xa8] sm:$0xff]
          %v411 = vld [vmem:[%s388 + $0xb0] sm:$0xff]
          %v412 = vld [vmem:[%s388 + $0xb8] sm:$0xff]
          %v413 = vld [vmem:[%s388 + $0xc0] sm:$0xff]
          %v414 = vld [vmem:[%s388 + $0xc8] sm:$0xff]
          %v415 = vld [vmem:[%s388 + $0xd0] sm:$0xff]
          %v416 = vld [vmem:[%s388 + $0xd8] sm:$0xff]
          %v417 = vld [vmem:[%s388 + $0xe0] sm:$0xff]
          %v418 = vld [vmem:[%s388 + $0xe8] sm:$0xff]
          %v419 = vld [vmem:[%s388 + $0xf0] sm:$0xff]
          %v420 = vld [vmem:[%s388 + $0xf8] sm:$0xff]
          %v421 = vpack.c.bf16 %v390, %v389
          %v422 = vpack.c.bf16 %v392, %v391
          %v423 = vpack.c.bf16 %v394, %v393
          %v424 = vpack.c.bf16 %v396, %v395
          %v425 = vpack.c.bf16 %v398, %v397
          %v426 = vpack.c.bf16 %v400, %v399
          %v427 = vpack.c.bf16 %v402, %v401
          %v428 = vpack.c.bf16 %v404, %v403
          %v429 = vpack.c.bf16 %v406, %v405
          %v430 = vpack.c.bf16 %v408, %v407
          %v431 = vpack.c.bf16 %v410, %v409
          %v432 = vpack.c.bf16 %v412, %v411
          %v433 = vpack.c.bf16 %v414, %v413
          %v434 = vpack.c.bf16 %v416, %v415
          %v435 = vpack.c.bf16 %v418, %v417
          %v436 = vpack.c.bf16 %v420, %v419
          %v453 = vunpack.c.l.b16 %v421
          %v454 = vunpack.c.h.b16 %v421
          %v455 = vunpack.c.l.b16 %v422
          %v456 = vunpack.c.h.b16 %v422
          %v457 = vunpack.c.l.b16 %v423
          %v458 = vunpack.c.h.b16 %v423
          %v459 = vunpack.c.l.b16 %v424
          %v460 = vunpack.c.h.b16 %v424
          %v461 = vunpack.c.l.b16 %v425
          %v462 = vunpack.c.h.b16 %v425
          %v463 = vunpack.c.l.b16 %v426
          %v464 = vunpack.c.h.b16 %v426
          %v465 = vunpack.c.l.b16 %v427
          %v466 = vunpack.c.h.b16 %v427
          %v467 = vunpack.c.l.b16 %v428
          %v468 = vunpack.c.h.b16 %v428
          %v469 = vunpack.c.l.b16 %v429
          %v470 = vunpack.c.h.b16 %v429
          %v471 = vunpack.c.l.b16 %v430
          %v472 = vunpack.c.h.b16 %v430
          %v473 = vunpack.c.l.b16 %v431
          %v474 = vunpack.c.h.b16 %v431
          %v475 = vunpack.c.l.b16 %v432
          %v476 = vunpack.c.h.b16 %v432
          %v477 = vunpack.c.l.b16 %v433
          %v478 = vunpack.c.h.b16 %v433
          %v479 = vunpack.c.l.b16 %v434
          %v480 = vunpack.c.h.b16 %v434
          %v481 = vunpack.c.l.b16 %v435
          %v482 = vunpack.c.h.b16 %v435
          %v483 = vunpack.c.l.b16 %v436
          %v484 = vunpack.c.h.b16 %v436
          %v485 = vpack.c.b16 %v453, %v453
          %v486 = vpack.c.b16 %v454, %v454
          %v487 = vpack.c.b16 %v455, %v455
          %v488 = vpack.c.b16 %v456, %v456
          %v489 = vpack.c.b16 %v457, %v457
          %v490 = vpack.c.b16 %v458, %v458
          %v491 = vpack.c.b16 %v459, %v459
          %v492 = vpack.c.b16 %v460, %v460
          %v493 = vpack.c.b16 %v461, %v461
          %v494 = vpack.c.b16 %v462, %v462
          %v495 = vpack.c.b16 %v463, %v463
          %v496 = vpack.c.b16 %v464, %v464
          %v497 = vpack.c.b16 %v465, %v465
          %v498 = vpack.c.b16 %v466, %v466
          %v499 = vpack.c.b16 %v467, %v467
          %v500 = vpack.c.b16 %v468, %v468
          %v501 = vpack.c.b16 %v469, %v469
          %v502 = vpack.c.b16 %v470, %v470
          %v503 = vpack.c.b16 %v471, %v471
          %v504 = vpack.c.b16 %v472, %v472
          %v505 = vpack.c.b16 %v473, %v473
          %v506 = vpack.c.b16 %v474, %v474
          %v507 = vpack.c.b16 %v475, %v475
          %v508 = vpack.c.b16 %v476, %v476
          %v509 = vpack.c.b16 %v477, %v477
          %v510 = vpack.c.b16 %v478, %v478
          %v511 = vpack.c.b16 %v479, %v479
          %v512 = vpack.c.b16 %v480, %v480
          %v513 = vpack.c.b16 %v481, %v481
          %v514 = vpack.c.b16 %v482, %v482
          %v515 = vpack.c.b16 %v483, %v483
          %v516 = vpack.c.b16 %v484, %v484
          %vm549 = vcmask 27648
          %550 = vst.msk [vmem:[#allocation2] sm:$0xf] %vm549, %v485
          %551 = vst.msk [vmem:[#allocation2 + $0x24] sm:$0xf] %vm549, %v486
          %552 = vst.msk [vmem:[#allocation2 + $0x48] sm:$0xf] %vm549, %v487
          %553 = vst.msk [vmem:[#allocation2 + $0x6c] sm:$0xf] %vm549, %v488
          %554 = vst.msk [vmem:[#allocation2 + $0x90] sm:$0xf] %vm549, %v489
          %555 = vst.msk [vmem:[#allocation2 + $0xb4] sm:$0xf] %vm549, %v490
          %556 = vst.msk [vmem:[#allocation2 + $0xd8] sm:$0xf] %vm549, %v491
          %557 = vst.msk [vmem:[#allocation2 + $0xfc] sm:$0xf] %vm549, %v492
          %558 = vst.msk [vmem:[#allocation2 + $0x120] sm:$0xf] %vm549, %v493
          %559 = vst.msk [vmem:[#allocation2 + $0x144] sm:$0xf] %vm549, %v494
          %560 = vst.msk [vmem:[#allocation2 + $0x168] sm:$0xf] %vm549, %v495
          %561 = vst.msk [vmem:[#allocation2 + $0x18c] sm:$0xf] %vm549, %v496
          %562 = vst.msk [vmem:[#allocation2 + $0x1b0] sm:$0xf] %vm549, %v497
          %563 = vst.msk [vmem:[#allocation2 + $0x1d4] sm:$0xf] %vm549, %v498
          %564 = vst.msk [vmem:[#allocation2 + $0x1f8] sm:$0xf] %vm549, %v499
          %565 = vst.msk [vmem:[#allocation2 + $0x21c] sm:$0xf] %vm549, %v500
          %566 = vst.msk [vmem:[#allocation2 + $0x240] sm:$0xf] %vm549, %v501
          %567 = vst.msk [vmem:[#allocation2 + $0x264] sm:$0xf] %vm549, %v502
          %568 = vst.msk [vmem:[#allocation2 + $0x288] sm:$0xf] %vm549, %v503
          %569 = vst.msk [vmem:[#allocation2 + $0x2ac] sm:$0xf] %vm549, %v504
          %570 = vst.msk [vmem:[#allocation2 + $0x2d0] sm:$0xf] %vm549, %v505
          %571 = vst.msk [vmem:[#allocation2 + $0x2f4] sm:$0xf] %vm549, %v506
          %572 = vst.msk [vmem:[#allocation2 + $0x318] sm:$0xf] %vm549, %v507
          %573 = vst.msk [vmem:[#allocation2 + $0x33c] sm:$0xf] %vm549, %v508
          %574 = vst.msk [vmem:[#allocation2 + $0x360] sm:$0xf] %vm549, %v509
          %575 = vst.msk [vmem:[#allocation2 + $0x384] sm:$0xf] %vm549, %v510
          %576 = vst.msk [vmem:[#allocation2 + $0x3a8] sm:$0xf] %vm549, %v511
          %577 = vst.msk [vmem:[#allocation2 + $0x3cc] sm:$0xf] %vm549, %v512
          %578 = vst.msk [vmem:[#allocation2 + $0x3f0] sm:$0xf] %vm549, %v513
          %579 = vst.msk [vmem:[#allocation2 + $0x414] sm:$0xf] %vm549, %v514
          %580 = vst.msk [vmem:[#allocation2 + $0x438] sm:$0xf] %vm549, %v515
          %581 = vst.msk [vmem:[#allocation2 + $0x45c] sm:$0xf] %vm549, %v516
          %s582 = sadd.s32 %s223, 1
          %s583 = scalar_lea.vmem %s217, %s582
          %v584 = vld [vmem:[%s583] sm:$0xff]
          %v585 = vld [vmem:[%s583 + $0x8] sm:$0xff]
          %v586 = vld [vmem:[%s583 + $0x10] sm:$0xff]
          %v587 = vld [vmem:[%s583 + $0x18] sm:$0xff]
          %v588 = vld [vmem:[%s583 + $0x20] sm:$0xff]
          %v589 = vld [vmem:[%s583 + $0x28] sm:$0xff]
          %v590 = vld [vmem:[%s583 + $0x30] sm:$0xff]
          %v591 = vld [vmem:[%s583 + $0x38] sm:$0xff]
          %v592 = vld [vmem:[%s583 + $0x40] sm:$0xff]
          %v593 = vld [vmem:[%s583 + $0x48] sm:$0xff]
          %v594 = vld [vmem:[%s583 + $0x50] sm:$0xff]
          %v595 = vld [vmem:[%s583 + $0x58] sm:$0xff]
          %v596 = vld [vmem:[%s583 + $0x60] sm:$0xff]
          %v597 = vld [vmem:[%s583 + $0x68] sm:$0xff]
          %v598 = vld [vmem:[%s583 + $0x70] sm:$0xff]
          %v599 = vld [vmem:[%s583 + $0x78] sm:$0xff]
          %v600 = vld [vmem:[%s583 + $0x80] sm:$0xff]
          %v601 = vld [vmem:[%s583 + $0x88] sm:$0xff]
          %v602 = vld [vmem:[%s583 + $0x90] sm:$0xff]
          %v603 = vld [vmem:[%s583 + $0x98] sm:$0xff]
          %v604 = vld [vmem:[%s583 + $0xa0] sm:$0xff]
          %v605 = vld [vmem:[%s583 + $0xa8] sm:$0xff]
          %v606 = vld [vmem:[%s583 + $0xb0] sm:$0xff]
          %v607 = vld [vmem:[%s583 + $0xb8] sm:$0xff]
          %v608 = vld [vmem:[%s583 + $0xc0] sm:$0xff]
          %v609 = vld [vmem:[%s583 + $0xc8] sm:$0xff]
          %v610 = vld [vmem:[%s583 + $0xd0] sm:$0xff]
          %v611 = vld [vmem:[%s583 + $0xd8] sm:$0xff]
          %v612 = vld [vmem:[%s583 + $0xe0] sm:$0xff]
          %v613 = vld [vmem:[%s583 + $0xe8] sm:$0xff]
          %v614 = vld [vmem:[%s583 + $0xf0] sm:$0xff]
          %v615 = vld [vmem:[%s583 + $0xf8] sm:$0xff]
          %v616 = vpack.c.bf16 %v585, %v584
          %v617 = vpack.c.bf16 %v587, %v586
          %v618 = vpack.c.bf16 %v589, %v588
          %v619 = vpack.c.bf16 %v591, %v590
          %v620 = vpack.c.bf16 %v593, %v592
          %v621 = vpack.c.bf16 %v595, %v594
          %v622 = vpack.c.bf16 %v597, %v596
          %v623 = vpack.c.bf16 %v599, %v598
          %v624 = vpack.c.bf16 %v601, %v600
          %v625 = vpack.c.bf16 %v603, %v602
          %v626 = vpack.c.bf16 %v605, %v604
          %v627 = vpack.c.bf16 %v607, %v606
          %v628 = vpack.c.bf16 %v609, %v608
          %v629 = vpack.c.bf16 %v611, %v610
          %v630 = vpack.c.bf16 %v613, %v612
          %v631 = vpack.c.bf16 %v615, %v614
          %v648 = vunpack.c.l.b16 %v616
          %v649 = vunpack.c.h.b16 %v616
          %v650 = vunpack.c.l.b16 %v617
          %v651 = vunpack.c.h.b16 %v617
          %v652 = vunpack.c.l.b16 %v618
          %v653 = vunpack.c.h.b16 %v618
          %v654 = vunpack.c.l.b16 %v619
          %v655 = vunpack.c.h.b16 %v619
          %v656 = vunpack.c.l.b16 %v620
          %v657 = vunpack.c.h.b16 %v620
          %v658 = vunpack.c.l.b16 %v621
          %v659 = vunpack.c.h.b16 %v621
          %v660 = vunpack.c.l.b16 %v622
          %v661 = vunpack.c.h.b16 %v622
          %v662 = vunpack.c.l.b16 %v623
          %v663 = vunpack.c.h.b16 %v623
          %v664 = vunpack.c.l.b16 %v624
          %v665 = vunpack.c.h.b16 %v624
          %v666 = vunpack.c.l.b16 %v625
          %v667 = vunpack.c.h.b16 %v625
          %v668 = vunpack.c.l.b16 %v626
          %v669 = vunpack.c.h.b16 %v626
          %v670 = vunpack.c.l.b16 %v627
          %v671 = vunpack.c.h.b16 %v627
          %v672 = vunpack.c.l.b16 %v628
          %v673 = vunpack.c.h.b16 %v628
          %v674 = vunpack.c.l.b16 %v629
          %v675 = vunpack.c.h.b16 %v629
          %v676 = vunpack.c.l.b16 %v630
          %v677 = vunpack.c.h.b16 %v630
          %v678 = vunpack.c.l.b16 %v631
          %v679 = vunpack.c.h.b16 %v631
          %v680 = vpack.c.b16 %v648, %v648
          %v681 = vpack.c.b16 %v649, %v649
          %v682 = vpack.c.b16 %v650, %v650
          %v683 = vpack.c.b16 %v651, %v651
          %v684 = vpack.c.b16 %v652, %v652
          %v685 = vpack.c.b16 %v653, %v653
          %v686 = vpack.c.b16 %v654, %v654
          %v687 = vpack.c.b16 %v655, %v655
          %v688 = vpack.c.b16 %v656, %v656
          %v689 = vpack.c.b16 %v657, %v657
          %v690 = vpack.c.b16 %v658, %v658
          %v691 = vpack.c.b16 %v659, %v659
          %v692 = vpack.c.b16 %v660, %v660
          %v693 = vpack.c.b16 %v661, %v661
          %v694 = vpack.c.b16 %v662, %v662
          %v695 = vpack.c.b16 %v663, %v663
          %v696 = vpack.c.b16 %v664, %v664
          %v697 = vpack.c.b16 %v665, %v665
          %v698 = vpack.c.b16 %v666, %v666
          %v699 = vpack.c.b16 %v667, %v667
          %v700 = vpack.c.b16 %v668, %v668
          %v701 = vpack.c.b16 %v669, %v669
          %v702 = vpack.c.b16 %v670, %v670
          %v703 = vpack.c.b16 %v671, %v671
          %v704 = vpack.c.b16 %v672, %v672
          %v705 = vpack.c.b16 %v673, %v673
          %v706 = vpack.c.b16 %v674, %v674
          %v707 = vpack.c.b16 %v675, %v675
          %v708 = vpack.c.b16 %v676, %v676
          %v709 = vpack.c.b16 %v677, %v677
          %v710 = vpack.c.b16 %v678, %v678
          %v711 = vpack.c.b16 %v679, %v679
          %744 = vst.msk [vmem:[#allocation2 + $0x4] sm:$0xf] %vm549, %v680
          %745 = vst.msk [vmem:[#allocation2 + $0x28] sm:$0xf] %vm549, %v681
          %746 = vst.msk [vmem:[#allocation2 + $0x4c] sm:$0xf] %vm549, %v682
          %747 = vst.msk [vmem:[#allocation2 + $0x70] sm:$0xf] %vm549, %v683
          %748 = vst.msk [vmem:[#allocation2 + $0x94] sm:$0xf] %vm549, %v684
          %749 = vst.msk [vmem:[#allocation2 + $0xb8] sm:$0xf] %vm549, %v685
          %750 = vst.msk [vmem:[#allocation2 + $0xdc] sm:$0xf] %vm549, %v686
          %751 = vst.msk [vmem:[#allocation2 + $0x100] sm:$0xf] %vm549, %v687
          %752 = vst.msk [vmem:[#allocation2 + $0x124] sm:$0xf] %vm549, %v688
          %753 = vst.msk [vmem:[#allocation2 + $0x148] sm:$0xf] %vm549, %v689
          %754 = vst.msk [vmem:[#allocation2 + $0x16c] sm:$0xf] %vm549, %v690
          %755 = vst.msk [vmem:[#allocation2 + $0x190] sm:$0xf] %vm549, %v691
          %756 = vst.msk [vmem:[#allocation2 + $0x1b4] sm:$0xf] %vm549, %v692
          %757 = vst.msk [vmem:[#allocation2 + $0x1d8] sm:$0xf] %vm549, %v693
          %758 = vst.msk [vmem:[#allocation2 + $0x1fc] sm:$0xf] %vm549, %v694
          %759 = vst.msk [vmem:[#allocation2 + $0x220] sm:$0xf] %vm549, %v695
          %760 = vst.msk [vmem:[#allocation2 + $0x244] sm:$0xf] %vm549, %v696
          %761 = vst.msk [vmem:[#allocation2 + $0x268] sm:$0xf] %vm549, %v697
          %762 = vst.msk [vmem:[#allocation2 + $0x28c] sm:$0xf] %vm549, %v698
          %763 = vst.msk [vmem:[#allocation2 + $0x2b0] sm:$0xf] %vm549, %v699
          %764 = vst.msk [vmem:[#allocation2 + $0x2d4] sm:$0xf] %vm549, %v700
          %765 = vst.msk [vmem:[#allocation2 + $0x2f8] sm:$0xf] %vm549, %v701
          %766 = vst.msk [vmem:[#allocation2 + $0x31c] sm:$0xf] %vm549, %v702
          %767 = vst.msk [vmem:[#allocation2 + $0x340] sm:$0xf] %vm549, %v703
          %768 = vst.msk [vmem:[#allocation2 + $0x364] sm:$0xf] %vm549, %v704
          %769 = vst.msk [vmem:[#allocation2 + $0x388] sm:$0xf] %vm549, %v705
          %770 = vst.msk [vmem:[#allocation2 + $0x3ac] sm:$0xf] %vm549, %v706
          %771 = vst.msk [vmem:[#allocation2 + $0x3d0] sm:$0xf] %vm549, %v707
          %772 = vst.msk [vmem:[#allocation2 + $0x3f4] sm:$0xf] %vm549, %v708
          %773 = vst.msk [vmem:[#allocation2 + $0x418] sm:$0xf] %vm549, %v709
          %774 = vst.msk [vmem:[#allocation2 + $0x43c] sm:$0xf] %vm549, %v710
          %775 = vst.msk [vmem:[#allocation2 + $0x460] sm:$0xf] %vm549, %v711
          %s776 = sadd.s32 %s223, 2
          %s777 = scalar_lea.vmem %s217, %s776
          %v778 = vld [vmem:[%s777] sm:$0xff]
          %v779 = vld [vmem:[%s777 + $0x8] sm:$0xff]
          %v780 = vld [vmem:[%s777 + $0x10] sm:$0xff]
          %v781 = vld [vmem:[%s777 + $0x18] sm:$0xff]
          %v782 = vld [vmem:[%s777 + $0x20] sm:$0xff]
          %v783 = vld [vmem:[%s777 + $0x28] sm:$0xff]
          %v784 = vld [vmem:[%s777 + $0x30] sm:$0xff]
          %v785 = vld [vmem:[%s777 + $0x38] sm:$0xff]
          %v786 = vld [vmem:[%s777 + $0x40] sm:$0xff]
          %v787 = vld [vmem:[%s777 + $0x48] sm:$0xff]
          %v788 = vld [vmem:[%s777 + $0x50] sm:$0xff]
          %v789 = vld [vmem:[%s777 + $0x58] sm:$0xff]
          %v790 = vld [vmem:[%s777 + $0x60] sm:$0xff]
          %v791 = vld [vmem:[%s777 + $0x68] sm:$0xff]
          %v792 = vld [vmem:[%s777 + $0x70] sm:$0xff]
          %v793 = vld [vmem:[%s777 + $0x78] sm:$0xff]
          %v794 = vld [vmem:[%s777 + $0x80] sm:$0xff]
          %v795 = vld [vmem:[%s777 + $0x88] sm:$0xff]
          %v796 = vld [vmem:[%s777 + $0x90] sm:$0xff]
          %v797 = vld [vmem:[%s777 + $0x98] sm:$0xff]
          %v798 = vld [vmem:[%s777 + $0xa0] sm:$0xff]
          %v799 = vld [vmem:[%s777 + $0xa8] sm:$0xff]
          %v800 = vld [vmem:[%s777 + $0xb0] sm:$0xff]
          %v801 = vld [vmem:[%s777 + $0xb8] sm:$0xff]
          %v802 = vld [vmem:[%s777 + $0xc0] sm:$0xff]
          %v803 = vld [vmem:[%s777 + $0xc8] sm:$0xff]
          %v804 = vld [vmem:[%s777 + $0xd0] sm:$0xff]
          %v805 = vld [vmem:[%s777 + $0xd8] sm:$0xff]
          %v806 = vld [vmem:[%s777 + $0xe0] sm:$0xff]
          %v807 = vld [vmem:[%s777 + $0xe8] sm:$0xff]
          %v808 = vld [vmem:[%s777 + $0xf0] sm:$0xff]
          %v809 = vld [vmem:[%s777 + $0xf8] sm:$0xff]
          %v810 = vpack.c.bf16 %v779, %v778
          %v811 = vpack.c.bf16 %v781, %v780
          %v812 = vpack.c.bf16 %v783, %v782
          %v813 = vpack.c.bf16 %v785, %v784
          %v814 = vpack.c.bf16 %v787, %v786
          %v815 = vpack.c.bf16 %v789, %v788
          %v816 = vpack.c.bf16 %v791, %v790
          %v817 = vpack.c.bf16 %v793, %v792
          %v818 = vpack.c.bf16 %v795, %v794
          %v819 = vpack.c.bf16 %v797, %v796
          %v820 = vpack.c.bf16 %v799, %v798
          %v821 = vpack.c.bf16 %v801, %v800
          %v822 = vpack.c.bf16 %v803, %v802
          %v823 = vpack.c.bf16 %v805, %v804
          %v824 = vpack.c.bf16 %v807, %v806
          %v825 = vpack.c.bf16 %v809, %v808
          %v842 = vunpack.c.l.b16 %v810
          %v843 = vunpack.c.h.b16 %v810
          %v844 = vunpack.c.l.b16 %v811
          %v845 = vunpack.c.h.b16 %v811
          %v846 = vunpack.c.l.b16 %v812
          %v847 = vunpack.c.h.b16 %v812
          %v848 = vunpack.c.l.b16 %v813
          %v849 = vunpack.c.h.b16 %v813
          %v850 = vunpack.c.l.b16 %v814
          %v851 = vunpack.c.h.b16 %v814
          %v852 = vunpack.c.l.b16 %v815
          %v853 = vunpack.c.h.b16 %v815
          %v854 = vunpack.c.l.b16 %v816
          %v855 = vunpack.c.h.b16 %v816
          %v856 = vunpack.c.l.b16 %v817
          %v857 = vunpack.c.h.b16 %v817
          %v858 = vunpack.c.l.b16 %v818
          %v859 = vunpack.c.h.b16 %v818
          %v860 = vunpack.c.l.b16 %v819
          %v861 = vunpack.c.h.b16 %v819
          %v862 = vunpack.c.l.b16 %v820
          %v863 = vunpack.c.h.b16 %v820
          %v864 = vunpack.c.l.b16 %v821
          %v865 = vunpack.c.h.b16 %v821
          %v866 = vunpack.c.l.b16 %v822
          %v867 = vunpack.c.h.b16 %v822
          %v868 = vunpack.c.l.b16 %v823
          %v869 = vunpack.c.h.b16 %v823
          %v870 = vunpack.c.l.b16 %v824
          %v871 = vunpack.c.h.b16 %v824
          %v872 = vunpack.c.l.b16 %v825
          %v873 = vunpack.c.h.b16 %v825
          %v874 = vpack.c.b16 %v842, %v842
          %v875 = vpack.c.b16 %v843, %v843
          %v876 = vpack.c.b16 %v844, %v844
          %v877 = vpack.c.b16 %v845, %v845
          %v878 = vpack.c.b16 %v846, %v846
          %v879 = vpack.c.b16 %v847, %v847
          %v880 = vpack.c.b16 %v848, %v848
          %v881 = vpack.c.b16 %v849, %v849
          %v882 = vpack.c.b16 %v850, %v850
          %v883 = vpack.c.b16 %v851, %v851
          %v884 = vpack.c.b16 %v852, %v852
          %v885 = vpack.c.b16 %v853, %v853
          %v886 = vpack.c.b16 %v854, %v854
          %v887 = vpack.c.b16 %v855, %v855
          %v888 = vpack.c.b16 %v856, %v856
          %v889 = vpack.c.b16 %v857, %v857
          %v890 = vpack.c.b16 %v858, %v858
          %v891 = vpack.c.b16 %v859, %v859
          %v892 = vpack.c.b16 %v860, %v860
          %v893 = vpack.c.b16 %v861, %v861
          %v894 = vpack.c.b16 %v862, %v862
          %v895 = vpack.c.b16 %v863, %v863
          %v896 = vpack.c.b16 %v864, %v864
          %v897 = vpack.c.b16 %v865, %v865
          %v898 = vpack.c.b16 %v866, %v866
          %v899 = vpack.c.b16 %v867, %v867
          %v900 = vpack.c.b16 %v868, %v868
          %v901 = vpack.c.b16 %v869, %v869
          %v902 = vpack.c.b16 %v870, %v870
          %v903 = vpack.c.b16 %v871, %v871
          %v904 = vpack.c.b16 %v872, %v872
          %v905 = vpack.c.b16 %v873, %v873
          %938 = vst.msk [vmem:[#allocation2 + $0x8] sm:$0xf] %vm549, %v874
          %939 = vst.msk [vmem:[#allocation2 + $0x2c] sm:$0xf] %vm549, %v875
          %940 = vst.msk [vmem:[#allocation2 + $0x50] sm:$0xf] %vm549, %v876
          %941 = vst.msk [vmem:[#allocation2 + $0x74] sm:$0xf] %vm549, %v877
          %942 = vst.msk [vmem:[#allocation2 + $0x98] sm:$0xf] %vm549, %v878
          %943 = vst.msk [vmem:[#allocation2 + $0xbc] sm:$0xf] %vm549, %v879
          %944 = vst.msk [vmem:[#allocation2 + $0xe0] sm:$0xf] %vm549, %v880
          %945 = vst.msk [vmem:[#allocation2 + $0x104] sm:$0xf] %vm549, %v881
          %946 = vst.msk [vmem:[#allocation2 + $0x128] sm:$0xf] %vm549, %v882
          %947 = vst.msk [vmem:[#allocation2 + $0x14c] sm:$0xf] %vm549, %v883
          %948 = vst.msk [vmem:[#allocation2 + $0x170] sm:$0xf] %vm549, %v884
          %949 = vst.msk [vmem:[#allocation2 + $0x194] sm:$0xf] %vm549, %v885
          %950 = vst.msk [vmem:[#allocation2 + $0x1b8] sm:$0xf] %vm549, %v886
          %951 = vst.msk [vmem:[#allocation2 + $0x1dc] sm:$0xf] %vm549, %v887
          %952 = vst.msk [vmem:[#allocation2 + $0x200] sm:$0xf] %vm549, %v888
          %953 = vst.msk [vmem:[#allocation2 + $0x224] sm:$0xf] %vm549, %v889
          %954 = vst.msk [vmem:[#allocation2 + $0x248] sm:$0xf] %vm549, %v890
          %955 = vst.msk [vmem:[#allocation2 + $0x26c] sm:$0xf] %vm549, %v891
          %956 = vst.msk [vmem:[#allocation2 + $0x290] sm:$0xf] %vm549, %v892
          %957 = vst.msk [vmem:[#allocation2 + $0x2b4] sm:$0xf] %vm549, %v893
          %958 = vst.msk [vmem:[#allocation2 + $0x2d8] sm:$0xf] %vm549, %v894
          %959 = vst.msk [vmem:[#allocation2 + $0x2fc] sm:$0xf] %vm549, %v895
          %960 = vst.msk [vmem:[#allocation2 + $0x320] sm:$0xf] %vm549, %v896
          %961 = vst.msk [vmem:[#allocation2 + $0x344] sm:$0xf] %vm549, %v897
          %962 = vst.msk [vmem:[#allocation2 + $0x368] sm:$0xf] %vm549, %v898
          %963 = vst.msk [vmem:[#allocation2 + $0x38c] sm:$0xf] %vm549, %v899
          %964 = vst.msk [vmem:[#allocation2 + $0x3b0] sm:$0xf] %vm549, %v900
          %965 = vst.msk [vmem:[#allocation2 + $0x3d4] sm:$0xf] %vm549, %v901
          %966 = vst.msk [vmem:[#allocation2 + $0x3f8] sm:$0xf] %vm549, %v902
          %967 = vst.msk [vmem:[#allocation2 + $0x41c] sm:$0xf] %vm549, %v903
          %968 = vst.msk [vmem:[#allocation2 + $0x440] sm:$0xf] %vm549, %v904
          %969 = vst.msk [vmem:[#allocation2 + $0x464] sm:$0xf] %vm549, %v905
          %s970 = sadd.s32 %s223, 18
          %s971 = scalar_lea.vmem %s217, %s970
          %v972 = vld [vmem:[%s971] sm:$0xff]
          %v973 = vld [vmem:[%s971 + $0x8] sm:$0xff]
          %v974 = vld [vmem:[%s971 + $0x10] sm:$0xff]
          %v975 = vld [vmem:[%s971 + $0x18] sm:$0xff]
          %v976 = vld [vmem:[%s971 + $0x20] sm:$0xff]
          %v977 = vld [vmem:[%s971 + $0x28] sm:$0xff]
          %v978 = vld [vmem:[%s971 + $0x30] sm:$0xff]
          %v979 = vld [vmem:[%s971 + $0x38] sm:$0xff]
          %v980 = vld [vmem:[%s971 + $0x40] sm:$0xff]
          %v981 = vld [vmem:[%s971 + $0x48] sm:$0xff]
          %v982 = vld [vmem:[%s971 + $0x50] sm:$0xff]
          %v983 = vld [vmem:[%s971 + $0x58] sm:$0xff]
          %v984 = vld [vmem:[%s971 + $0x60] sm:$0xff]
          %v985 = vld [vmem:[%s971 + $0x68] sm:$0xff]
          %v986 = vld [vmem:[%s971 + $0x70] sm:$0xff]
          %v987 = vld [vmem:[%s971 + $0x78] sm:$0xff]
          %v988 = vld [vmem:[%s971 + $0x80] sm:$0xff]
          %v989 = vld [vmem:[%s971 + $0x88] sm:$0xff]
          %v990 = vld [vmem:[%s971 + $0x90] sm:$0xff]
          %v991 = vld [vmem:[%s971 + $0x98] sm:$0xff]
          %v992 = vld [vmem:[%s971 + $0xa0] sm:$0xff]
          %v993 = vld [vmem:[%s971 + $0xa8] sm:$0xff]
          %v994 = vld [vmem:[%s971 + $0xb0] sm:$0xff]
          %v995 = vld [vmem:[%s971 + $0xb8] sm:$0xff]
          %v996 = vld [vmem:[%s971 + $0xc0] sm:$0xff]
          %v997 = vld [vmem:[%s971 + $0xc8] sm:$0xff]
          %v998 = vld [vmem:[%s971 + $0xd0] sm:$0xff]
          %v999 = vld [vmem:[%s971 + $0xd8] sm:$0xff]
          %v1000 = vld [vmem:[%s971 + $0xe0] sm:$0xff]
          %v1001 = vld [vmem:[%s971 + $0xe8] sm:$0xff]
          %v1002 = vld [vmem:[%s971 + $0xf0] sm:$0xff]
          %v1003 = vld [vmem:[%s971 + $0xf8] sm:$0xff]
          %v1004 = vpack.c.bf16 %v973, %v972
          %v1005 = vpack.c.bf16 %v975, %v974
          %v1006 = vpack.c.bf16 %v977, %v976
          %v1007 = vpack.c.bf16 %v979, %v978
          %v1008 = vpack.c.bf16 %v981, %v980
          %v1009 = vpack.c.bf16 %v983, %v982
          %v1010 = vpack.c.bf16 %v985, %v984
          %v1011 = vpack.c.bf16 %v987, %v986
          %v1012 = vpack.c.bf16 %v989, %v988
          %v1013 = vpack.c.bf16 %v991, %v990
          %v1014 = vpack.c.bf16 %v993, %v992
          %v1015 = vpack.c.bf16 %v995, %v994
          %v1016 = vpack.c.bf16 %v997, %v996
          %v1017 = vpack.c.bf16 %v999, %v998
          %v1018 = vpack.c.bf16 %v1001, %v1000
          %v1019 = vpack.c.bf16 %v1003, %v1002
          %v1036 = vunpack.c.l.b16 %v1004
          %v1037 = vunpack.c.h.b16 %v1004
          %v1038 = vunpack.c.l.b16 %v1005
          %v1039 = vunpack.c.h.b16 %v1005
          %v1040 = vunpack.c.l.b16 %v1006
          %v1041 = vunpack.c.h.b16 %v1006
          %v1042 = vunpack.c.l.b16 %v1007
          %v1043 = vunpack.c.h.b16 %v1007
          %v1044 = vunpack.c.l.b16 %v1008
          %v1045 = vunpack.c.h.b16 %v1008
          %v1046 = vunpack.c.l.b16 %v1009
          %v1047 = vunpack.c.h.b16 %v1009
          %v1048 = vunpack.c.l.b16 %v1010
          %v1049 = vunpack.c.h.b16 %v1010
          %v1050 = vunpack.c.l.b16 %v1011
          %v1051 = vunpack.c.h.b16 %v1011
          %v1052 = vunpack.c.l.b16 %v1012
          %v1053 = vunpack.c.h.b16 %v1012
          %v1054 = vunpack.c.l.b16 %v1013
          %v1055 = vunpack.c.h.b16 %v1013
          %v1056 = vunpack.c.l.b16 %v1014
          %v1057 = vunpack.c.h.b16 %v1014
          %v1058 = vunpack.c.l.b16 %v1015
          %v1059 = vunpack.c.h.b16 %v1015
          %v1060 = vunpack.c.l.b16 %v1016
          %v1061 = vunpack.c.h.b16 %v1016
          %v1062 = vunpack.c.l.b16 %v1017
          %v1063 = vunpack.c.h.b16 %v1017
          %v1064 = vunpack.c.l.b16 %v1018
          %v1065 = vunpack.c.h.b16 %v1018
          %v1066 = vunpack.c.l.b16 %v1019
          %v1067 = vunpack.c.h.b16 %v1019
          %v1068 = vpack.c.b16 %v1036, %v1036
          %v1069 = vpack.c.b16 %v1037, %v1037
          %v1070 = vpack.c.b16 %v1038, %v1038
          %v1071 = vpack.c.b16 %v1039, %v1039
          %v1072 = vpack.c.b16 %v1040, %v1040
          %v1073 = vpack.c.b16 %v1041, %v1041
          %v1074 = vpack.c.b16 %v1042, %v1042
          %v1075 = vpack.c.b16 %v1043, %v1043
          %v1076 = vpack.c.b16 %v1044, %v1044
          %v1077 = vpack.c.b16 %v1045, %v1045
          %v1078 = vpack.c.b16 %v1046, %v1046
          %v1079 = vpack.c.b16 %v1047, %v1047
          %v1080 = vpack.c.b16 %v1048, %v1048
          %v1081 = vpack.c.b16 %v1049, %v1049
          %v1082 = vpack.c.b16 %v1050, %v1050
          %v1083 = vpack.c.b16 %v1051, %v1051
          %v1084 = vpack.c.b16 %v1052, %v1052
          %v1085 = vpack.c.b16 %v1053, %v1053
          %v1086 = vpack.c.b16 %v1054, %v1054
          %v1087 = vpack.c.b16 %v1055, %v1055
          %v1088 = vpack.c.b16 %v1056, %v1056
          %v1089 = vpack.c.b16 %v1057, %v1057
          %v1090 = vpack.c.b16 %v1058, %v1058
          %v1091 = vpack.c.b16 %v1059, %v1059
          %v1092 = vpack.c.b16 %v1060, %v1060
          %v1093 = vpack.c.b16 %v1061, %v1061
          %v1094 = vpack.c.b16 %v1062, %v1062
          %v1095 = vpack.c.b16 %v1063, %v1063
          %v1096 = vpack.c.b16 %v1064, %v1064
          %v1097 = vpack.c.b16 %v1065, %v1065
          %v1098 = vpack.c.b16 %v1066, %v1066
          %v1099 = vpack.c.b16 %v1067, %v1067
          %1132 = vst.msk [vmem:[#allocation2 + $0xc] sm:$0xf] %vm549, %v1068
          %1133 = vst.msk [vmem:[#allocation2 + $0x30] sm:$0xf] %vm549, %v1069
          %1134 = vst.msk [vmem:[#allocation2 + $0x54] sm:$0xf] %vm549, %v1070
          %1135 = vst.msk [vmem:[#allocation2 + $0x78] sm:$0xf] %vm549, %v1071
          %1136 = vst.msk [vmem:[#allocation2 + $0x9c] sm:$0xf] %vm549, %v1072
          %1137 = vst.msk [vmem:[#allocation2 + $0xc0] sm:$0xf] %vm549, %v1073
          %1138 = vst.msk [vmem:[#allocation2 + $0xe4] sm:$0xf] %vm549, %v1074
          %1139 = vst.msk [vmem:[#allocation2 + $0x108] sm:$0xf] %vm549, %v1075
          %1140 = vst.msk [vmem:[#allocation2 + $0x12c] sm:$0xf] %vm549, %v1076
          %1141 = vst.msk [vmem:[#allocation2 + $0x150] sm:$0xf] %vm549, %v1077
          %1142 = vst.msk [vmem:[#allocation2 + $0x174] sm:$0xf] %vm549, %v1078
          %1143 = vst.msk [vmem:[#allocation2 + $0x198] sm:$0xf] %vm549, %v1079
          %1144 = vst.msk [vmem:[#allocation2 + $0x1bc] sm:$0xf] %vm549, %v1080
          %1145 = vst.msk [vmem:[#allocation2 + $0x1e0] sm:$0xf] %vm549, %v1081
          %1146 = vst.msk [vmem:[#allocation2 + $0x204] sm:$0xf] %vm549, %v1082
          %1147 = vst.msk [vmem:[#allocation2 + $0x228] sm:$0xf] %vm549, %v1083
          %1148 = vst.msk [vmem:[#allocation2 + $0x24c] sm:$0xf] %vm549, %v1084
          %1149 = vst.msk [vmem:[#allocation2 + $0x270] sm:$0xf] %vm549, %v1085
          %1150 = vst.msk [vmem:[#allocation2 + $0x294] sm:$0xf] %vm549, %v1086
          %1151 = vst.msk [vmem:[#allocation2 + $0x2b8] sm:$0xf] %vm549, %v1087
          %1152 = vst.msk [vmem:[#allocation2 + $0x2dc] sm:$0xf] %vm549, %v1088
          %1153 = vst.msk [vmem:[#allocation2 + $0x300] sm:$0xf] %vm549, %v1089
          %1154 = vst.msk [vmem:[#allocation2 + $0x324] sm:$0xf] %vm549, %v1090
          %1155 = vst.msk [vmem:[#allocation2 + $0x348] sm:$0xf] %vm549, %v1091
          %1156 = vst.msk [vmem:[#allocation2 + $0x36c] sm:$0xf] %vm549, %v1092
          %1157 = vst.msk [vmem:[#allocation2 + $0x390] sm:$0xf] %vm549, %v1093
          %1158 = vst.msk [vmem:[#allocation2 + $0x3b4] sm:$0xf] %vm549, %v1094
          %1159 = vst.msk [vmem:[#allocation2 + $0x3d8] sm:$0xf] %vm549, %v1095
          %1160 = vst.msk [vmem:[#allocation2 + $0x3fc] sm:$0xf] %vm549, %v1096
          %1161 = vst.msk [vmem:[#allocation2 + $0x420] sm:$0xf] %vm549, %v1097
          %1162 = vst.msk [vmem:[#allocation2 + $0x444] sm:$0xf] %vm549, %v1098
          %1163 = vst.msk [vmem:[#allocation2 + $0x468] sm:$0xf] %vm549, %v1099
          %s1164 = sadd.s32 %s223, 19
          %s1165 = scalar_lea.vmem %s217, %s1164
          %v1166 = vld [vmem:[%s1165] sm:$0xff]
          %v1167 = vld [vmem:[%s1165 + $0x8] sm:$0xff]
          %v1168 = vld [vmem:[%s1165 + $0x10] sm:$0xff]
          %v1169 = vld [vmem:[%s1165 + $0x18] sm:$0xff]
          %v1170 = vld [vmem:[%s1165 + $0x20] sm:$0xff]
          %v1171 = vld [vmem:[%s1165 + $0x28] sm:$0xff]
          %v1172 = vld [vmem:[%s1165 + $0x30] sm:$0xff]
          %v1173 = vld [vmem:[%s1165 + $0x38] sm:$0xff]
          %v1174 = vld [vmem:[%s1165 + $0x40] sm:$0xff]
          %v1175 = vld [vmem:[%s1165 + $0x48] sm:$0xff]
          %v1176 = vld [vmem:[%s1165 + $0x50] sm:$0xff]
          %v1177 = vld [vmem:[%s1165 + $0x58] sm:$0xff]
          %v1178 = vld [vmem:[%s1165 + $0x60] sm:$0xff]
          %v1179 = vld [vmem:[%s1165 + $0x68] sm:$0xff]
          %v1180 = vld [vmem:[%s1165 + $0x70] sm:$0xff]
          %v1181 = vld [vmem:[%s1165 + $0x78] sm:$0xff]
          %v1182 = vld [vmem:[%s1165 + $0x80] sm:$0xff]
          %v1183 = vld [vmem:[%s1165 + $0x88] sm:$0xff]
          %v1184 = vld [vmem:[%s1165 + $0x90] sm:$0xff]
          %v1185 = vld [vmem:[%s1165 + $0x98] sm:$0xff]
          %v1186 = vld [vmem:[%s1165 + $0xa0] sm:$0xff]
          %v1187 = vld [vmem:[%s1165 + $0xa8] sm:$0xff]
          %v1188 = vld [vmem:[%s1165 + $0xb0] sm:$0xff]
          %v1189 = vld [vmem:[%s1165 + $0xb8] sm:$0xff]
          %v1190 = vld [vmem:[%s1165 + $0xc0] sm:$0xff]
          %v1191 = vld [vmem:[%s1165 + $0xc8] sm:$0xff]
          %v1192 = vld [vmem:[%s1165 + $0xd0] sm:$0xff]
          %v1193 = vld [vmem:[%s1165 + $0xd8] sm:$0xff]
          %v1194 = vld [vmem:[%s1165 + $0xe0] sm:$0xff]
          %v1195 = vld [vmem:[%s1165 + $0xe8] sm:$0xff]
          %v1196 = vld [vmem:[%s1165 + $0xf0] sm:$0xff]
          %v1197 = vld [vmem:[%s1165 + $0xf8] sm:$0xff]
          %v1198 = vpack.c.bf16 %v1167, %v1166
          %v1199 = vpack.c.bf16 %v1169, %v1168
          %v1200 = vpack.c.bf16 %v1171, %v1170
          %v1201 = vpack.c.bf16 %v1173, %v1172
          %v1202 = vpack.c.bf16 %v1175, %v1174
          %v1203 = vpack.c.bf16 %v1177, %v1176
          %v1204 = vpack.c.bf16 %v1179, %v1178
          %v1205 = vpack.c.bf16 %v1181, %v1180
          %v1206 = vpack.c.bf16 %v1183, %v1182
          %v1207 = vpack.c.bf16 %v1185, %v1184
          %v1208 = vpack.c.bf16 %v1187, %v1186
          %v1209 = vpack.c.bf16 %v1189, %v1188
          %v1210 = vpack.c.bf16 %v1191, %v1190
          %v1211 = vpack.c.bf16 %v1193, %v1192
          %v1212 = vpack.c.bf16 %v1195, %v1194
          %v1213 = vpack.c.bf16 %v1197, %v1196
          %v1230 = vunpack.c.l.b16 %v1198
          %v1231 = vunpack.c.h.b16 %v1198
          %v1232 = vunpack.c.l.b16 %v1199
          %v1233 = vunpack.c.h.b16 %v1199
          %v1234 = vunpack.c.l.b16 %v1200
          %v1235 = vunpack.c.h.b16 %v1200
          %v1236 = vunpack.c.l.b16 %v1201
          %v1237 = vunpack.c.h.b16 %v1201
          %v1238 = vunpack.c.l.b16 %v1202
          %v1239 = vunpack.c.h.b16 %v1202
          %v1240 = vunpack.c.l.b16 %v1203
          %v1241 = vunpack.c.h.b16 %v1203
          %v1242 = vunpack.c.l.b16 %v1204
          %v1243 = vunpack.c.h.b16 %v1204
          %v1244 = vunpack.c.l.b16 %v1205
          %v1245 = vunpack.c.h.b16 %v1205
          %v1246 = vunpack.c.l.b16 %v1206
          %v1247 = vunpack.c.h.b16 %v1206
          %v1248 = vunpack.c.l.b16 %v1207
          %v1249 = vunpack.c.h.b16 %v1207
          %v1250 = vunpack.c.l.b16 %v1208
          %v1251 = vunpack.c.h.b16 %v1208
          %v1252 = vunpack.c.l.b16 %v1209
          %v1253 = vunpack.c.h.b16 %v1209
          %v1254 = vunpack.c.l.b16 %v1210
          %v1255 = vunpack.c.h.b16 %v1210
          %v1256 = vunpack.c.l.b16 %v1211
          %v1257 = vunpack.c.h.b16 %v1211
          %v1258 = vunpack.c.l.b16 %v1212
          %v1259 = vunpack.c.h.b16 %v1212
          %v1260 = vunpack.c.l.b16 %v1213
          %v1261 = vunpack.c.h.b16 %v1213
          %v1262 = vpack.c.b16 %v1230, %v1230
          %v1263 = vpack.c.b16 %v1231, %v1231
          %v1264 = vpack.c.b16 %v1232, %v1232
          %v1265 = vpack.c.b16 %v1233, %v1233
          %v1266 = vpack.c.b16 %v1234, %v1234
          %v1267 = vpack.c.b16 %v1235, %v1235
          %v1268 = vpack.c.b16 %v1236, %v1236
          %v1269 = vpack.c.b16 %v1237, %v1237
          %v1270 = vpack.c.b16 %v1238, %v1238
          %v1271 = vpack.c.b16 %v1239, %v1239
          %v1272 = vpack.c.b16 %v1240, %v1240
          %v1273 = vpack.c.b16 %v1241, %v1241
          %v1274 = vpack.c.b16 %v1242, %v1242
          %v1275 = vpack.c.b16 %v1243, %v1243
          %v1276 = vpack.c.b16 %v1244, %v1244
          %v1277 = vpack.c.b16 %v1245, %v1245
          %v1278 = vpack.c.b16 %v1246, %v1246
          %v1279 = vpack.c.b16 %v1247, %v1247
          %v1280 = vpack.c.b16 %v1248, %v1248
          %v1281 = vpack.c.b16 %v1249, %v1249
          %v1282 = vpack.c.b16 %v1250, %v1250
          %v1283 = vpack.c.b16 %v1251, %v1251
          %v1284 = vpack.c.b16 %v1252, %v1252
          %v1285 = vpack.c.b16 %v1253, %v1253
          %v1286 = vpack.c.b16 %v1254, %v1254
          %v1287 = vpack.c.b16 %v1255, %v1255
          %v1288 = vpack.c.b16 %v1256, %v1256
          %v1289 = vpack.c.b16 %v1257, %v1257
          %v1290 = vpack.c.b16 %v1258, %v1258
          %v1291 = vpack.c.b16 %v1259, %v1259
          %v1292 = vpack.c.b16 %v1260, %v1260
          %v1293 = vpack.c.b16 %v1261, %v1261
          %1326 = vst.msk [vmem:[#allocation2 + $0x10] sm:$0xf] %vm549, %v1262
          %1327 = vst.msk [vmem:[#allocation2 + $0x34] sm:$0xf] %vm549, %v1263
          %1328 = vst.msk [vmem:[#allocation2 + $0x58] sm:$0xf] %vm549, %v1264
          %1329 = vst.msk [vmem:[#allocation2 + $0x7c] sm:$0xf] %vm549, %v1265
          %1330 = vst.msk [vmem:[#allocation2 + $0xa0] sm:$0xf] %vm549, %v1266
          %1331 = vst.msk [vmem:[#allocation2 + $0xc4] sm:$0xf] %vm549, %v1267
          %1332 = vst.msk [vmem:[#allocation2 + $0xe8] sm:$0xf] %vm549, %v1268
          %1333 = vst.msk [vmem:[#allocation2 + $0x10c] sm:$0xf] %vm549, %v1269
          %1334 = vst.msk [vmem:[#allocation2 + $0x130] sm:$0xf] %vm549, %v1270
          %1335 = vst.msk [vmem:[#allocation2 + $0x154] sm:$0xf] %vm549, %v1271
          %1336 = vst.msk [vmem:[#allocation2 + $0x178] sm:$0xf] %vm549, %v1272
          %1337 = vst.msk [vmem:[#allocation2 + $0x19c] sm:$0xf] %vm549, %v1273
          %1338 = vst.msk [vmem:[#allocation2 + $0x1c0] sm:$0xf] %vm549, %v1274
          %1339 = vst.msk [vmem:[#allocation2 + $0x1e4] sm:$0xf] %vm549, %v1275
          %1340 = vst.msk [vmem:[#allocation2 + $0x208] sm:$0xf] %vm549, %v1276
          %1341 = vst.msk [vmem:[#allocation2 + $0x22c] sm:$0xf] %vm549, %v1277
          %1342 = vst.msk [vmem:[#allocation2 + $0x250] sm:$0xf] %vm549, %v1278
          %1343 = vst.msk [vmem:[#allocation2 + $0x274] sm:$0xf] %vm549, %v1279
          %1344 = vst.msk [vmem:[#allocation2 + $0x298] sm:$0xf] %vm549, %v1280
          %1345 = vst.msk [vmem:[#allocation2 + $0x2bc] sm:$0xf] %vm549, %v1281
          %1346 = vst.msk [vmem:[#allocation2 + $0x2e0] sm:$0xf] %vm549, %v1282
          %1347 = vst.msk [vmem:[#allocation2 + $0x304] sm:$0xf] %vm549, %v1283
          %1348 = vst.msk [vmem:[#allocation2 + $0x328] sm:$0xf] %vm549, %v1284
          %1349 = vst.msk [vmem:[#allocation2 + $0x34c] sm:$0xf] %vm549, %v1285
          %1350 = vst.msk [vmem:[#allocation2 + $0x370] sm:$0xf] %vm549, %v1286
          %1351 = vst.msk [vmem:[#allocation2 + $0x394] sm:$0xf] %vm549, %v1287
          %1352 = vst.msk [vmem:[#allocation2 + $0x3b8] sm:$0xf] %vm549, %v1288
          %1353 = vst.msk [vmem:[#allocation2 + $0x3dc] sm:$0xf] %vm549, %v1289
          %1354 = vst.msk [vmem:[#allocation2 + $0x400] sm:$0xf] %vm549, %v1290
          %1355 = vst.msk [vmem:[#allocation2 + $0x424] sm:$0xf] %vm549, %v1291
          %1356 = vst.msk [vmem:[#allocation2 + $0x448] sm:$0xf] %vm549, %v1292
          %1357 = vst.msk [vmem:[#allocation2 + $0x46c] sm:$0xf] %vm549, %v1293
          %s1358 = sadd.s32 %s223, 20
          %s1359 = scalar_lea.vmem %s217, %s1358
          %v1360 = vld [vmem:[%s1359] sm:$0xff]
          %v1361 = vld [vmem:[%s1359 + $0x8] sm:$0xff]
          %v1362 = vld [vmem:[%s1359 + $0x10] sm:$0xff]
          %v1363 = vld [vmem:[%s1359 + $0x18] sm:$0xff]
          %v1364 = vld [vmem:[%s1359 + $0x20] sm:$0xff]
          %v1365 = vld [vmem:[%s1359 + $0x28] sm:$0xff]
          %v1366 = vld [vmem:[%s1359 + $0x30] sm:$0xff]
          %v1367 = vld [vmem:[%s1359 + $0x38] sm:$0xff]
          %v1368 = vld [vmem:[%s1359 + $0x40] sm:$0xff]
          %v1369 = vld [vmem:[%s1359 + $0x48] sm:$0xff]
          %v1370 = vld [vmem:[%s1359 + $0x50] sm:$0xff]
          %v1371 = vld [vmem:[%s1359 + $0x58] sm:$0xff]
          %v1372 = vld [vmem:[%s1359 + $0x60] sm:$0xff]
          %v1373 = vld [vmem:[%s1359 + $0x68] sm:$0xff]
          %v1374 = vld [vmem:[%s1359 + $0x70] sm:$0xff]
          %v1375 = vld [vmem:[%s1359 + $0x78] sm:$0xff]
          %v1376 = vld [vmem:[%s1359 + $0x80] sm:$0xff]
          %v1377 = vld [vmem:[%s1359 + $0x88] sm:$0xff]
          %v1378 = vld [vmem:[%s1359 + $0x90] sm:$0xff]
          %v1379 = vld [vmem:[%s1359 + $0x98] sm:$0xff]
          %v1380 = vld [vmem:[%s1359 + $0xa0] sm:$0xff]
          %v1381 = vld [vmem:[%s1359 + $0xa8] sm:$0xff]
          %v1382 = vld [vmem:[%s1359 + $0xb0] sm:$0xff]
          %v1383 = vld [vmem:[%s1359 + $0xb8] sm:$0xff]
          %v1384 = vld [vmem:[%s1359 + $0xc0] sm:$0xff]
          %v1385 = vld [vmem:[%s1359 + $0xc8] sm:$0xff]
          %v1386 = vld [vmem:[%s1359 + $0xd0] sm:$0xff]
          %v1387 = vld [vmem:[%s1359 + $0xd8] sm:$0xff]
          %v1388 = vld [vmem:[%s1359 + $0xe0] sm:$0xff]
          %v1389 = vld [vmem:[%s1359 + $0xe8] sm:$0xff]
          %v1390 = vld [vmem:[%s1359 + $0xf0] sm:$0xff]
          %v1391 = vld [vmem:[%s1359 + $0xf8] sm:$0xff]
          %v1392 = vpack.c.bf16 %v1361, %v1360
          %v1393 = vpack.c.bf16 %v1363, %v1362
          %v1394 = vpack.c.bf16 %v1365, %v1364
          %v1395 = vpack.c.bf16 %v1367, %v1366
          %v1396 = vpack.c.bf16 %v1369, %v1368
          %v1397 = vpack.c.bf16 %v1371, %v1370
          %v1398 = vpack.c.bf16 %v1373, %v1372
          %v1399 = vpack.c.bf16 %v1375, %v1374
          %v1400 = vpack.c.bf16 %v1377, %v1376
          %v1401 = vpack.c.bf16 %v1379, %v1378
          %v1402 = vpack.c.bf16 %v1381, %v1380
          %v1403 = vpack.c.bf16 %v1383, %v1382
          %v1404 = vpack.c.bf16 %v1385, %v1384
          %v1405 = vpack.c.bf16 %v1387, %v1386
          %v1406 = vpack.c.bf16 %v1389, %v1388
          %v1407 = vpack.c.bf16 %v1391, %v1390
          %v1424 = vunpack.c.l.b16 %v1392
          %v1425 = vunpack.c.h.b16 %v1392
          %v1426 = vunpack.c.l.b16 %v1393
          %v1427 = vunpack.c.h.b16 %v1393
          %v1428 = vunpack.c.l.b16 %v1394
          %v1429 = vunpack.c.h.b16 %v1394
          %v1430 = vunpack.c.l.b16 %v1395
          %v1431 = vunpack.c.h.b16 %v1395
          %v1432 = vunpack.c.l.b16 %v1396
          %v1433 = vunpack.c.h.b16 %v1396
          %v1434 = vunpack.c.l.b16 %v1397
          %v1435 = vunpack.c.h.b16 %v1397
          %v1436 = vunpack.c.l.b16 %v1398
          %v1437 = vunpack.c.h.b16 %v1398
          %v1438 = vunpack.c.l.b16 %v1399
          %v1439 = vunpack.c.h.b16 %v1399
          %v1440 = vunpack.c.l.b16 %v1400
          %v1441 = vunpack.c.h.b16 %v1400
          %v1442 = vunpack.c.l.b16 %v1401
          %v1443 = vunpack.c.h.b16 %v1401
          %v1444 = vunpack.c.l.b16 %v1402
          %v1445 = vunpack.c.h.b16 %v1402
          %v1446 = vunpack.c.l.b16 %v1403
          %v1447 = vunpack.c.h.b16 %v1403
          %v1448 = vunpack.c.l.b16 %v1404
          %v1449 = vunpack.c.h.b16 %v1404
          %v1450 = vunpack.c.l.b16 %v1405
          %v1451 = vunpack.c.h.b16 %v1405
          %v1452 = vunpack.c.l.b16 %v1406
          %v1453 = vunpack.c.h.b16 %v1406
          %v1454 = vunpack.c.l.b16 %v1407
          %v1455 = vunpack.c.h.b16 %v1407
          %v1456 = vpack.c.b16 %v1424, %v1424
          %v1457 = vpack.c.b16 %v1425, %v1425
          %v1458 = vpack.c.b16 %v1426, %v1426
          %v1459 = vpack.c.b16 %v1427, %v1427
          %v1460 = vpack.c.b16 %v1428, %v1428
          %v1461 = vpack.c.b16 %v1429, %v1429
          %v1462 = vpack.c.b16 %v1430, %v1430
          %v1463 = vpack.c.b16 %v1431, %v1431
          %v1464 = vpack.c.b16 %v1432, %v1432
          %v1465 = vpack.c.b16 %v1433, %v1433
          %v1466 = vpack.c.b16 %v1434, %v1434
          %v1467 = vpack.c.b16 %v1435, %v1435
          %v1468 = vpack.c.b16 %v1436, %v1436
          %v1469 = vpack.c.b16 %v1437, %v1437
          %v1470 = vpack.c.b16 %v1438, %v1438
          %v1471 = vpack.c.b16 %v1439, %v1439
          %v1472 = vpack.c.b16 %v1440, %v1440
          %v1473 = vpack.c.b16 %v1441, %v1441
          %v1474 = vpack.c.b16 %v1442, %v1442
          %v1475 = vpack.c.b16 %v1443, %v1443
          %v1476 = vpack.c.b16 %v1444, %v1444
          %v1477 = vpack.c.b16 %v1445, %v1445
          %v1478 = vpack.c.b16 %v1446, %v1446
          %v1479 = vpack.c.b16 %v1447, %v1447
          %v1480 = vpack.c.b16 %v1448, %v1448
          %v1481 = vpack.c.b16 %v1449, %v1449
          %v1482 = vpack.c.b16 %v1450, %v1450
          %v1483 = vpack.c.b16 %v1451, %v1451
          %v1484 = vpack.c.b16 %v1452, %v1452
          %v1485 = vpack.c.b16 %v1453, %v1453
          %v1486 = vpack.c.b16 %v1454, %v1454
          %v1487 = vpack.c.b16 %v1455, %v1455
          %1520 = vst.msk [vmem:[#allocation2 + $0x14] sm:$0xf] %vm549, %v1456
          %1521 = vst.msk [vmem:[#allocation2 + $0x38] sm:$0xf] %vm549, %v1457
          %1522 = vst.msk [vmem:[#allocation2 + $0x5c] sm:$0xf] %vm549, %v1458
          %1523 = vst.msk [vmem:[#allocation2 + $0x80] sm:$0xf] %vm549, %v1459
          %1524 = vst.msk [vmem:[#allocation2 + $0xa4] sm:$0xf] %vm549, %v1460
          %1525 = vst.msk [vmem:[#allocation2 + $0xc8] sm:$0xf] %vm549, %v1461
          %1526 = vst.msk [vmem:[#allocation2 + $0xec] sm:$0xf] %vm549, %v1462
          %1527 = vst.msk [vmem:[#allocation2 + $0x110] sm:$0xf] %vm549, %v1463
          %1528 = vst.msk [vmem:[#allocation2 + $0x134] sm:$0xf] %vm549, %v1464
          %1529 = vst.msk [vmem:[#allocation2 + $0x158] sm:$0xf] %vm549, %v1465
          %1530 = vst.msk [vmem:[#allocation2 + $0x17c] sm:$0xf] %vm549, %v1466
          %1531 = vst.msk [vmem:[#allocation2 + $0x1a0] sm:$0xf] %vm549, %v1467
          %1532 = vst.msk [vmem:[#allocation2 + $0x1c4] sm:$0xf] %vm549, %v1468
          %1533 = vst.msk [vmem:[#allocation2 + $0x1e8] sm:$0xf] %vm549, %v1469
          %1534 = vst.msk [vmem:[#allocation2 + $0x20c] sm:$0xf] %vm549, %v1470
          %1535 = vst.msk [vmem:[#allocation2 + $0x230] sm:$0xf] %vm549, %v1471
          %1536 = vst.msk [vmem:[#allocation2 + $0x254] sm:$0xf] %vm549, %v1472
          %1537 = vst.msk [vmem:[#allocation2 + $0x278] sm:$0xf] %vm549, %v1473
          %1538 = vst.msk [vmem:[#allocation2 + $0x29c] sm:$0xf] %vm549, %v1474
          %1539 = vst.msk [vmem:[#allocation2 + $0x2c0] sm:$0xf] %vm549, %v1475
          %1540 = vst.msk [vmem:[#allocation2 + $0x2e4] sm:$0xf] %vm549, %v1476
          %1541 = vst.msk [vmem:[#allocation2 + $0x308] sm:$0xf] %vm549, %v1477
          %1542 = vst.msk [vmem:[#allocation2 + $0x32c] sm:$0xf] %vm549, %v1478
          %1543 = vst.msk [vmem:[#allocation2 + $0x350] sm:$0xf] %vm549, %v1479
          %1544 = vst.msk [vmem:[#allocation2 + $0x374] sm:$0xf] %vm549, %v1480
          %1545 = vst.msk [vmem:[#allocation2 + $0x398] sm:$0xf] %vm549, %v1481
          %1546 = vst.msk [vmem:[#allocation2 + $0x3bc] sm:$0xf] %vm549, %v1482
          %1547 = vst.msk [vmem:[#allocation2 + $0x3e0] sm:$0xf] %vm549, %v1483
          %1548 = vst.msk [vmem:[#allocation2 + $0x404] sm:$0xf] %vm549, %v1484
          %1549 = vst.msk [vmem:[#allocation2 + $0x428] sm:$0xf] %vm549, %v1485
          %1550 = vst.msk [vmem:[#allocation2 + $0x44c] sm:$0xf] %vm549, %v1486
          %1551 = vst.msk [vmem:[#allocation2 + $0x470] sm:$0xf] %vm549, %v1487
          %s1552 = sadd.s32 %s223, 36
          %s1553 = scalar_lea.vmem %s217, %s1552
          %v1554 = vld [vmem:[%s1553] sm:$0xff]
          %v1555 = vld [vmem:[%s1553 + $0x8] sm:$0xff]
          %v1556 = vld [vmem:[%s1553 + $0x10] sm:$0xff]
          %v1557 = vld [vmem:[%s1553 + $0x18] sm:$0xff]
          %v1558 = vld [vmem:[%s1553 + $0x20] sm:$0xff]
          %v1559 = vld [vmem:[%s1553 + $0x28] sm:$0xff]
          %v1560 = vld [vmem:[%s1553 + $0x30] sm:$0xff]
          %v1561 = vld [vmem:[%s1553 + $0x38] sm:$0xff]
          %v1562 = vld [vmem:[%s1553 + $0x40] sm:$0xff]
          %v1563 = vld [vmem:[%s1553 + $0x48] sm:$0xff]
          %v1564 = vld [vmem:[%s1553 + $0x50] sm:$0xff]
          %v1565 = vld [vmem:[%s1553 + $0x58] sm:$0xff]
          %v1566 = vld [vmem:[%s1553 + $0x60] sm:$0xff]
          %v1567 = vld [vmem:[%s1553 + $0x68] sm:$0xff]
          %v1568 = vld [vmem:[%s1553 + $0x70] sm:$0xff]
          %v1569 = vld [vmem:[%s1553 + $0x78] sm:$0xff]
          %v1570 = vld [vmem:[%s1553 + $0x80] sm:$0xff]
          %v1571 = vld [vmem:[%s1553 + $0x88] sm:$0xff]
          %v1572 = vld [vmem:[%s1553 + $0x90] sm:$0xff]
          %v1573 = vld [vmem:[%s1553 + $0x98] sm:$0xff]
          %v1574 = vld [vmem:[%s1553 + $0xa0] sm:$0xff]
          %v1575 = vld [vmem:[%s1553 + $0xa8] sm:$0xff]
          %v1576 = vld [vmem:[%s1553 + $0xb0] sm:$0xff]
          %v1577 = vld [vmem:[%s1553 + $0xb8] sm:$0xff]
          %v1578 = vld [vmem:[%s1553 + $0xc0] sm:$0xff]
          %v1579 = vld [vmem:[%s1553 + $0xc8] sm:$0xff]
          %v1580 = vld [vmem:[%s1553 + $0xd0] sm:$0xff]
          %v1581 = vld [vmem:[%s1553 + $0xd8] sm:$0xff]
          %v1582 = vld [vmem:[%s1553 + $0xe0] sm:$0xff]
          %v1583 = vld [vmem:[%s1553 + $0xe8] sm:$0xff]
          %v1584 = vld [vmem:[%s1553 + $0xf0] sm:$0xff]
          %v1585 = vld [vmem:[%s1553 + $0xf8] sm:$0xff]
          %v1586 = vpack.c.bf16 %v1555, %v1554
          %v1587 = vpack.c.bf16 %v1557, %v1556
          %v1588 = vpack.c.bf16 %v1559, %v1558
          %v1589 = vpack.c.bf16 %v1561, %v1560
          %v1590 = vpack.c.bf16 %v1563, %v1562
          %v1591 = vpack.c.bf16 %v1565, %v1564
          %v1592 = vpack.c.bf16 %v1567, %v1566
          %v1593 = vpack.c.bf16 %v1569, %v1568
          %v1594 = vpack.c.bf16 %v1571, %v1570
          %v1595 = vpack.c.bf16 %v1573, %v1572
          %v1596 = vpack.c.bf16 %v1575, %v1574
          %v1597 = vpack.c.bf16 %v1577, %v1576
          %v1598 = vpack.c.bf16 %v1579, %v1578
          %v1599 = vpack.c.bf16 %v1581, %v1580
          %v1600 = vpack.c.bf16 %v1583, %v1582
          %v1601 = vpack.c.bf16 %v1585, %v1584
          %v1618 = vunpack.c.l.b16 %v1586
          %v1619 = vunpack.c.h.b16 %v1586
          %v1620 = vunpack.c.l.b16 %v1587
          %v1621 = vunpack.c.h.b16 %v1587
          %v1622 = vunpack.c.l.b16 %v1588
          %v1623 = vunpack.c.h.b16 %v1588
          %v1624 = vunpack.c.l.b16 %v1589
          %v1625 = vunpack.c.h.b16 %v1589
          %v1626 = vunpack.c.l.b16 %v1590
          %v1627 = vunpack.c.h.b16 %v1590
          %v1628 = vunpack.c.l.b16 %v1591
          %v1629 = vunpack.c.h.b16 %v1591
          %v1630 = vunpack.c.l.b16 %v1592
          %v1631 = vunpack.c.h.b16 %v1592
          %v1632 = vunpack.c.l.b16 %v1593
          %v1633 = vunpack.c.h.b16 %v1593
          %v1634 = vunpack.c.l.b16 %v1594
          %v1635 = vunpack.c.h.b16 %v1594
          %v1636 = vunpack.c.l.b16 %v1595
          %v1637 = vunpack.c.h.b16 %v1595
          %v1638 = vunpack.c.l.b16 %v1596
          %v1639 = vunpack.c.h.b16 %v1596
          %v1640 = vunpack.c.l.b16 %v1597
          %v1641 = vunpack.c.h.b16 %v1597
          %v1642 = vunpack.c.l.b16 %v1598
          %v1643 = vunpack.c.h.b16 %v1598
          %v1644 = vunpack.c.l.b16 %v1599
          %v1645 = vunpack.c.h.b16 %v1599
          %v1646 = vunpack.c.l.b16 %v1600
          %v1647 = vunpack.c.h.b16 %v1600
          %v1648 = vunpack.c.l.b16 %v1601
          %v1649 = vunpack.c.h.b16 %v1601
          %v1650 = vpack.c.b16 %v1618, %v1618
          %v1651 = vpack.c.b16 %v1619, %v1619
          %v1652 = vpack.c.b16 %v1620, %v1620
          %v1653 = vpack.c.b16 %v1621, %v1621
          %v1654 = vpack.c.b16 %v1622, %v1622
          %v1655 = vpack.c.b16 %v1623, %v1623
          %v1656 = vpack.c.b16 %v1624, %v1624
          %v1657 = vpack.c.b16 %v1625, %v1625
          %v1658 = vpack.c.b16 %v1626, %v1626
          %v1659 = vpack.c.b16 %v1627, %v1627
          %v1660 = vpack.c.b16 %v1628, %v1628
          %v1661 = vpack.c.b16 %v1629, %v1629
          %v1662 = vpack.c.b16 %v1630, %v1630
          %v1663 = vpack.c.b16 %v1631, %v1631
          %v1664 = vpack.c.b16 %v1632, %v1632
          %v1665 = vpack.c.b16 %v1633, %v1633
          %v1666 = vpack.c.b16 %v1634, %v1634
          %v1667 = vpack.c.b16 %v1635, %v1635
          %v1668 = vpack.c.b16 %v1636, %v1636
          %v1669 = vpack.c.b16 %v1637, %v1637
          %v1670 = vpack.c.b16 %v1638, %v1638
          %v1671 = vpack.c.b16 %v1639, %v1639
          %v1672 = vpack.c.b16 %v1640, %v1640
          %v1673 = vpack.c.b16 %v1641, %v1641
          %v1674 = vpack.c.b16 %v1642, %v1642
          %v1675 = vpack.c.b16 %v1643, %v1643
          %v1676 = vpack.c.b16 %v1644, %v1644
          %v1677 = vpack.c.b16 %v1645, %v1645
          %v1678 = vpack.c.b16 %v1646, %v1646
          %v1679 = vpack.c.b16 %v1647, %v1647
          %v1680 = vpack.c.b16 %v1648, %v1648
          %v1681 = vpack.c.b16 %v1649, %v1649
          %1714 = vst.msk [vmem:[#allocation2 + $0x18] sm:$0xf] %vm549, %v1650
          %1715 = vst.msk [vmem:[#allocation2 + $0x3c] sm:$0xf] %vm549, %v1651
          %1716 = vst.msk [vmem:[#allocation2 + $0x60] sm:$0xf] %vm549, %v1652
          %1717 = vst.msk [vmem:[#allocation2 + $0x84] sm:$0xf] %vm549, %v1653
          %1718 = vst.msk [vmem:[#allocation2 + $0xa8] sm:$0xf] %vm549, %v1654
          %1719 = vst.msk [vmem:[#allocation2 + $0xcc] sm:$0xf] %vm549, %v1655
          %1720 = vst.msk [vmem:[#allocation2 + $0xf0] sm:$0xf] %vm549, %v1656
          %1721 = vst.msk [vmem:[#allocation2 + $0x114] sm:$0xf] %vm549, %v1657
          %1722 = vst.msk [vmem:[#allocation2 + $0x138] sm:$0xf] %vm549, %v1658
          %1723 = vst.msk [vmem:[#allocation2 + $0x15c] sm:$0xf] %vm549, %v1659
          %1724 = vst.msk [vmem:[#allocation2 + $0x180] sm:$0xf] %vm549, %v1660
          %1725 = vst.msk [vmem:[#allocation2 + $0x1a4] sm:$0xf] %vm549, %v1661
          %1726 = vst.msk [vmem:[#allocation2 + $0x1c8] sm:$0xf] %vm549, %v1662
          %1727 = vst.msk [vmem:[#allocation2 + $0x1ec] sm:$0xf] %vm549, %v1663
          %1728 = vst.msk [vmem:[#allocation2 + $0x210] sm:$0xf] %vm549, %v1664
          %1729 = vst.msk [vmem:[#allocation2 + $0x234] sm:$0xf] %vm549, %v1665
          %1730 = vst.msk [vmem:[#allocation2 + $0x258] sm:$0xf] %vm549, %v1666
          %1731 = vst.msk [vmem:[#allocation2 + $0x27c] sm:$0xf] %vm549, %v1667
          %1732 = vst.msk [vmem:[#allocation2 + $0x2a0] sm:$0xf] %vm549, %v1668
          %1733 = vst.msk [vmem:[#allocation2 + $0x2c4] sm:$0xf] %vm549, %v1669
          %1734 = vst.msk [vmem:[#allocation2 + $0x2e8] sm:$0xf] %vm549, %v1670
          %1735 = vst.msk [vmem:[#allocation2 + $0x30c] sm:$0xf] %vm549, %v1671
          %1736 = vst.msk [vmem:[#allocation2 + $0x330] sm:$0xf] %vm549, %v1672
          %1737 = vst.msk [vmem:[#allocation2 + $0x354] sm:$0xf] %vm549, %v1673
          %1738 = vst.msk [vmem:[#allocation2 + $0x378] sm:$0xf] %vm549, %v1674
          %1739 = vst.msk [vmem:[#allocation2 + $0x39c] sm:$0xf] %vm549, %v1675
          %1740 = vst.msk [vmem:[#allocation2 + $0x3c0] sm:$0xf] %vm549, %v1676
          %1741 = vst.msk [vmem:[#allocation2 + $0x3e4] sm:$0xf] %vm549, %v1677
          %1742 = vst.msk [vmem:[#allocation2 + $0x408] sm:$0xf] %vm549, %v1678
          %1743 = vst.msk [vmem:[#allocation2 + $0x42c] sm:$0xf] %vm549, %v1679
          %1744 = vst.msk [vmem:[#allocation2 + $0x450] sm:$0xf] %vm549, %v1680
          %1745 = vst.msk [vmem:[#allocation2 + $0x474] sm:$0xf] %vm549, %v1681
          %s1746 = sadd.s32 %s223, 37
          %s1747 = scalar_lea.vmem %s217, %s1746
          %v1748 = vld [vmem:[%s1747] sm:$0xff]
          %v1749 = vld [vmem:[%s1747 + $0x8] sm:$0xff]
          %v1750 = vld [vmem:[%s1747 + $0x10] sm:$0xff]
          %v1751 = vld [vmem:[%s1747 + $0x18] sm:$0xff]
          %v1752 = vld [vmem:[%s1747 + $0x20] sm:$0xff]
          %v1753 = vld [vmem:[%s1747 + $0x28] sm:$0xff]
          %v1754 = vld [vmem:[%s1747 + $0x30] sm:$0xff]
          %v1755 = vld [vmem:[%s1747 + $0x38] sm:$0xff]
          %v1756 = vld [vmem:[%s1747 + $0x40] sm:$0xff]
          %v1757 = vld [vmem:[%s1747 + $0x48] sm:$0xff]
          %v1758 = vld [vmem:[%s1747 + $0x50] sm:$0xff]
          %v1759 = vld [vmem:[%s1747 + $0x58] sm:$0xff]
          %v1760 = vld [vmem:[%s1747 + $0x60] sm:$0xff]
          %v1761 = vld [vmem:[%s1747 + $0x68] sm:$0xff]
          %v1762 = vld [vmem:[%s1747 + $0x70] sm:$0xff]
          %v1763 = vld [vmem:[%s1747 + $0x78] sm:$0xff]
          %v1764 = vld [vmem:[%s1747 + $0x80] sm:$0xff]
          %v1765 = vld [vmem:[%s1747 + $0x88] sm:$0xff]
          %v1766 = vld [vmem:[%s1747 + $0x90] sm:$0xff]
          %v1767 = vld [vmem:[%s1747 + $0x98] sm:$0xff]
          %v1768 = vld [vmem:[%s1747 + $0xa0] sm:$0xff]
          %v1769 = vld [vmem:[%s1747 + $0xa8] sm:$0xff]
          %v1770 = vld [vmem:[%s1747 + $0xb0] sm:$0xff]
          %v1771 = vld [vmem:[%s1747 + $0xb8] sm:$0xff]
          %v1772 = vld [vmem:[%s1747 + $0xc0] sm:$0xff]
          %v1773 = vld [vmem:[%s1747 + $0xc8] sm:$0xff]
          %v1774 = vld [vmem:[%s1747 + $0xd0] sm:$0xff]
          %v1775 = vld [vmem:[%s1747 + $0xd8] sm:$0xff]
          %v1776 = vld [vmem:[%s1747 + $0xe0] sm:$0xff]
          %v1777 = vld [vmem:[%s1747 + $0xe8] sm:$0xff]
          %v1778 = vld [vmem:[%s1747 + $0xf0] sm:$0xff]
          %v1779 = vld [vmem:[%s1747 + $0xf8] sm:$0xff]
          %v1780 = vpack.c.bf16 %v1749, %v1748
          %v1781 = vpack.c.bf16 %v1751, %v1750
          %v1782 = vpack.c.bf16 %v1753, %v1752
          %v1783 = vpack.c.bf16 %v1755, %v1754
          %v1784 = vpack.c.bf16 %v1757, %v1756
          %v1785 = vpack.c.bf16 %v1759, %v1758
          %v1786 = vpack.c.bf16 %v1761, %v1760
          %v1787 = vpack.c.bf16 %v1763, %v1762
          %v1788 = vpack.c.bf16 %v1765, %v1764
          %v1789 = vpack.c.bf16 %v1767, %v1766
          %v1790 = vpack.c.bf16 %v1769, %v1768
          %v1791 = vpack.c.bf16 %v1771, %v1770
          %v1792 = vpack.c.bf16 %v1773, %v1772
          %v1793 = vpack.c.bf16 %v1775, %v1774
          %v1794 = vpack.c.bf16 %v1777, %v1776
          %v1795 = vpack.c.bf16 %v1779, %v1778
          %v1812 = vunpack.c.l.b16 %v1780
          %v1813 = vunpack.c.h.b16 %v1780
          %v1814 = vunpack.c.l.b16 %v1781
          %v1815 = vunpack.c.h.b16 %v1781
          %v1816 = vunpack.c.l.b16 %v1782
          %v1817 = vunpack.c.h.b16 %v1782
          %v1818 = vunpack.c.l.b16 %v1783
          %v1819 = vunpack.c.h.b16 %v1783
          %v1820 = vunpack.c.l.b16 %v1784
          %v1821 = vunpack.c.h.b16 %v1784
          %v1822 = vunpack.c.l.b16 %v1785
          %v1823 = vunpack.c.h.b16 %v1785
          %v1824 = vunpack.c.l.b16 %v1786
          %v1825 = vunpack.c.h.b16 %v1786
          %v1826 = vunpack.c.l.b16 %v1787
          %v1827 = vunpack.c.h.b16 %v1787
          %v1828 = vunpack.c.l.b16 %v1788
          %v1829 = vunpack.c.h.b16 %v1788
          %v1830 = vunpack.c.l.b16 %v1789
          %v1831 = vunpack.c.h.b16 %v1789
          %v1832 = vunpack.c.l.b16 %v1790
          %v1833 = vunpack.c.h.b16 %v1790
          %v1834 = vunpack.c.l.b16 %v1791
          %v1835 = vunpack.c.h.b16 %v1791
          %v1836 = vunpack.c.l.b16 %v1792
          %v1837 = vunpack.c.h.b16 %v1792
          %v1838 = vunpack.c.l.b16 %v1793
          %v1839 = vunpack.c.h.b16 %v1793
          %v1840 = vunpack.c.l.b16 %v1794
          %v1841 = vunpack.c.h.b16 %v1794
          %v1842 = vunpack.c.l.b16 %v1795
          %v1843 = vunpack.c.h.b16 %v1795
          %v1844 = vpack.c.b16 %v1812, %v1812
          %v1845 = vpack.c.b16 %v1813, %v1813
          %v1846 = vpack.c.b16 %v1814, %v1814
          %v1847 = vpack.c.b16 %v1815, %v1815
          %v1848 = vpack.c.b16 %v1816, %v1816
          %v1849 = vpack.c.b16 %v1817, %v1817
          %v1850 = vpack.c.b16 %v1818, %v1818
          %v1851 = vpack.c.b16 %v1819, %v1819
          %v1852 = vpack.c.b16 %v1820, %v1820
          %v1853 = vpack.c.b16 %v1821, %v1821
          %v1854 = vpack.c.b16 %v1822, %v1822
          %v1855 = vpack.c.b16 %v1823, %v1823
          %v1856 = vpack.c.b16 %v1824, %v1824
          %v1857 = vpack.c.b16 %v1825, %v1825
          %v1858 = vpack.c.b16 %v1826, %v1826
          %v1859 = vpack.c.b16 %v1827, %v1827
          %v1860 = vpack.c.b16 %v1828, %v1828
          %v1861 = vpack.c.b16 %v1829, %v1829
          %v1862 = vpack.c.b16 %v1830, %v1830
          %v1863 = vpack.c.b16 %v1831, %v1831
          %v1864 = vpack.c.b16 %v1832, %v1832
          %v1865 = vpack.c.b16 %v1833, %v1833
          %v1866 = vpack.c.b16 %v1834, %v1834
          %v1867 = vpack.c.b16 %v1835, %v1835
          %v1868 = vpack.c.b16 %v1836, %v1836
          %v1869 = vpack.c.b16 %v1837, %v1837
          %v1870 = vpack.c.b16 %v1838, %v1838
          %v1871 = vpack.c.b16 %v1839, %v1839
          %v1872 = vpack.c.b16 %v1840, %v1840
          %v1873 = vpack.c.b16 %v1841, %v1841
          %v1874 = vpack.c.b16 %v1842, %v1842
          %v1875 = vpack.c.b16 %v1843, %v1843
          %1908 = vst.msk [vmem:[#allocation2 + $0x1c] sm:$0xf] %vm549, %v1844
          %1909 = vst.msk [vmem:[#allocation2 + $0x40] sm:$0xf] %vm549, %v1845
          %1910 = vst.msk [vmem:[#allocation2 + $0x64] sm:$0xf] %vm549, %v1846
          %1911 = vst.msk [vmem:[#allocation2 + $0x88] sm:$0xf] %vm549, %v1847
          %1912 = vst.msk [vmem:[#allocation2 + $0xac] sm:$0xf] %vm549, %v1848
          %1913 = vst.msk [vmem:[#allocation2 + $0xd0] sm:$0xf] %vm549, %v1849
          %1914 = vst.msk [vmem:[#allocation2 + $0xf4] sm:$0xf] %vm549, %v1850
          %1915 = vst.msk [vmem:[#allocation2 + $0x118] sm:$0xf] %vm549, %v1851
          %1916 = vst.msk [vmem:[#allocation2 + $0x13c] sm:$0xf] %vm549, %v1852
          %1917 = vst.msk [vmem:[#allocation2 + $0x160] sm:$0xf] %vm549, %v1853
          %1918 = vst.msk [vmem:[#allocation2 + $0x184] sm:$0xf] %vm549, %v1854
          %1919 = vst.msk [vmem:[#allocation2 + $0x1a8] sm:$0xf] %vm549, %v1855
          %1920 = vst.msk [vmem:[#allocation2 + $0x1cc] sm:$0xf] %vm549, %v1856
          %1921 = vst.msk [vmem:[#allocation2 + $0x1f0] sm:$0xf] %vm549, %v1857
          %1922 = vst.msk [vmem:[#allocation2 + $0x214] sm:$0xf] %vm549, %v1858
          %1923 = vst.msk [vmem:[#allocation2 + $0x238] sm:$0xf] %vm549, %v1859
          %1924 = vst.msk [vmem:[#allocation2 + $0x25c] sm:$0xf] %vm549, %v1860
          %1925 = vst.msk [vmem:[#allocation2 + $0x280] sm:$0xf] %vm549, %v1861
          %1926 = vst.msk [vmem:[#allocation2 + $0x2a4] sm:$0xf] %vm549, %v1862
          %1927 = vst.msk [vmem:[#allocation2 + $0x2c8] sm:$0xf] %vm549, %v1863
          %1928 = vst.msk [vmem:[#allocation2 + $0x2ec] sm:$0xf] %vm549, %v1864
          %1929 = vst.msk [vmem:[#allocation2 + $0x310] sm:$0xf] %vm549, %v1865
          %1930 = vst.msk [vmem:[#allocation2 + $0x334] sm:$0xf] %vm549, %v1866
          %1931 = vst.msk [vmem:[#allocation2 + $0x358] sm:$0xf] %vm549, %v1867
          %1932 = vst.msk [vmem:[#allocation2 + $0x37c] sm:$0xf] %vm549, %v1868
          %1933 = vst.msk [vmem:[#allocation2 + $0x3a0] sm:$0xf] %vm549, %v1869
          %1934 = vst.msk [vmem:[#allocation2 + $0x3c4] sm:$0xf] %vm549, %v1870
          %1935 = vst.msk [vmem:[#allocation2 + $0x3e8] sm:$0xf] %vm549, %v1871
          %1936 = vst.msk [vmem:[#allocation2 + $0x40c] sm:$0xf] %vm549, %v1872
          %1937 = vst.msk [vmem:[#allocation2 + $0x430] sm:$0xf] %vm549, %v1873
          %1938 = vst.msk [vmem:[#allocation2 + $0x454] sm:$0xf] %vm549, %v1874
          %1939 = vst.msk [vmem:[#allocation2 + $0x478] sm:$0xf] %vm549, %v1875
          %s1940 = sadd.s32 %s223, 38
          %s1941 = scalar_lea.vmem %s217, %s1940
          %v1942 = vld [vmem:[%s1941] sm:$0xff]
          %v1943 = vld [vmem:[%s1941 + $0x8] sm:$0xff]
          %v1944 = vld [vmem:[%s1941 + $0x10] sm:$0xff]
          %v1945 = vld [vmem:[%s1941 + $0x18] sm:$0xff]
          %v1946 = vld [vmem:[%s1941 + $0x20] sm:$0xff]
          %v1947 = vld [vmem:[%s1941 + $0x28] sm:$0xff]
          %v1948 = vld [vmem:[%s1941 + $0x30] sm:$0xff]
          %v1949 = vld [vmem:[%s1941 + $0x38] sm:$0xff]
          %v1950 = vld [vmem:[%s1941 + $0x40] sm:$0xff]
          %v1951 = vld [vmem:[%s1941 + $0x48] sm:$0xff]
          %v1952 = vld [vmem:[%s1941 + $0x50] sm:$0xff]
          %v1953 = vld [vmem:[%s1941 + $0x58] sm:$0xff]
          %v1954 = vld [vmem:[%s1941 + $0x60] sm:$0xff]
          %v1955 = vld [vmem:[%s1941 + $0x68] sm:$0xff]
          %v1956 = vld [vmem:[%s1941 + $0x70] sm:$0xff]
          %v1957 = vld [vmem:[%s1941 + $0x78] sm:$0xff]
          %v1958 = vld [vmem:[%s1941 + $0x80] sm:$0xff]
          %v1959 = vld [vmem:[%s1941 + $0x88] sm:$0xff]
          %v1960 = vld [vmem:[%s1941 + $0x90] sm:$0xff]
          %v1961 = vld [vmem:[%s1941 + $0x98] sm:$0xff]
          %v1962 = vld [vmem:[%s1941 + $0xa0] sm:$0xff]
          %v1963 = vld [vmem:[%s1941 + $0xa8] sm:$0xff]
          %v1964 = vld [vmem:[%s1941 + $0xb0] sm:$0xff]
          %v1965 = vld [vmem:[%s1941 + $0xb8] sm:$0xff]
          %v1966 = vld [vmem:[%s1941 + $0xc0] sm:$0xff]
          %v1967 = vld [vmem:[%s1941 + $0xc8] sm:$0xff]
          %v1968 = vld [vmem:[%s1941 + $0xd0] sm:$0xff]
          %v1969 = vld [vmem:[%s1941 + $0xd8] sm:$0xff]
          %v1970 = vld [vmem:[%s1941 + $0xe0] sm:$0xff]
          %v1971 = vld [vmem:[%s1941 + $0xe8] sm:$0xff]
          %v1972 = vld [vmem:[%s1941 + $0xf0] sm:$0xff]
          %v1973 = vld [vmem:[%s1941 + $0xf8] sm:$0xff]
          %v1974 = vpack.c.bf16 %v1943, %v1942
          %v1975 = vpack.c.bf16 %v1945, %v1944
          %v1976 = vpack.c.bf16 %v1947, %v1946
          %v1977 = vpack.c.bf16 %v1949, %v1948
          %v1978 = vpack.c.bf16 %v1951, %v1950
          %v1979 = vpack.c.bf16 %v1953, %v1952
          %v1980 = vpack.c.bf16 %v1955, %v1954
          %v1981 = vpack.c.bf16 %v1957, %v1956
          %v1982 = vpack.c.bf16 %v1959, %v1958
          %v1983 = vpack.c.bf16 %v1961, %v1960
          %v1984 = vpack.c.bf16 %v1963, %v1962
          %v1985 = vpack.c.bf16 %v1965, %v1964
          %v1986 = vpack.c.bf16 %v1967, %v1966
          %v1987 = vpack.c.bf16 %v1969, %v1968
          %v1988 = vpack.c.bf16 %v1971, %v1970
          %v1989 = vpack.c.bf16 %v1973, %v1972
          %v2006 = vunpack.c.l.b16 %v1974
          %v2007 = vunpack.c.h.b16 %v1974
          %v2008 = vunpack.c.l.b16 %v1975
          %v2009 = vunpack.c.h.b16 %v1975
          %v2010 = vunpack.c.l.b16 %v1976
          %v2011 = vunpack.c.h.b16 %v1976
          %v2012 = vunpack.c.l.b16 %v1977
          %v2013 = vunpack.c.h.b16 %v1977
          %v2014 = vunpack.c.l.b16 %v1978
          %v2015 = vunpack.c.h.b16 %v1978
          %v2016 = vunpack.c.l.b16 %v1979
          %v2017 = vunpack.c.h.b16 %v1979
          %v2018 = vunpack.c.l.b16 %v1980
          %v2019 = vunpack.c.h.b16 %v1980
          %v2020 = vunpack.c.l.b16 %v1981
          %v2021 = vunpack.c.h.b16 %v1981
          %v2022 = vunpack.c.l.b16 %v1982
          %v2023 = vunpack.c.h.b16 %v1982
          %v2024 = vunpack.c.l.b16 %v1983
          %v2025 = vunpack.c.h.b16 %v1983
          %v2026 = vunpack.c.l.b16 %v1984
          %v2027 = vunpack.c.h.b16 %v1984
          %v2028 = vunpack.c.l.b16 %v1985
          %v2029 = vunpack.c.h.b16 %v1985
          %v2030 = vunpack.c.l.b16 %v1986
          %v2031 = vunpack.c.h.b16 %v1986
          %v2032 = vunpack.c.l.b16 %v1987
          %v2033 = vunpack.c.h.b16 %v1987
          %v2034 = vunpack.c.l.b16 %v1988
          %v2035 = vunpack.c.h.b16 %v1988
          %v2036 = vunpack.c.l.b16 %v1989
          %v2037 = vunpack.c.h.b16 %v1989
          %v2038 = vpack.c.b16 %v2006, %v2006
          %v2039 = vpack.c.b16 %v2007, %v2007
          %v2040 = vpack.c.b16 %v2008, %v2008
          %v2041 = vpack.c.b16 %v2009, %v2009
          %v2042 = vpack.c.b16 %v2010, %v2010
          %v2043 = vpack.c.b16 %v2011, %v2011
          %v2044 = vpack.c.b16 %v2012, %v2012
          %v2045 = vpack.c.b16 %v2013, %v2013
          %v2046 = vpack.c.b16 %v2014, %v2014
          %v2047 = vpack.c.b16 %v2015, %v2015
          %v2048 = vpack.c.b16 %v2016, %v2016
          %v2049 = vpack.c.b16 %v2017, %v2017
          %v2050 = vpack.c.b16 %v2018, %v2018
          %v2051 = vpack.c.b16 %v2019, %v2019
          %v2052 = vpack.c.b16 %v2020, %v2020
          %v2053 = vpack.c.b16 %v2021, %v2021
          %v2054 = vpack.c.b16 %v2022, %v2022
          %v2055 = vpack.c.b16 %v2023, %v2023
          %v2056 = vpack.c.b16 %v2024, %v2024
          %v2057 = vpack.c.b16 %v2025, %v2025
          %v2058 = vpack.c.b16 %v2026, %v2026
          %v2059 = vpack.c.b16 %v2027, %v2027
          %v2060 = vpack.c.b16 %v2028, %v2028
          %v2061 = vpack.c.b16 %v2029, %v2029
          %v2062 = vpack.c.b16 %v2030, %v2030
          %v2063 = vpack.c.b16 %v2031, %v2031
          %v2064 = vpack.c.b16 %v2032, %v2032
          %v2065 = vpack.c.b16 %v2033, %v2033
          %v2066 = vpack.c.b16 %v2034, %v2034
          %v2067 = vpack.c.b16 %v2035, %v2035
          %v2068 = vpack.c.b16 %v2036, %v2036
          %v2069 = vpack.c.b16 %v2037, %v2037
          %2102 = vst.msk [vmem:[#allocation2 + $0x20] sm:$0xf] %vm549, %v2038
          %2103 = vst.msk [vmem:[#allocation2 + $0x44] sm:$0xf] %vm549, %v2039
          %2104 = vst.msk [vmem:[#allocation2 + $0x68] sm:$0xf] %vm549, %v2040
          %2105 = vst.msk [vmem:[#allocation2 + $0x8c] sm:$0xf] %vm549, %v2041
          %2106 = vst.msk [vmem:[#allocation2 + $0xb0] sm:$0xf] %vm549, %v2042
          %2107 = vst.msk [vmem:[#allocation2 + $0xd4] sm:$0xf] %vm549, %v2043
          %2108 = vst.msk [vmem:[#allocation2 + $0xf8] sm:$0xf] %vm549, %v2044
          %2109 = vst.msk [vmem:[#allocation2 + $0x11c] sm:$0xf] %vm549, %v2045
          %2110 = vst.msk [vmem:[#allocation2 + $0x140] sm:$0xf] %vm549, %v2046
          %2111 = vst.msk [vmem:[#allocation2 + $0x164] sm:$0xf] %vm549, %v2047
          %2112 = vst.msk [vmem:[#allocation2 + $0x188] sm:$0xf] %vm549, %v2048
          %2113 = vst.msk [vmem:[#allocation2 + $0x1ac] sm:$0xf] %vm549, %v2049
          %2114 = vst.msk [vmem:[#allocation2 + $0x1d0] sm:$0xf] %vm549, %v2050
          %2115 = vst.msk [vmem:[#allocation2 + $0x1f4] sm:$0xf] %vm549, %v2051
          %2116 = vst.msk [vmem:[#allocation2 + $0x218] sm:$0xf] %vm549, %v2052
          %2117 = vst.msk [vmem:[#allocation2 + $0x23c] sm:$0xf] %vm549, %v2053
          %2118 = vst.msk [vmem:[#allocation2 + $0x260] sm:$0xf] %vm549, %v2054
          %2119 = vst.msk [vmem:[#allocation2 + $0x284] sm:$0xf] %vm549, %v2055
          %2120 = vst.msk [vmem:[#allocation2 + $0x2a8] sm:$0xf] %vm549, %v2056
          %2121 = vst.msk [vmem:[#allocation2 + $0x2cc] sm:$0xf] %vm549, %v2057
          %2122 = vst.msk [vmem:[#allocation2 + $0x2f0] sm:$0xf] %vm549, %v2058
          %2123 = vst.msk [vmem:[#allocation2 + $0x314] sm:$0xf] %vm549, %v2059
          %2124 = vst.msk [vmem:[#allocation2 + $0x338] sm:$0xf] %vm549, %v2060
          %2125 = vst.msk [vmem:[#allocation2 + $0x35c] sm:$0xf] %vm549, %v2061
          %2126 = vst.msk [vmem:[#allocation2 + $0x380] sm:$0xf] %vm549, %v2062
          %2127 = vst.msk [vmem:[#allocation2 + $0x3a4] sm:$0xf] %vm549, %v2063
          %2128 = vst.msk [vmem:[#allocation2 + $0x3c8] sm:$0xf] %vm549, %v2064
          %2129 = vst.msk [vmem:[#allocation2 + $0x3ec] sm:$0xf] %vm549, %v2065
          %2130 = vst.msk [vmem:[#allocation2 + $0x410] sm:$0xf] %vm549, %v2066
          %2131 = vst.msk [vmem:[#allocation2 + $0x434] sm:$0xf] %vm549, %v2067
          %2132 = vst.msk [vmem:[#allocation2 + $0x458] sm:$0xf] %vm549, %v2068
          %2133 = vst.msk [vmem:[#allocation2 + $0x47c] sm:$0xf] %vm549, %v2069
        $region32: #{tpu_custom_call.1} parent=27 // pred_fallthru
          _
        %v2134 = vld [vmem:[#allocation2] sm:$0xff]
        %v2135 = vld [vmem:[#allocation2 + $0x8] sm:$0xff]
        %v2136 = vld [vmem:[#allocation2 + $0x10] sm:$0xff]
        %v2137 = vld [vmem:[#allocation2 + $0x18] sm:$0xff]
        %v2138 = vld [vmem:[#allocation2 + $0x20] sm:$0xf]
        %v2139 = vld [vmem:[#allocation2 + $0x24] sm:$0xff]
        %v2140 = vld [vmem:[#allocation2 + $0x2c] sm:$0xff]
        %v2141 = vld [vmem:[#allocation2 + $0x34] sm:$0xff]
        %v2142 = vld [vmem:[#allocation2 + $0x3c] sm:$0xff]
        %v2143 = vld [vmem:[#allocation2 + $0x44] sm:$0xf]
        %v2144 = vld [vmem:[#allocation2 + $0x48] sm:$0xff]
        %v2145 = vld [vmem:[#allocation2 + $0x50] sm:$0xff]
        %v2146 = vld [vmem:[#allocation2 + $0x58] sm:$0xff]
        %v2147 = vld [vmem:[#allocation2 + $0x60] sm:$0xff]
        %v2148 = vld [vmem:[#allocation2 + $0x68] sm:$0xf]
        %v2149 = vld [vmem:[#allocation2 + $0x6c] sm:$0xff]
        %v2150 = vld [vmem:[#allocation2 + $0x74] sm:$0xff]
        %v2151 = vld [vmem:[#allocation2 + $0x7c] sm:$0xff]
        %v2152 = vld [vmem:[#allocation2 + $0x84] sm:$0xff]
        %v2153 = vld [vmem:[#allocation2 + $0x8c] sm:$0xf]
        %v2154 = vld [vmem:[#allocation2 + $0x90] sm:$0xff]
        %v2155 = vld [vmem:[#allocation2 + $0x98] sm:$0xff]
        %v2156 = vld [vmem:[#allocation2 + $0xa0] sm:$0xff]
        %v2157 = vld [vmem:[#allocation2 + $0xa8] sm:$0xff]
        %v2158 = vld [vmem:[#allocation2 + $0xb0] sm:$0xf]
        %v2159 = vld [vmem:[#allocation2 + $0xb4] sm:$0xff]
        %v2160 = vld [vmem:[#allocation2 + $0xbc] sm:$0xff]
        %v2161 = vld [vmem:[#allocation2 + $0xc4] sm:$0xff]
        %v2162 = vld [vmem:[#allocation2 + $0xcc] sm:$0xff]
        %v2163 = vld [vmem:[#allocation2 + $0xd4] sm:$0xf]
        %v2164 = vld [vmem:[#allocation2 + $0xd8] sm:$0xff]
        %v2165 = vld [vmem:[#allocation2 + $0xe0] sm:$0xff]
        %v2166 = vld [vmem:[#allocation2 + $0xe8] sm:$0xff]
        %v2167 = vld [vmem:[#allocation2 + $0xf0] sm:$0xff]
        %v2168 = vld [vmem:[#allocation2 + $0xf8] sm:$0xf]
        %v2169 = vld [vmem:[#allocation2 + $0xfc] sm:$0xff]
        %v2170 = vld [vmem:[#allocation2 + $0x104] sm:$0xff]
        %v2171 = vld [vmem:[#allocation2 + $0x10c] sm:$0xff]
        %v2172 = vld [vmem:[#allocation2 + $0x114] sm:$0xff]
        %v2173 = vld [vmem:[#allocation2 + $0x11c] sm:$0xf]
        %v2174 = vld [vmem:[#allocation2 + $0x120] sm:$0xff]
        %v2175 = vld [vmem:[#allocation2 + $0x128] sm:$0xff]
        %v2176 = vld [vmem:[#allocation2 + $0x130] sm:$0xff]
        %v2177 = vld [vmem:[#allocation2 + $0x138] sm:$0xff]
        %v2178 = vld [vmem:[#allocation2 + $0x140] sm:$0xf]
        %v2179 = vld [vmem:[#allocation2 + $0x144] sm:$0xff]
        %v2180 = vld [vmem:[#allocation2 + $0x14c] sm:$0xff]
        %v2181 = vld [vmem:[#allocation2 + $0x154] sm:$0xff]
        %v2182 = vld [vmem:[#allocation2 + $0x15c] sm:$0xff]
        %v2183 = vld [vmem:[#allocation2 + $0x164] sm:$0xf]
        %v2184 = vld [vmem:[#allocation2 + $0x168] sm:$0xff]
        %v2185 = vld [vmem:[#allocation2 + $0x170] sm:$0xff]
        %v2186 = vld [vmem:[#allocation2 + $0x178] sm:$0xff]
        %v2187 = vld [vmem:[#allocation2 + $0x180] sm:$0xff]
        %v2188 = vld [vmem:[#allocation2 + $0x188] sm:$0xf]
        %v2189 = vld [vmem:[#allocation2 + $0x18c] sm:$0xff]
        %v2190 = vld [vmem:[#allocation2 + $0x194] sm:$0xff]
        %v2191 = vld [vmem:[#allocation2 + $0x19c] sm:$0xff]
        %v2192 = vld [vmem:[#allocation2 + $0x1a4] sm:$0xff]
        %v2193 = vld [vmem:[#allocation2 + $0x1ac] sm:$0xf]
        %v2194 = vld [vmem:[#allocation2 + $0x1b0] sm:$0xff]
        %v2195 = vld [vmem:[#allocation2 + $0x1b8] sm:$0xff]
        %v2196 = vld [vmem:[#allocation2 + $0x1c0] sm:$0xff]
        %v2197 = vld [vmem:[#allocation2 + $0x1c8] sm:$0xff]
        %v2198 = vld [vmem:[#allocation2 + $0x1d0] sm:$0xf]
        %v2199 = vld [vmem:[#allocation2 + $0x1d4] sm:$0xff]
        %v2200 = vld [vmem:[#allocation2 + $0x1dc] sm:$0xff]
        %v2201 = vld [vmem:[#allocation2 + $0x1e4] sm:$0xff]
        %v2202 = vld [vmem:[#allocation2 + $0x1ec] sm:$0xff]
        %v2203 = vld [vmem:[#allocation2 + $0x1f4] sm:$0xf]
        %v2204 = vld [vmem:[#allocation2 + $0x1f8] sm:$0xff]
        %v2205 = vld [vmem:[#allocation2 + $0x200] sm:$0xff]
        %v2206 = vld [vmem:[#allocation2 + $0x208] sm:$0xff]
        %v2207 = vld [vmem:[#allocation2 + $0x210] sm:$0xff]
        %v2208 = vld [vmem:[#allocation2 + $0x218] sm:$0xf]
        %v2209 = vld [vmem:[#allocation2 + $0x21c] sm:$0xff]
        %v2210 = vld [vmem:[#allocation2 + $0x224] sm:$0xff]
        %v2211 = vld [vmem:[#allocation2 + $0x22c] sm:$0xff]
        %v2212 = vld [vmem:[#allocation2 + $0x234] sm:$0xff]
        %v2213 = vld [vmem:[#allocation2 + $0x23c] sm:$0xf]
        %v2214 = vld [vmem:[#allocation2 + $0x240] sm:$0xff]
        %v2215 = vld [vmem:[#allocation2 + $0x248] sm:$0xff]
        %v2216 = vld [vmem:[#allocation2 + $0x250] sm:$0xff]
        %v2217 = vld [vmem:[#allocation2 + $0x258] sm:$0xff]
        %v2218 = vld [vmem:[#allocation2 + $0x260] sm:$0xf]
        %v2219 = vld [vmem:[#allocation2 + $0x264] sm:$0xff]
        %v2220 = vld [vmem:[#allocation2 + $0x26c] sm:$0xff]
        %v2221 = vld [vmem:[#allocation2 + $0x274] sm:$0xff]
        %v2222 = vld [vmem:[#allocation2 + $0x27c] sm:$0xff]
        %v2223 = vld [vmem:[#allocation2 + $0x284] sm:$0xf]
        %v2224 = vld [vmem:[#allocation2 + $0x288] sm:$0xff]
        %v2225 = vld [vmem:[#allocation2 + $0x290] sm:$0xff]
        %v2226 = vld [vmem:[#allocation2 + $0x298] sm:$0xff]
        %v2227 = vld [vmem:[#allocation2 + $0x2a0] sm:$0xff]
        %v2228 = vld [vmem:[#allocation2 + $0x2a8] sm:$0xf]
        %v2229 = vld [vmem:[#allocation2 + $0x2ac] sm:$0xff]
        %v2230 = vld [vmem:[#allocation2 + $0x2b4] sm:$0xff]
        %v2231 = vld [vmem:[#allocation2 + $0x2bc] sm:$0xff]
        %v2232 = vld [vmem:[#allocation2 + $0x2c4] sm:$0xff]
        %v2233 = vld [vmem:[#allocation2 + $0x2cc] sm:$0xf]
        %v2234 = vld [vmem:[#allocation2 + $0x2d0] sm:$0xff]
        %v2235 = vld [vmem:[#allocation2 + $0x2d8] sm:$0xff]
        %v2236 = vld [vmem:[#allocation2 + $0x2e0] sm:$0xff]
        %v2237 = vld [vmem:[#allocation2 + $0x2e8] sm:$0xff]
        %v2238 = vld [vmem:[#allocation2 + $0x2f0] sm:$0xf]
        %v2239 = vld [vmem:[#allocation2 + $0x2f4] sm:$0xff]
        %v2240 = vld [vmem:[#allocation2 + $0x2fc] sm:$0xff]
        %v2241 = vld [vmem:[#allocation2 + $0x304] sm:$0xff]
        %v2242 = vld [vmem:[#allocation2 + $0x30c] sm:$0xff]
        %v2243 = vld [vmem:[#allocation2 + $0x314] sm:$0xf]
        %v2244 = vld [vmem:[#allocation2 + $0x318] sm:$0xff]
        %v2245 = vld [vmem:[#allocation2 + $0x320] sm:$0xff]
        %v2246 = vld [vmem:[#allocation2 + $0x328] sm:$0xff]
        %v2247 = vld [vmem:[#allocation2 + $0x330] sm:$0xff]
        %v2248 = vld [vmem:[#allocation2 + $0x338] sm:$0xf]
        %v2249 = vld [vmem:[#allocation2 + $0x33c] sm:$0xff]
        %v2250 = vld [vmem:[#allocation2 + $0x344] sm:$0xff]
        %v2251 = vld [vmem:[#allocation2 + $0x34c] sm:$0xff]
        %v2252 = vld [vmem:[#allocation2 + $0x354] sm:$0xff]
        %v2253 = vld [vmem:[#allocation2 + $0x35c] sm:$0xf]
        %v2254 = vld [vmem:[#allocation2 + $0x360] sm:$0xff]
        %v2255 = vld [vmem:[#allocation2 + $0x368] sm:$0xff]
        %v2256 = vld [vmem:[#allocation2 + $0x370] sm:$0xff]
        %v2257 = vld [vmem:[#allocation2 + $0x378] sm:$0xff]
        %v2258 = vld [vmem:[#allocation2 + $0x380] sm:$0xf]
        %v2259 = vld [vmem:[#allocation2 + $0x384] sm:$0xff]
        %v2260 = vld [vmem:[#allocation2 + $0x38c] sm:$0xff]
        %v2261 = vld [vmem:[#allocation2 + $0x394] sm:$0xff]
        %v2262 = vld [vmem:[#allocation2 + $0x39c] sm:$0xff]
        %v2263 = vld [vmem:[#allocation2 + $0x3a4] sm:$0xf]
        %v2264 = vld [vmem:[#allocation2 + $0x3a8] sm:$0xff]
        %v2265 = vld [vmem:[#allocation2 + $0x3b0] sm:$0xff]
        %v2266 = vld [vmem:[#allocation2 + $0x3b8] sm:$0xff]
        %v2267 = vld [vmem:[#allocation2 + $0x3c0] sm:$0xff]
        %v2268 = vld [vmem:[#allocation2 + $0x3c8] sm:$0xf]
        %v2269 = vld [vmem:[#allocation2 + $0x3cc] sm:$0xff]
        %v2270 = vld [vmem:[#allocation2 + $0x3d4] sm:$0xff]
        %v2271 = vld [vmem:[#allocation2 + $0x3dc] sm:$0xff]
        %v2272 = vld [vmem:[#allocation2 + $0x3e4] sm:$0xff]
        %v2273 = vld [vmem:[#allocation2 + $0x3ec] sm:$0xf]
        %v2274 = vld [vmem:[#allocation2 + $0x3f0] sm:$0xff]
        %v2275 = vld [vmem:[#allocation2 + $0x3f8] sm:$0xff]
        %v2276 = vld [vmem:[#allocation2 + $0x400] sm:$0xff]
        %v2277 = vld [vmem:[#allocation2 + $0x408] sm:$0xff]
        %v2278 = vld [vmem:[#allocation2 + $0x410] sm:$0xf]
        %v2279 = vld [vmem:[#allocation2 + $0x414] sm:$0xff]
        %v2280 = vld [vmem:[#allocation2 + $0x41c] sm:$0xff]
        %v2281 = vld [vmem:[#allocation2 + $0x424] sm:$0xff]
        %v2282 = vld [vmem:[#allocation2 + $0x42c] sm:$0xff]
        %v2283 = vld [vmem:[#allocation2 + $0x434] sm:$0xf]
        %v2284 = vld [vmem:[#allocation2 + $0x438] sm:$0xff]
        %v2285 = vld [vmem:[#allocation2 + $0x440] sm:$0xff]
        %v2286 = vld [vmem:[#allocation2 + $0x448] sm:$0xff]
        %v2287 = vld [vmem:[#allocation2 + $0x450] sm:$0xff]
        %v2288 = vld [vmem:[#allocation2 + $0x458] sm:$0xf]
        %v2289 = vld [vmem:[#allocation2 + $0x45c] sm:$0xff]
        %v2290 = vld [vmem:[#allocation2 + $0x464] sm:$0xff]
        %v2291 = vld [vmem:[#allocation2 + $0x46c] sm:$0xff]
        %v2292 = vld [vmem:[#allocation2 + $0x474] sm:$0xff]
        %v2293 = vld [vmem:[#allocation2 + $0x47c] sm:$0xf]
        %v2294 = vld [vmem:[%s221] sm:$0xf]
        %v2295 = vld [vmem:[%s221 + $0x4] sm:$0xf]
        %v2296 = vld [vmem:[%s221 + $0x8] sm:$0xf]
        %v2297 = vld [vmem:[%s221 + $0xc] sm:$0xf]
        %v2298 = vld [vmem:[%s221 + $0x10] sm:$0xf]
        %v2299 = vld [vmem:[%s221 + $0x14] sm:$0xf]
        %v2300 = vld [vmem:[%s221 + $0x18] sm:$0xf]
        %v2301 = vld [vmem:[%s221 + $0x1c] sm:$0xf]
        %v2302 = vld [vmem:[%s221 + $0x20] sm:$0xf]
        %v2303 = vld [vmem:[%s221 + $0x24] sm:$0xf]
        %v2304 = vld [vmem:[%s221 + $0x28] sm:$0xf]
        %v2305 = vld [vmem:[%s221 + $0x2c] sm:$0xf]
        %v2306 = vld [vmem:[%s221 + $0x30] sm:$0xf]
        %v2307 = vld [vmem:[%s221 + $0x34] sm:$0xf]
        %v2308 = vld [vmem:[%s221 + $0x38] sm:$0xf]
        %v2309 = vld [vmem:[%s221 + $0x3c] sm:$0xf]
        %v2310 = vld [vmem:[%s221 + $0x40] sm:$0xf]
        %v2311 = vld [vmem:[%s221 + $0x44] sm:$0xf]
        %v2312 = vld [vmem:[%s221 + $0x48] sm:$0xf]
        %v2313 = vld [vmem:[%s221 + $0x4c] sm:$0xf]
        %v2314 = vld [vmem:[%s221 + $0x50] sm:$0xf]
        %v2315 = vld [vmem:[%s221 + $0x54] sm:$0xf]
        %v2316 = vld [vmem:[%s221 + $0x58] sm:$0xf]
        %v2317 = vld [vmem:[%s221 + $0x5c] sm:$0xf]
        %v2318 = vld [vmem:[%s221 + $0x60] sm:$0xf]
        %v2319 = vld [vmem:[%s221 + $0x64] sm:$0xf]
        %v2320 = vld [vmem:[%s221 + $0x68] sm:$0xf]
        %v2321 = vld [vmem:[%s221 + $0x6c] sm:$0xf]
        %v2322 = vld [vmem:[%s221 + $0x70] sm:$0xf]
        %v2323 = vld [vmem:[%s221 + $0x74] sm:$0xf]
        %v2324 = vld [vmem:[%s221 + $0x78] sm:$0xf]
        %v2325 = vld [vmem:[%s221 + $0x7c] sm:$0xf]
        %v2326 = vld [vmem:[%s221 + $0x80] sm:$0xf]
        %v2327 = vld [vmem:[%s221 + $0x84] sm:$0xf]
        %v2328 = vld [vmem:[%s221 + $0x88] sm:$0xf]
        %v2329 = vld [vmem:[%s221 + $0x8c] sm:$0xf]
        %v2330 = vld [vmem:[%s221 + $0x90] sm:$0xf]
        %v2331 = vld [vmem:[%s221 + $0x94] sm:$0xf]
        %v2332 = vld [vmem:[%s221 + $0x98] sm:$0xf]
        %v2333 = vld [vmem:[%s221 + $0x9c] sm:$0xf]
        %v2334 = vld [vmem:[%s221 + $0xa0] sm:$0xf]
        %v2335 = vld [vmem:[%s221 + $0xa4] sm:$0xf]
        %v2336 = vld [vmem:[%s221 + $0xa8] sm:$0xf]
        %v2337 = vld [vmem:[%s221 + $0xac] sm:$0xf]
        %v2338 = vld [vmem:[%s221 + $0xb0] sm:$0xf]
        %v2339 = vld [vmem:[%s221 + $0xb4] sm:$0xf]
        %v2340 = vld [vmem:[%s221 + $0xb8] sm:$0xf]
        %v2341 = vld [vmem:[%s221 + $0xbc] sm:$0xf]
        %v2342 = vld [vmem:[%s221 + $0xc0] sm:$0xf]
        %v2343 = vld [vmem:[%s221 + $0xc4] sm:$0xf]
        %v2344 = vld [vmem:[%s221 + $0xc8] sm:$0xf]
        %v2345 = vld [vmem:[%s221 + $0xcc] sm:$0xf]
        %v2346 = vld [vmem:[%s221 + $0xd0] sm:$0xf]
        %v2347 = vld [vmem:[%s221 + $0xd4] sm:$0xf]
        %v2348 = vld [vmem:[%s221 + $0xd8] sm:$0xf]
        %v2349 = vld [vmem:[%s221 + $0xdc] sm:$0xf]
        %v2350 = vld [vmem:[%s221 + $0xe0] sm:$0xf]
        %v2351 = vld [vmem:[%s221 + $0xe4] sm:$0xf]
        %v2352 = vld [vmem:[%s221 + $0xe8] sm:$0xf]
        %v2353 = vld [vmem:[%s221 + $0xec] sm:$0xf]
        %v2354 = vld [vmem:[%s221 + $0xf0] sm:$0xf]
        %v2355 = vld [vmem:[%s221 + $0xf4] sm:$0xf]
        %v2356 = vld [vmem:[%s221 + $0xf8] sm:$0xf]
        %v2357 = vld [vmem:[%s221 + $0xfc] sm:$0xf]
        %v2358 = vld [vmem:[%s221 + $0x100] sm:$0xf]
        %v2359 = vld [vmem:[%s221 + $0x104] sm:$0xf]
        %v2360 = vld [vmem:[%s221 + $0x108] sm:$0xf]
        %v2361 = vld [vmem:[%s221 + $0x10c] sm:$0xf]
        %v2362 = vld [vmem:[%s221 + $0x110] sm:$0xf]
        %v2363 = vld [vmem:[%s221 + $0x114] sm:$0xf]
        %v2364 = vld [vmem:[%s221 + $0x118] sm:$0xf]
        %v2365 = vld [vmem:[%s221 + $0x11c] sm:$0xf]
        %v2366 = vld [vmem:[%s221 + $0x120] sm:$0xf]
        %v2367 = vld [vmem:[%s221 + $0x124] sm:$0xf]
        %v2368 = vld [vmem:[%s221 + $0x128] sm:$0xf]
        %v2369 = vld [vmem:[%s221 + $0x12c] sm:$0xf]
        %v2370 = vld [vmem:[%s221 + $0x130] sm:$0xf]
        %v2371 = vld [vmem:[%s221 + $0x134] sm:$0xf]
        %v2372 = vld [vmem:[%s221 + $0x138] sm:$0xf]
        %v2373 = vld [vmem:[%s221 + $0x13c] sm:$0xf]
        %v2374 = vld [vmem:[%s221 + $0x140] sm:$0xf]
        %v2375 = vld [vmem:[%s221 + $0x144] sm:$0xf]
        %v2376 = vld [vmem:[%s221 + $0x148] sm:$0xf]
        %v2377 = vld [vmem:[%s221 + $0x14c] sm:$0xf]
        %v2378 = vld [vmem:[%s221 + $0x150] sm:$0xf]
        %v2379 = vld [vmem:[%s221 + $0x154] sm:$0xf]
        %v2380 = vld [vmem:[%s221 + $0x158] sm:$0xf]
        %v2381 = vld [vmem:[%s221 + $0x15c] sm:$0xf]
        %v2382 = vld [vmem:[%s221 + $0x160] sm:$0xf]
        %v2383 = vld [vmem:[%s221 + $0x164] sm:$0xf]
        %v2384 = vld [vmem:[%s221 + $0x168] sm:$0xf]
        %v2385 = vld [vmem:[%s221 + $0x16c] sm:$0xf]
        %v2386 = vld [vmem:[%s221 + $0x170] sm:$0xf]
        %v2387 = vld [vmem:[%s221 + $0x174] sm:$0xf]
        %v2388 = vld [vmem:[%s221 + $0x178] sm:$0xf]
        %v2389 = vld [vmem:[%s221 + $0x17c] sm:$0xf]
        %v2390 = vld [vmem:[%s221 + $0x180] sm:$0xf]
        %v2391 = vld [vmem:[%s221 + $0x184] sm:$0xf]
        %v2392 = vld [vmem:[%s221 + $0x188] sm:$0xf]
        %v2393 = vld [vmem:[%s221 + $0x18c] sm:$0xf]
        %v2394 = vld [vmem:[%s221 + $0x190] sm:$0xf]
        %v2395 = vld [vmem:[%s221 + $0x194] sm:$0xf]
        %v2396 = vld [vmem:[%s221 + $0x198] sm:$0xf]
        %v2397 = vld [vmem:[%s221 + $0x19c] sm:$0xf]
        %v2398 = vld [vmem:[%s221 + $0x1a0] sm:$0xf]
        %v2399 = vld [vmem:[%s221 + $0x1a4] sm:$0xf]
        %v2400 = vld [vmem:[%s221 + $0x1a8] sm:$0xf]
        %v2401 = vld [vmem:[%s221 + $0x1ac] sm:$0xf]
        %v2402 = vld [vmem:[%s221 + $0x1b0] sm:$0xf]
        %v2403 = vld [vmem:[%s221 + $0x1b4] sm:$0xf]
        %v2404 = vld [vmem:[%s221 + $0x1b8] sm:$0xf]
        %v2405 = vld [vmem:[%s221 + $0x1bc] sm:$0xf]
        %v2406 = vld [vmem:[%s221 + $0x1c0] sm:$0xf]
        %v2407 = vld [vmem:[%s221 + $0x1c4] sm:$0xf]
        %v2408 = vld [vmem:[%s221 + $0x1c8] sm:$0xf]
        %v2409 = vld [vmem:[%s221 + $0x1cc] sm:$0xf]
        %v2410 = vld [vmem:[%s221 + $0x1d0] sm:$0xf]
        %v2411 = vld [vmem:[%s221 + $0x1d4] sm:$0xf]
        %v2412 = vld [vmem:[%s221 + $0x1d8] sm:$0xf]
        %v2413 = vld [vmem:[%s221 + $0x1dc] sm:$0xf]
        %v2414 = vld [vmem:[%s221 + $0x1e0] sm:$0xf]
        %v2415 = vld [vmem:[%s221 + $0x1e4] sm:$0xf]
        %v2416 = vld [vmem:[%s221 + $0x1e8] sm:$0xf]
        %v2417 = vld [vmem:[%s221 + $0x1ec] sm:$0xf]
        %v2418 = vld [vmem:[%s221 + $0x1f0] sm:$0xf]
        %v2419 = vld [vmem:[%s221 + $0x1f4] sm:$0xf]
        %v2420 = vld [vmem:[%s221 + $0x1f8] sm:$0xf]
        %v2421 = vld [vmem:[%s221 + $0x1fc] sm:$0xf]
        %v2422 = vld [vmem:[%s221 + $0x200] sm:$0xf]
        %v2423 = vld [vmem:[%s221 + $0x204] sm:$0xf]
        %v2424 = vld [vmem:[%s221 + $0x208] sm:$0xf]
        %v2425 = vld [vmem:[%s221 + $0x20c] sm:$0xf]
        %v2426 = vld [vmem:[%s221 + $0x210] sm:$0xf]
        %v2427 = vld [vmem:[%s221 + $0x214] sm:$0xf]
        %v2428 = vld [vmem:[%s221 + $0x218] sm:$0xf]
        %v2429 = vld [vmem:[%s221 + $0x21c] sm:$0xf]
        %v2430 = vld [vmem:[%s221 + $0x220] sm:$0xf]
        %v2431 = vld [vmem:[%s221 + $0x224] sm:$0xf]
        %v2432 = vld [vmem:[%s221 + $0x228] sm:$0xf]
        %v2433 = vld [vmem:[%s221 + $0x22c] sm:$0xf]
        %v2434 = vld [vmem:[%s221 + $0x230] sm:$0xf]
        %v2435 = vld [vmem:[%s221 + $0x234] sm:$0xf]
        %v2436 = vld [vmem:[%s221 + $0x238] sm:$0xf]
        %v2437 = vld [vmem:[%s221 + $0x23c] sm:$0xf]
        %v2598 = vunpack.c.l.b16 %v2134
        %v2599 = vunpack.c.h.b16 %v2134
        %v2600 = vunpack.c.l.b16 %v2135
        %v2601 = vunpack.c.h.b16 %v2135
        %v2602 = vunpack.c.l.b16 %v2136
        %v2603 = vunpack.c.h.b16 %v2136
        %v2604 = vunpack.c.l.b16 %v2137
        %v2605 = vunpack.c.h.b16 %v2137
        %v2606 = vunpack.c.l.b16 %v2138
        %v2607 = vunpack.c.l.b16 %v2139
        %v2608 = vunpack.c.h.b16 %v2139
        %v2609 = vunpack.c.l.b16 %v2140
        %v2610 = vunpack.c.h.b16 %v2140
        %v2611 = vunpack.c.l.b16 %v2141
        %v2612 = vunpack.c.h.b16 %v2141
        %v2613 = vunpack.c.l.b16 %v2142
        %v2614 = vunpack.c.h.b16 %v2142
        %v2615 = vunpack.c.l.b16 %v2143
        %v2616 = vunpack.c.l.b16 %v2144
        %v2617 = vunpack.c.h.b16 %v2144
        %v2618 = vunpack.c.l.b16 %v2145
        %v2619 = vunpack.c.h.b16 %v2145
        %v2620 = vunpack.c.l.b16 %v2146
        %v2621 = vunpack.c.h.b16 %v2146
        %v2622 = vunpack.c.l.b16 %v2147
        %v2623 = vunpack.c.h.b16 %v2147
        %v2624 = vunpack.c.l.b16 %v2148
        %v2625 = vunpack.c.l.b16 %v2149
        %v2626 = vunpack.c.h.b16 %v2149
        %v2627 = vunpack.c.l.b16 %v2150
        %v2628 = vunpack.c.h.b16 %v2150
        %v2629 = vunpack.c.l.b16 %v2151
        %v2630 = vunpack.c.h.b16 %v2151
        %v2631 = vunpack.c.l.b16 %v2152
        %v2632 = vunpack.c.h.b16 %v2152
        %v2633 = vunpack.c.l.b16 %v2153
        %v2634 = vunpack.c.l.b16 %v2154
        %v2635 = vunpack.c.h.b16 %v2154
        %v2636 = vunpack.c.l.b16 %v2155
        %v2637 = vunpack.c.h.b16 %v2155
        %v2638 = vunpack.c.l.b16 %v2156
        %v2639 = vunpack.c.h.b16 %v2156
        %v2640 = vunpack.c.l.b16 %v2157
        %v2641 = vunpack.c.h.b16 %v2157
        %v2642 = vunpack.c.l.b16 %v2158
        %v2643 = vunpack.c.l.b16 %v2159
        %v2644 = vunpack.c.h.b16 %v2159
        %v2645 = vunpack.c.l.b16 %v2160
        %v2646 = vunpack.c.h.b16 %v2160
        %v2647 = vunpack.c.l.b16 %v2161
        %v2648 = vunpack.c.h.b16 %v2161
        %v2649 = vunpack.c.l.b16 %v2162
        %v2650 = vunpack.c.h.b16 %v2162
        %v2651 = vunpack.c.l.b16 %v2163
        %v2652 = vunpack.c.l.b16 %v2164
        %v2653 = vunpack.c.h.b16 %v2164
        %v2654 = vunpack.c.l.b16 %v2165
        %v2655 = vunpack.c.h.b16 %v2165
        %v2656 = vunpack.c.l.b16 %v2166
        %v2657 = vunpack.c.h.b16 %v2166
        %v2658 = vunpack.c.l.b16 %v2167
        %v2659 = vunpack.c.h.b16 %v2167
        %v2660 = vunpack.c.l.b16 %v2168
        %v2661 = vunpack.c.l.b16 %v2169
        %v2662 = vunpack.c.h.b16 %v2169
        %v2663 = vunpack.c.l.b16 %v2170
        %v2664 = vunpack.c.h.b16 %v2170
        %v2665 = vunpack.c.l.b16 %v2171
        %v2666 = vunpack.c.h.b16 %v2171
        %v2667 = vunpack.c.l.b16 %v2172
        %v2668 = vunpack.c.h.b16 %v2172
        %v2669 = vunpack.c.l.b16 %v2173
        %v2670 = vunpack.c.l.b16 %v2174
        %v2671 = vunpack.c.h.b16 %v2174
        %v2672 = vunpack.c.l.b16 %v2175
        %v2673 = vunpack.c.h.b16 %v2175
        %v2674 = vunpack.c.l.b16 %v2176
        %v2675 = vunpack.c.h.b16 %v2176
        %v2676 = vunpack.c.l.b16 %v2177
        %v2677 = vunpack.c.h.b16 %v2177
        %v2678 = vunpack.c.l.b16 %v2178
        %v2679 = vunpack.c.l.b16 %v2179
        %v2680 = vunpack.c.h.b16 %v2179
        %v2681 = vunpack.c.l.b16 %v2180
        %v2682 = vunpack.c.h.b16 %v2180
        %v2683 = vunpack.c.l.b16 %v2181
        %v2684 = vunpack.c.h.b16 %v2181
        %v2685 = vunpack.c.l.b16 %v2182
        %v2686 = vunpack.c.h.b16 %v2182
        %v2687 = vunpack.c.l.b16 %v2183
        %v2688 = vunpack.c.l.b16 %v2184
        %v2689 = vunpack.c.h.b16 %v2184
        %v2690 = vunpack.c.l.b16 %v2185
        %v2691 = vunpack.c.h.b16 %v2185
        %v2692 = vunpack.c.l.b16 %v2186
        %v2693 = vunpack.c.h.b16 %v2186
        %v2694 = vunpack.c.l.b16 %v2187
        %v2695 = vunpack.c.h.b16 %v2187
        %v2696 = vunpack.c.l.b16 %v2188
        %v2697 = vunpack.c.l.b16 %v2189
        %v2698 = vunpack.c.h.b16 %v2189
        %v2699 = vunpack.c.l.b16 %v2190
        %v2700 = vunpack.c.h.b16 %v2190
        %v2701 = vunpack.c.l.b16 %v2191
        %v2702 = vunpack.c.h.b16 %v2191
        %v2703 = vunpack.c.l.b16 %v2192
        %v2704 = vunpack.c.h.b16 %v2192
        %v2705 = vunpack.c.l.b16 %v2193
        %v2706 = vunpack.c.l.b16 %v2194
        %v2707 = vunpack.c.h.b16 %v2194
        %v2708 = vunpack.c.l.b16 %v2195
        %v2709 = vunpack.c.h.b16 %v2195
        %v2710 = vunpack.c.l.b16 %v2196
        %v2711 = vunpack.c.h.b16 %v2196
        %v2712 = vunpack.c.l.b16 %v2197
        %v2713 = vunpack.c.h.b16 %v2197
        %v2714 = vunpack.c.l.b16 %v2198
        %v2715 = vunpack.c.l.b16 %v2199
        %v2716 = vunpack.c.h.b16 %v2199
        %v2717 = vunpack.c.l.b16 %v2200
        %v2718 = vunpack.c.h.b16 %v2200
        %v2719 = vunpack.c.l.b16 %v2201
        %v2720 = vunpack.c.h.b16 %v2201
        %v2721 = vunpack.c.l.b16 %v2202
        %v2722 = vunpack.c.h.b16 %v2202
        %v2723 = vunpack.c.l.b16 %v2203
        %v2724 = vunpack.c.l.b16 %v2204
        %v2725 = vunpack.c.h.b16 %v2204
        %v2726 = vunpack.c.l.b16 %v2205
        %v2727 = vunpack.c.h.b16 %v2205
        %v2728 = vunpack.c.l.b16 %v2206
        %v2729 = vunpack.c.h.b16 %v2206
        %v2730 = vunpack.c.l.b16 %v2207
        %v2731 = vunpack.c.h.b16 %v2207
        %v2732 = vunpack.c.l.b16 %v2208
        %v2733 = vunpack.c.l.b16 %v2209
        %v2734 = vunpack.c.h.b16 %v2209
        %v2735 = vunpack.c.l.b16 %v2210
        %v2736 = vunpack.c.h.b16 %v2210
        %v2737 = vunpack.c.l.b16 %v2211
        %v2738 = vunpack.c.h.b16 %v2211
        %v2739 = vunpack.c.l.b16 %v2212
        %v2740 = vunpack.c.h.b16 %v2212
        %v2741 = vunpack.c.l.b16 %v2213
        %v2742 = vunpack.c.l.b16 %v2214
        %v2743 = vunpack.c.h.b16 %v2214
        %v2744 = vunpack.c.l.b16 %v2215
        %v2745 = vunpack.c.h.b16 %v2215
        %v2746 = vunpack.c.l.b16 %v2216
        %v2747 = vunpack.c.h.b16 %v2216
        %v2748 = vunpack.c.l.b16 %v2217
        %v2749 = vunpack.c.h.b16 %v2217
        %v2750 = vunpack.c.l.b16 %v2218
        %v2751 = vunpack.c.l.b16 %v2219
        %v2752 = vunpack.c.h.b16 %v2219
        %v2753 = vunpack.c.l.b16 %v2220
        %v2754 = vunpack.c.h.b16 %v2220
        %v2755 = vunpack.c.l.b16 %v2221
        %v2756 = vunpack.c.h.b16 %v2221
        %v2757 = vunpack.c.l.b16 %v2222
        %v2758 = vunpack.c.h.b16 %v2222
        %v2759 = vunpack.c.l.b16 %v2223
        %v2760 = vunpack.c.l.b16 %v2224
        %v2761 = vunpack.c.h.b16 %v2224
        %v2762 = vunpack.c.l.b16 %v2225
        %v2763 = vunpack.c.h.b16 %v2225
        %v2764 = vunpack.c.l.b16 %v2226
        %v2765 = vunpack.c.h.b16 %v2226
        %v2766 = vunpack.c.l.b16 %v2227
        %v2767 = vunpack.c.h.b16 %v2227
        %v2768 = vunpack.c.l.b16 %v2228
        %v2769 = vunpack.c.l.b16 %v2229
        %v2770 = vunpack.c.h.b16 %v2229
        %v2771 = vunpack.c.l.b16 %v2230
        %v2772 = vunpack.c.h.b16 %v2230
        %v2773 = vunpack.c.l.b16 %v2231
        %v2774 = vunpack.c.h.b16 %v2231
        %v2775 = vunpack.c.l.b16 %v2232
        %v2776 = vunpack.c.h.b16 %v2232
        %v2777 = vunpack.c.l.b16 %v2233
        %v2778 = vunpack.c.l.b16 %v2234
        %v2779 = vunpack.c.h.b16 %v2234
        %v2780 = vunpack.c.l.b16 %v2235
        %v2781 = vunpack.c.h.b16 %v2235
        %v2782 = vunpack.c.l.b16 %v2236
        %v2783 = vunpack.c.h.b16 %v2236
        %v2784 = vunpack.c.l.b16 %v2237
        %v2785 = vunpack.c.h.b16 %v2237
        %v2786 = vunpack.c.l.b16 %v2238
        %v2787 = vunpack.c.l.b16 %v2239
        %v2788 = vunpack.c.h.b16 %v2239
        %v2789 = vunpack.c.l.b16 %v2240
        %v2790 = vunpack.c.h.b16 %v2240
        %v2791 = vunpack.c.l.b16 %v2241
        %v2792 = vunpack.c.h.b16 %v2241
        %v2793 = vunpack.c.l.b16 %v2242
        %v2794 = vunpack.c.h.b16 %v2242
        %v2795 = vunpack.c.l.b16 %v2243
        %v2796 = vunpack.c.l.b16 %v2244
        %v2797 = vunpack.c.h.b16 %v2244
        %v2798 = vunpack.c.l.b16 %v2245
        %v2799 = vunpack.c.h.b16 %v2245
        %v2800 = vunpack.c.l.b16 %v2246
        %v2801 = vunpack.c.h.b16 %v2246
        %v2802 = vunpack.c.l.b16 %v2247
        %v2803 = vunpack.c.h.b16 %v2247
        %v2804 = vunpack.c.l.b16 %v2248
        %v2805 = vunpack.c.l.b16 %v2249
        %v2806 = vunpack.c.h.b16 %v2249
        %v2807 = vunpack.c.l.b16 %v2250
        %v2808 = vunpack.c.h.b16 %v2250
        %v2809 = vunpack.c.l.b16 %v2251
        %v2810 = vunpack.c.h.b16 %v2251
        %v2811 = vunpack.c.l.b16 %v2252
        %v2812 = vunpack.c.h.b16 %v2252
        %v2813 = vunpack.c.l.b16 %v2253
        %v2814 = vunpack.c.l.b16 %v2254
        %v2815 = vunpack.c.h.b16 %v2254
        %v2816 = vunpack.c.l.b16 %v2255
        %v2817 = vunpack.c.h.b16 %v2255
        %v2818 = vunpack.c.l.b16 %v2256
        %v2819 = vunpack.c.h.b16 %v2256
        %v2820 = vunpack.c.l.b16 %v2257
        %v2821 = vunpack.c.h.b16 %v2257
        %v2822 = vunpack.c.l.b16 %v2258
        %v2823 = vunpack.c.l.b16 %v2259
        %v2824 = vunpack.c.h.b16 %v2259
        %v2825 = vunpack.c.l.b16 %v2260
        %v2826 = vunpack.c.h.b16 %v2260
        %v2827 = vunpack.c.l.b16 %v2261
        %v2828 = vunpack.c.h.b16 %v2261
        %v2829 = vunpack.c.l.b16 %v2262
        %v2830 = vunpack.c.h.b16 %v2262
        %v2831 = vunpack.c.l.b16 %v2263
        %v2832 = vunpack.c.l.b16 %v2264
        %v2833 = vunpack.c.h.b16 %v2264
        %v2834 = vunpack.c.l.b16 %v2265
        %v2835 = vunpack.c.h.b16 %v2265
        %v2836 = vunpack.c.l.b16 %v2266
        %v2837 = vunpack.c.h.b16 %v2266
        %v2838 = vunpack.c.l.b16 %v2267
        %v2839 = vunpack.c.h.b16 %v2267
        %v2840 = vunpack.c.l.b16 %v2268
        %v2841 = vunpack.c.l.b16 %v2269
        %v2842 = vunpack.c.h.b16 %v2269
        %v2843 = vunpack.c.l.b16 %v2270
        %v2844 = vunpack.c.h.b16 %v2270
        %v2845 = vunpack.c.l.b16 %v2271
        %v2846 = vunpack.c.h.b16 %v2271
        %v2847 = vunpack.c.l.b16 %v2272
        %v2848 = vunpack.c.h.b16 %v2272
        %v2849 = vunpack.c.l.b16 %v2273
        %v2850 = vunpack.c.l.b16 %v2274
        %v2851 = vunpack.c.h.b16 %v2274
        %v2852 = vunpack.c.l.b16 %v2275
        %v2853 = vunpack.c.h.b16 %v2275
        %v2854 = vunpack.c.l.b16 %v2276
        %v2855 = vunpack.c.h.b16 %v2276
        %v2856 = vunpack.c.l.b16 %v2277
        %v2857 = vunpack.c.h.b16 %v2277
        %v2858 = vunpack.c.l.b16 %v2278
        %v2859 = vunpack.c.l.b16 %v2279
        %v2860 = vunpack.c.h.b16 %v2279
        %v2861 = vunpack.c.l.b16 %v2280
        %v2862 = vunpack.c.h.b16 %v2280
        %v2863 = vunpack.c.l.b16 %v2281
        %v2864 = vunpack.c.h.b16 %v2281
        %v2865 = vunpack.c.l.b16 %v2282
        %v2866 = vunpack.c.h.b16 %v2282
        %v2867 = vunpack.c.l.b16 %v2283
        %v2868 = vunpack.c.l.b16 %v2284
        %v2869 = vunpack.c.h.b16 %v2284
        %v2870 = vunpack.c.l.b16 %v2285
        %v2871 = vunpack.c.h.b16 %v2285
        %v2872 = vunpack.c.l.b16 %v2286
        %v2873 = vunpack.c.h.b16 %v2286
        %v2874 = vunpack.c.l.b16 %v2287
        %v2875 = vunpack.c.h.b16 %v2287
        %v2876 = vunpack.c.l.b16 %v2288
        %v2877 = vunpack.c.l.b16 %v2289
        %v2878 = vunpack.c.h.b16 %v2289
        %v2879 = vunpack.c.l.b16 %v2290
        %v2880 = vunpack.c.h.b16 %v2290
        %v2881 = vunpack.c.l.b16 %v2291
        %v2882 = vunpack.c.h.b16 %v2291
        %v2883 = vunpack.c.l.b16 %v2292
        %v2884 = vunpack.c.h.b16 %v2292
        %v2885 = vunpack.c.l.b16 %v2293
        %v2886 = vpack.c.b16 %v2607, %v2598
        %v2887 = vpack.c.b16 %v2608, %v2599
        %v2888 = vpack.c.b16 %v2609, %v2600
        %v2889 = vpack.c.b16 %v2610, %v2601
        %v2890 = vpack.c.b16 %v2611, %v2602
        %v2891 = vpack.c.b16 %v2612, %v2603
        %v2892 = vpack.c.b16 %v2613, %v2604
        %v2893 = vpack.c.b16 %v2614, %v2605
        %v2894 = vpack.c.b16 %v2615, %v2606
        %v2895 = vpack.c.b16 %v2625, %v2616
        %v2896 = vpack.c.b16 %v2626, %v2617
        %v2897 = vpack.c.b16 %v2627, %v2618
        %v2898 = vpack.c.b16 %v2628, %v2619
        %v2899 = vpack.c.b16 %v2629, %v2620
        %v2900 = vpack.c.b16 %v2630, %v2621
        %v2901 = vpack.c.b16 %v2631, %v2622
        %v2902 = vpack.c.b16 %v2632, %v2623
        %v2903 = vpack.c.b16 %v2633, %v2624
        %v2904 = vpack.c.b16 %v2643, %v2634
        %v2905 = vpack.c.b16 %v2644, %v2635
        %v2906 = vpack.c.b16 %v2645, %v2636
        %v2907 = vpack.c.b16 %v2646, %v2637
        %v2908 = vpack.c.b16 %v2647, %v2638
        %v2909 = vpack.c.b16 %v2648, %v2639
        %v2910 = vpack.c.b16 %v2649, %v2640
        %v2911 = vpack.c.b16 %v2650, %v2641
        %v2912 = vpack.c.b16 %v2651, %v2642
        %v2913 = vpack.c.b16 %v2661, %v2652
        %v2914 = vpack.c.b16 %v2662, %v2653
        %v2915 = vpack.c.b16 %v2663, %v2654
        %v2916 = vpack.c.b16 %v2664, %v2655
        %v2917 = vpack.c.b16 %v2665, %v2656
        %v2918 = vpack.c.b16 %v2666, %v2657
        %v2919 = vpack.c.b16 %v2667, %v2658
        %v2920 = vpack.c.b16 %v2668, %v2659
        %v2921 = vpack.c.b16 %v2669, %v2660
        %v2922 = vpack.c.b16 %v2679, %v2670
        %v2923 = vpack.c.b16 %v2680, %v2671
        %v2924 = vpack.c.b16 %v2681, %v2672
        %v2925 = vpack.c.b16 %v2682, %v2673
        %v2926 = vpack.c.b16 %v2683, %v2674
        %v2927 = vpack.c.b16 %v2684, %v2675
        %v2928 = vpack.c.b16 %v2685, %v2676
        %v2929 = vpack.c.b16 %v2686, %v2677
        %v2930 = vpack.c.b16 %v2687, %v2678
        %v2931 = vpack.c.b16 %v2697, %v2688
        %v2932 = vpack.c.b16 %v2698, %v2689
        %v2933 = vpack.c.b16 %v2699, %v2690
        %v2934 = vpack.c.b16 %v2700, %v2691
        %v2935 = vpack.c.b16 %v2701, %v2692
        %v2936 = vpack.c.b16 %v2702, %v2693
        %v2937 = vpack.c.b16 %v2703, %v2694
        %v2938 = vpack.c.b16 %v2704, %v2695
        %v2939 = vpack.c.b16 %v2705, %v2696
        %v2940 = vpack.c.b16 %v2715, %v2706
        %v2941 = vpack.c.b16 %v2716, %v2707
        %v2942 = vpack.c.b16 %v2717, %v2708
        %v2943 = vpack.c.b16 %v2718, %v2709
        %v2944 = vpack.c.b16 %v2719, %v2710
        %v2945 = vpack.c.b16 %v2720, %v2711
        %v2946 = vpack.c.b16 %v2721, %v2712
        %v2947 = vpack.c.b16 %v2722, %v2713
        %v2948 = vpack.c.b16 %v2723, %v2714
        %v2949 = vpack.c.b16 %v2733, %v2724
        %v2950 = vpack.c.b16 %v2734, %v2725
        %v2951 = vpack.c.b16 %v2735, %v2726
        %v2952 = vpack.c.b16 %v2736, %v2727
        %v2953 = vpack.c.b16 %v2737, %v2728
        %v2954 = vpack.c.b16 %v2738, %v2729
        %v2955 = vpack.c.b16 %v2739, %v2730
        %v2956 = vpack.c.b16 %v2740, %v2731
        %v2957 = vpack.c.b16 %v2741, %v2732
        %v2958 = vpack.c.b16 %v2751, %v2742
        %v2959 = vpack.c.b16 %v2752, %v2743
        %v2960 = vpack.c.b16 %v2753, %v2744
        %v2961 = vpack.c.b16 %v2754, %v2745
        %v2962 = vpack.c.b16 %v2755, %v2746
        %v2963 = vpack.c.b16 %v2756, %v2747
        %v2964 = vpack.c.b16 %v2757, %v2748
        %v2965 = vpack.c.b16 %v2758, %v2749
        %v2966 = vpack.c.b16 %v2759, %v2750
        %v2967 = vpack.c.b16 %v2769, %v2760
        %v2968 = vpack.c.b16 %v2770, %v2761
        %v2969 = vpack.c.b16 %v2771, %v2762
        %v2970 = vpack.c.b16 %v2772, %v2763
        %v2971 = vpack.c.b16 %v2773, %v2764
        %v2972 = vpack.c.b16 %v2774, %v2765
        %v2973 = vpack.c.b16 %v2775, %v2766
        %v2974 = vpack.c.b16 %v2776, %v2767
        %v2975 = vpack.c.b16 %v2777, %v2768
        %v2976 = vpack.c.b16 %v2787, %v2778
        %v2977 = vpack.c.b16 %v2788, %v2779
        %v2978 = vpack.c.b16 %v2789, %v2780
        %v2979 = vpack.c.b16 %v2790, %v2781
        %v2980 = vpack.c.b16 %v2791, %v2782
        %v2981 = vpack.c.b16 %v2792, %v2783
        %v2982 = vpack.c.b16 %v2793, %v2784
        %v2983 = vpack.c.b16 %v2794, %v2785
        %v2984 = vpack.c.b16 %v2795, %v2786
        %v2985 = vpack.c.b16 %v2805, %v2796
        %v2986 = vpack.c.b16 %v2806, %v2797
        %v2987 = vpack.c.b16 %v2807, %v2798
        %v2988 = vpack.c.b16 %v2808, %v2799
        %v2989 = vpack.c.b16 %v2809, %v2800
        %v2990 = vpack.c.b16 %v2810, %v2801
        %v2991 = vpack.c.b16 %v2811, %v2802
        %v2992 = vpack.c.b16 %v2812, %v2803
        %v2993 = vpack.c.b16 %v2813, %v2804
        %v2994 = vpack.c.b16 %v2823, %v2814
        %v2995 = vpack.c.b16 %v2824, %v2815
        %v2996 = vpack.c.b16 %v2825, %v2816
        %v2997 = vpack.c.b16 %v2826, %v2817
        %v2998 = vpack.c.b16 %v2827, %v2818
        %v2999 = vpack.c.b16 %v2828, %v2819
        %v3000 = vpack.c.b16 %v2829, %v2820
        %v3001 = vpack.c.b16 %v2830, %v2821
        %v3002 = vpack.c.b16 %v2831, %v2822
        %v3003 = vpack.c.b16 %v2841, %v2832
        %v3004 = vpack.c.b16 %v2842, %v2833
        %v3005 = vpack.c.b16 %v2843, %v2834
        %v3006 = vpack.c.b16 %v2844, %v2835
        %v3007 = vpack.c.b16 %v2845, %v2836
        %v3008 = vpack.c.b16 %v2846, %v2837
        %v3009 = vpack.c.b16 %v2847, %v2838
        %v3010 = vpack.c.b16 %v2848, %v2839
        %v3011 = vpack.c.b16 %v2849, %v2840
        %v3012 = vpack.c.b16 %v2859, %v2850
        %v3013 = vpack.c.b16 %v2860, %v2851
        %v3014 = vpack.c.b16 %v2861, %v2852
        %v3015 = vpack.c.b16 %v2862, %v2853
        %v3016 = vpack.c.b16 %v2863, %v2854
        %v3017 = vpack.c.b16 %v2864, %v2855
        %v3018 = vpack.c.b16 %v2865, %v2856
        %v3019 = vpack.c.b16 %v2866, %v2857
        %v3020 = vpack.c.b16 %v2867, %v2858
        %v3021 = vpack.c.b16 %v2877, %v2868
        %v3022 = vpack.c.b16 %v2878, %v2869
        %v3023 = vpack.c.b16 %v2879, %v2870
        %v3024 = vpack.c.b16 %v2880, %v2871
        %v3025 = vpack.c.b16 %v2881, %v2872
        %v3026 = vpack.c.b16 %v2882, %v2873
        %v3027 = vpack.c.b16 %v2883, %v2874
        %v3028 = vpack.c.b16 %v2884, %v2875
        %v3029 = vpack.c.b16 %v2885, %v2876
        %v3318 = vunpack.c.l.b16 %v2294
        %v3319 = vunpack.c.l.b16 %v2295
        %v3320 = vunpack.c.l.b16 %v2296
        %v3321 = vunpack.c.l.b16 %v2297
        %v3322 = vunpack.c.l.b16 %v2298
        %v3323 = vunpack.c.l.b16 %v2299
        %v3324 = vunpack.c.l.b16 %v2300
        %v3325 = vunpack.c.l.b16 %v2301
        %v3326 = vunpack.c.l.b16 %v2302
        %v3327 = vunpack.c.l.b16 %v2303
        %v3328 = vunpack.c.l.b16 %v2304
        %v3329 = vunpack.c.l.b16 %v2305
        %v3330 = vunpack.c.l.b16 %v2306
        %v3331 = vunpack.c.l.b16 %v2307
        %v3332 = vunpack.c.l.b16 %v2308
        %v3333 = vunpack.c.l.b16 %v2309
        %v3334 = vunpack.c.l.b16 %v2310
        %v3335 = vunpack.c.l.b16 %v2311
        %v3336 = vunpack.c.l.b16 %v2312
        %v3337 = vunpack.c.l.b16 %v2313
        %v3338 = vunpack.c.l.b16 %v2314
        %v3339 = vunpack.c.l.b16 %v2315
        %v3340 = vunpack.c.l.b16 %v2316
        %v3341 = vunpack.c.l.b16 %v2317
        %v3342 = vunpack.c.l.b16 %v2318
        %v3343 = vunpack.c.l.b16 %v2319
        %v3344 = vunpack.c.l.b16 %v2320
        %v3345 = vunpack.c.l.b16 %v2321
        %v3346 = vunpack.c.l.b16 %v2322
        %v3347 = vunpack.c.l.b16 %v2323
        %v3348 = vunpack.c.l.b16 %v2324
        %v3349 = vunpack.c.l.b16 %v2325
        %v3350 = vunpack.c.l.b16 %v2326
        %v3351 = vunpack.c.l.b16 %v2327
        %v3352 = vunpack.c.l.b16 %v2328
        %v3353 = vunpack.c.l.b16 %v2329
        %v3354 = vunpack.c.l.b16 %v2330
        %v3355 = vunpack.c.l.b16 %v2331
        %v3356 = vunpack.c.l.b16 %v2332
        %v3357 = vunpack.c.l.b16 %v2333
        %v3358 = vunpack.c.l.b16 %v2334
        %v3359 = vunpack.c.l.b16 %v2335
        %v3360 = vunpack.c.l.b16 %v2336
        %v3361 = vunpack.c.l.b16 %v2337
        %v3362 = vunpack.c.l.b16 %v2338
        %v3363 = vunpack.c.l.b16 %v2339
        %v3364 = vunpack.c.l.b16 %v2340
        %v3365 = vunpack.c.l.b16 %v2341
        %v3366 = vunpack.c.l.b16 %v2342
        %v3367 = vunpack.c.l.b16 %v2343
        %v3368 = vunpack.c.l.b16 %v2344
        %v3369 = vunpack.c.l.b16 %v2345
        %v3370 = vunpack.c.l.b16 %v2346
        %v3371 = vunpack.c.l.b16 %v2347
        %v3372 = vunpack.c.l.b16 %v2348
        %v3373 = vunpack.c.l.b16 %v2349
        %v3374 = vunpack.c.l.b16 %v2350
        %v3375 = vunpack.c.l.b16 %v2351
        %v3376 = vunpack.c.l.b16 %v2352
        %v3377 = vunpack.c.l.b16 %v2353
        %v3378 = vunpack.c.l.b16 %v2354
        %v3379 = vunpack.c.l.b16 %v2355
        %v3380 = vunpack.c.l.b16 %v2356
        %v3381 = vunpack.c.l.b16 %v2357
        %v3382 = vunpack.c.l.b16 %v2358
        %v3383 = vunpack.c.l.b16 %v2359
        %v3384 = vunpack.c.l.b16 %v2360
        %v3385 = vunpack.c.l.b16 %v2361
        %v3386 = vunpack.c.l.b16 %v2362
        %v3387 = vunpack.c.l.b16 %v2363
        %v3388 = vunpack.c.l.b16 %v2364
        %v3389 = vunpack.c.l.b16 %v2365
        %v3390 = vunpack.c.l.b16 %v2366
        %v3391 = vunpack.c.l.b16 %v2367
        %v3392 = vunpack.c.l.b16 %v2368
        %v3393 = vunpack.c.l.b16 %v2369
        %v3394 = vunpack.c.l.b16 %v2370
        %v3395 = vunpack.c.l.b16 %v2371
        %v3396 = vunpack.c.l.b16 %v2372
        %v3397 = vunpack.c.l.b16 %v2373
        %v3398 = vunpack.c.l.b16 %v2374
        %v3399 = vunpack.c.l.b16 %v2375
        %v3400 = vunpack.c.l.b16 %v2376
        %v3401 = vunpack.c.l.b16 %v2377
        %v3402 = vunpack.c.l.b16 %v2378
        %v3403 = vunpack.c.l.b16 %v2379
        %v3404 = vunpack.c.l.b16 %v2380
        %v3405 = vunpack.c.l.b16 %v2381
        %v3406 = vunpack.c.l.b16 %v2382
        %v3407 = vunpack.c.l.b16 %v2383
        %v3408 = vunpack.c.l.b16 %v2384
        %v3409 = vunpack.c.l.b16 %v2385
        %v3410 = vunpack.c.l.b16 %v2386
        %v3411 = vunpack.c.l.b16 %v2387
        %v3412 = vunpack.c.l.b16 %v2388
        %v3413 = vunpack.c.l.b16 %v2389
        %v3414 = vunpack.c.l.b16 %v2390
        %v3415 = vunpack.c.l.b16 %v2391
        %v3416 = vunpack.c.l.b16 %v2392
        %v3417 = vunpack.c.l.b16 %v2393
        %v3418 = vunpack.c.l.b16 %v2394
        %v3419 = vunpack.c.l.b16 %v2395
        %v3420 = vunpack.c.l.b16 %v2396
        %v3421 = vunpack.c.l.b16 %v2397
        %v3422 = vunpack.c.l.b16 %v2398
        %v3423 = vunpack.c.l.b16 %v2399
        %v3424 = vunpack.c.l.b16 %v2400
        %v3425 = vunpack.c.l.b16 %v2401
        %v3426 = vunpack.c.l.b16 %v2402
        %v3427 = vunpack.c.l.b16 %v2403
        %v3428 = vunpack.c.l.b16 %v2404
        %v3429 = vunpack.c.l.b16 %v2405
        %v3430 = vunpack.c.l.b16 %v2406
        %v3431 = vunpack.c.l.b16 %v2407
        %v3432 = vunpack.c.l.b16 %v2408
        %v3433 = vunpack.c.l.b16 %v2409
        %v3434 = vunpack.c.l.b16 %v2410
        %v3435 = vunpack.c.l.b16 %v2411
        %v3436 = vunpack.c.l.b16 %v2412
        %v3437 = vunpack.c.l.b16 %v2413
        %v3438 = vunpack.c.l.b16 %v2414
        %v3439 = vunpack.c.l.b16 %v2415
        %v3440 = vunpack.c.l.b16 %v2416
        %v3441 = vunpack.c.l.b16 %v2417
        %v3442 = vunpack.c.l.b16 %v2418
        %v3443 = vunpack.c.l.b16 %v2419
        %v3444 = vunpack.c.l.b16 %v2420
        %v3445 = vunpack.c.l.b16 %v2421
        %v3446 = vunpack.c.l.b16 %v2422
        %v3447 = vunpack.c.l.b16 %v2423
        %v3448 = vunpack.c.l.b16 %v2424
        %v3449 = vunpack.c.l.b16 %v2425
        %v3450 = vunpack.c.l.b16 %v2426
        %v3451 = vunpack.c.l.b16 %v2427
        %v3452 = vunpack.c.l.b16 %v2428
        %v3453 = vunpack.c.l.b16 %v2429
        %v3454 = vunpack.c.l.b16 %v2430
        %v3455 = vunpack.c.l.b16 %v2431
        %v3456 = vunpack.c.l.b16 %v2432
        %v3457 = vunpack.c.l.b16 %v2433
        %v3458 = vunpack.c.l.b16 %v2434
        %v3459 = vunpack.c.l.b16 %v2435
        %v3460 = vunpack.c.l.b16 %v2436
        %v3461 = vunpack.c.l.b16 %v2437
        %v3462 = vpack.c.b16 %v3319, %v3318
        %v3463 = vpack.c.b16 %v3321, %v3320
        %v3464 = vpack.c.b16 %v3323, %v3322
        %v3465 = vpack.c.b16 %v3325, %v3324
        %v3466 = vpack.c.b16 %v3327, %v3326
        %v3467 = vpack.c.b16 %v3329, %v3328
        %v3468 = vpack.c.b16 %v3331, %v3330
        %v3469 = vpack.c.b16 %v3333, %v3332
        %v3470 = vpack.c.b16 %v3335, %v3334
        %v3471 = vpack.c.b16 %v3337, %v3336
        %v3472 = vpack.c.b16 %v3339, %v3338
        %v3473 = vpack.c.b16 %v3341, %v3340
        %v3474 = vpack.c.b16 %v3343, %v3342
        %v3475 = vpack.c.b16 %v3345, %v3344
        %v3476 = vpack.c.b16 %v3347, %v3346
        %v3477 = vpack.c.b16 %v3349, %v3348
        %v3478 = vpack.c.b16 %v3351, %v3350
        %v3479 = vpack.c.b16 %v3353, %v3352
        %v3480 = vpack.c.b16 %v3355, %v3354
        %v3481 = vpack.c.b16 %v3357, %v3356
        %v3482 = vpack.c.b16 %v3359, %v3358
        %v3483 = vpack.c.b16 %v3361, %v3360
        %v3484 = vpack.c.b16 %v3363, %v3362
        %v3485 = vpack.c.b16 %v3365, %v3364
        %v3486 = vpack.c.b16 %v3367, %v3366
        %v3487 = vpack.c.b16 %v3369, %v3368
        %v3488 = vpack.c.b16 %v3371, %v3370
        %v3489 = vpack.c.b16 %v3373, %v3372
        %v3490 = vpack.c.b16 %v3375, %v3374
        %v3491 = vpack.c.b16 %v3377, %v3376
        %v3492 = vpack.c.b16 %v3379, %v3378
        %v3493 = vpack.c.b16 %v3381, %v3380
        %v3494 = vpack.c.b16 %v3383, %v3382
        %v3495 = vpack.c.b16 %v3385, %v3384
        %v3496 = vpack.c.b16 %v3387, %v3386
        %v3497 = vpack.c.b16 %v3389, %v3388
        %v3498 = vpack.c.b16 %v3391, %v3390
        %v3499 = vpack.c.b16 %v3393, %v3392
        %v3500 = vpack.c.b16 %v3395, %v3394
        %v3501 = vpack.c.b16 %v3397, %v3396
        %v3502 = vpack.c.b16 %v3399, %v3398
        %v3503 = vpack.c.b16 %v3401, %v3400
        %v3504 = vpack.c.b16 %v3403, %v3402
        %v3505 = vpack.c.b16 %v3405, %v3404
        %v3506 = vpack.c.b16 %v3407, %v3406
        %v3507 = vpack.c.b16 %v3409, %v3408
        %v3508 = vpack.c.b16 %v3411, %v3410
        %v3509 = vpack.c.b16 %v3413, %v3412
        %v3510 = vpack.c.b16 %v3415, %v3414
        %v3511 = vpack.c.b16 %v3417, %v3416
        %v3512 = vpack.c.b16 %v3419, %v3418
        %v3513 = vpack.c.b16 %v3421, %v3420
        %v3514 = vpack.c.b16 %v3423, %v3422
        %v3515 = vpack.c.b16 %v3425, %v3424
        %v3516 = vpack.c.b16 %v3427, %v3426
        %v3517 = vpack.c.b16 %v3429, %v3428
        %v3518 = vpack.c.b16 %v3431, %v3430
        %v3519 = vpack.c.b16 %v3433, %v3432
        %v3520 = vpack.c.b16 %v3435, %v3434
        %v3521 = vpack.c.b16 %v3437, %v3436
        %v3522 = vpack.c.b16 %v3439, %v3438
        %v3523 = vpack.c.b16 %v3441, %v3440
        %v3524 = vpack.c.b16 %v3443, %v3442
        %v3525 = vpack.c.b16 %v3445, %v3444
        %v3526 = vpack.c.b16 %v3447, %v3446
        %v3527 = vpack.c.b16 %v3449, %v3448
        %v3528 = vpack.c.b16 %v3451, %v3450
        %v3529 = vpack.c.b16 %v3453, %v3452
        %v3530 = vpack.c.b16 %v3455, %v3454
        %v3531 = vpack.c.b16 %v3457, %v3456
        %v3532 = vpack.c.b16 %v3459, %v3458
        %v3533 = vpack.c.b16 %v3461, %v3460
        %3606 = vmatprep.subr.bf16.mxu0 0
        %3607 = vmatpush1.bf16.msra.mxu0 %v3469
        %3608 = vmatprep.subr.bf16.mxu0 0
        %3609 = vmatpush1.bf16.msra.mxu0 %v3468
        %3610 = vmatprep.subr.bf16.mxu0 0
        %3611 = vmatpush1.bf16.msra.mxu0 %v3467
        %3612 = vmatprep.subr.bf16.mxu0 0
        %3613 = vmatpush1.bf16.msra.mxu0 %v3466
        %3614 = vmatprep.subr.bf16.mxu0 0
        %3615 = vmatpush1.bf16.msra.mxu0 %v3465
        %3616 = vmatprep.subr.bf16.mxu0 0
        %3617 = vmatpush1.bf16.msra.mxu0 %v3464
        %3618 = vmatprep.subr.bf16.mxu0 0
        %3619 = vmatpush1.bf16.msra.mxu0 %v3463
        %3620 = vmatprep.subr.bf16.mxu0 0
        %3621 = vmatpush1.bf16.msra.mxu0 %v3462
        %3622 = vmatprep.subr.bf16.mxu0 0
        %3623 = vmatpush2.bf16.msra.mxu0 %v3477
        %3624 = vmatprep.subr.bf16.mxu0 0
        %3625 = vmatpush2.bf16.msra.mxu0 %v3476
        %3626 = vmatprep.subr.bf16.mxu0 0
        %3627 = vmatpush2.bf16.msra.mxu0 %v3475
        %3628 = vmatprep.subr.bf16.mxu0 0
        %3629 = vmatpush2.bf16.msra.mxu0 %v3474
        %3630 = vmatprep.subr.bf16.mxu0 0
        %3631 = vmatpush2.bf16.msra.mxu0 %v3473
        %3632 = vmatprep.subr.bf16.mxu0 0
        %3633 = vmatpush2.bf16.msra.mxu0 %v3472
        %3634 = vmatprep.subr.bf16.mxu0 0
        %3635 = vmatpush2.bf16.msra.mxu0 %v3471
        %3636 = vmatprep.subr.bf16.mxu0 0
        %3637 = vmatpush2.bf16.msra.mxu0 %v3470
        %3638 = vmatprep.mubr.bf16.mxu0 %v2887
        %3639 = vmatmul.mubr.bf16.gmra.mxu0 %v2886
        %v3640 = vpop.f32.mrf.mxu0
        %v3641 = vadd.f32 0.0, %v3640
        %v3642 = vpop.f32.mrf.mxu0
        %v3643 = vpop.f32.mrf.mxu0
        %v3644 = vadd.f32 0.0, %v3643
        %v3645 = vpop.f32.mrf.mxu0
        %3646 = vmatprep.mubr.bf16.mxu0 %v2896
        %3647 = vmatmul.mubr.bf16.gmra.mxu0 %v2895
        %v3648 = vpop.f32.mrf.mxu0
        %v3649 = vadd.f32 0.0, %v3648
        %v3650 = vpop.f32.mrf.mxu0
        %v3651 = vpop.f32.mrf.mxu0
        %v3652 = vadd.f32 0.0, %v3651
        %v3653 = vpop.f32.mrf.mxu0
        %3654 = vmatprep.mubr.bf16.mxu0 %v2905
        %3655 = vmatmul.mubr.bf16.gmra.mxu0 %v2904
        %v3656 = vpop.f32.mrf.mxu0
        %v3657 = vadd.f32 0.0, %v3656
        %v3658 = vpop.f32.mrf.mxu0
        %v3659 = vpop.f32.mrf.mxu0
        %v3660 = vadd.f32 0.0, %v3659
        %v3661 = vpop.f32.mrf.mxu0
        %3662 = vmatprep.mubr.bf16.mxu0 %v2914
        %3663 = vmatmul.mubr.bf16.gmra.mxu0 %v2913
        %v3664 = vpop.f32.mrf.mxu0
        %v3665 = vadd.f32 0.0, %v3664
        %v3666 = vpop.f32.mrf.mxu0
        %v3667 = vpop.f32.mrf.mxu0
        %v3668 = vadd.f32 0.0, %v3667
        %v3669 = vpop.f32.mrf.mxu0
        %3670 = vmatprep.mubr.bf16.mxu0 %v2923
        %3671 = vmatmul.mubr.bf16.gmra.mxu0 %v2922
        %v3672 = vpop.f32.mrf.mxu0
        %v3673 = vadd.f32 0.0, %v3672
        %v3674 = vpop.f32.mrf.mxu0
        %v3675 = vpop.f32.mrf.mxu0
        %v3676 = vadd.f32 0.0, %v3675
        %v3677 = vpop.f32.mrf.mxu0
        %3678 = vmatprep.mubr.bf16.mxu0 %v2932
        %3679 = vmatmul.mubr.bf16.gmra.mxu0 %v2931
        %v3680 = vpop.f32.mrf.mxu0
        %v3681 = vadd.f32 0.0, %v3680
        %v3682 = vpop.f32.mrf.mxu0
        %v3683 = vpop.f32.mrf.mxu0
        %v3684 = vadd.f32 0.0, %v3683
        %v3685 = vpop.f32.mrf.mxu0
        %3686 = vmatprep.mubr.bf16.mxu0 %v2941
        %3687 = vmatmul.mubr.bf16.gmra.mxu0 %v2940
        %v3688 = vpop.f32.mrf.mxu0
        %v3689 = vadd.f32 0.0, %v3688
        %v3690 = vpop.f32.mrf.mxu0
        %v3691 = vpop.f32.mrf.mxu0
        %v3692 = vadd.f32 0.0, %v3691
        %v3693 = vpop.f32.mrf.mxu0
        %3694 = vmatprep.mubr.bf16.mxu0 %v2950
        %3695 = vmatmul.mubr.bf16.gmra.mxu0 %v2949
        %v3696 = vpop.f32.mrf.mxu0
        %v3697 = vadd.f32 0.0, %v3696
        %v3698 = vpop.f32.mrf.mxu0
        %v3699 = vpop.f32.mrf.mxu0
        %v3700 = vadd.f32 0.0, %v3699
        %v3701 = vpop.f32.mrf.mxu0
        %3702 = vmatprep.mubr.bf16.mxu0 %v2959
        %3703 = vmatmul.mubr.bf16.gmra.mxu0 %v2958
        %v3704 = vpop.f32.mrf.mxu0
        %v3705 = vadd.f32 0.0, %v3704
        %v3706 = vpop.f32.mrf.mxu0
        %v3707 = vpop.f32.mrf.mxu0
        %v3708 = vadd.f32 0.0, %v3707
        %v3709 = vpop.f32.mrf.mxu0
        %3710 = vmatprep.mubr.bf16.mxu0 %v2968
        %3711 = vmatmul.mubr.bf16.gmra.mxu0 %v2967
        %v3712 = vpop.f32.mrf.mxu0
        %v3713 = vadd.f32 0.0, %v3712
        %v3714 = vpop.f32.mrf.mxu0
        %v3715 = vpop.f32.mrf.mxu0
        %v3716 = vadd.f32 0.0, %v3715
        %v3717 = vpop.f32.mrf.mxu0
        %3718 = vmatprep.mubr.bf16.mxu0 %v2977
        %3719 = vmatmul.mubr.bf16.gmra.mxu0 %v2976
        %v3720 = vpop.f32.mrf.mxu0
        %v3721 = vadd.f32 0.0, %v3720
        %v3722 = vpop.f32.mrf.mxu0
        %v3723 = vpop.f32.mrf.mxu0
        %v3724 = vadd.f32 0.0, %v3723
        %v3725 = vpop.f32.mrf.mxu0
        %3726 = vmatprep.mubr.bf16.mxu0 %v2986
        %3727 = vmatmul.mubr.bf16.gmra.mxu0 %v2985
        %v3728 = vpop.f32.mrf.mxu0
        %v3729 = vadd.f32 0.0, %v3728
        %v3730 = vpop.f32.mrf.mxu0
        %v3731 = vpop.f32.mrf.mxu0
        %v3732 = vadd.f32 0.0, %v3731
        %v3733 = vpop.f32.mrf.mxu0
        %3734 = vmatprep.mubr.bf16.mxu0 %v2995
        %3735 = vmatmul.mubr.bf16.gmra.mxu0 %v2994
        %v3736 = vpop.f32.mrf.mxu0
        %v3737 = vadd.f32 0.0, %v3736
        %v3738 = vpop.f32.mrf.mxu0
        %v3739 = vpop.f32.mrf.mxu0
        %v3740 = vadd.f32 0.0, %v3739
        %v3741 = vpop.f32.mrf.mxu0
        %3742 = vmatprep.mubr.bf16.mxu0 %v3004
        %3743 = vmatmul.mubr.bf16.gmra.mxu0 %v3003
        %v3744 = vpop.f32.mrf.mxu0
        %v3745 = vadd.f32 0.0, %v3744
        %v3746 = vpop.f32.mrf.mxu0
        %v3747 = vpop.f32.mrf.mxu0
        %v3748 = vadd.f32 0.0, %v3747
        %v3749 = vpop.f32.mrf.mxu0
        %3750 = vmatprep.mubr.bf16.mxu0 %v3013
        %3751 = vmatmul.mubr.bf16.gmra.mxu0 %v3012
        %v3752 = vpop.f32.mrf.mxu0
        %v3753 = vadd.f32 0.0, %v3752
        %v3754 = vpop.f32.mrf.mxu0
        %v3755 = vpop.f32.mrf.mxu0
        %v3756 = vadd.f32 0.0, %v3755
        %v3757 = vpop.f32.mrf.mxu0
        %3758 = vmatprep.mubr.bf16.mxu0 %v3022
        %3759 = vmatmul.mubr.bf16.gmra.mxu0 %v3021
        %v3760 = vpop.f32.mrf.mxu0
        %v3761 = vadd.f32 0.0, %v3760
        %v3762 = vpop.f32.mrf.mxu0
        %v3763 = vpop.f32.mrf.mxu0
        %v3764 = vadd.f32 0.0, %v3763
        %v3765 = vpop.f32.mrf.mxu0
        %3766 = vdwg.mxu0
        %3767 = vmatprep.subr.bf16.mxu0 0
        %3768 = vmatpush1.bf16.msra.mxu0 %v3485
        %3769 = vmatprep.subr.bf16.mxu0 0
        %3770 = vmatpush1.bf16.msra.mxu0 %v3484
        %3771 = vmatprep.subr.bf16.mxu0 0
        %3772 = vmatpush1.bf16.msra.mxu0 %v3483
        %3773 = vmatprep.subr.bf16.mxu0 0
        %3774 = vmatpush1.bf16.msra.mxu0 %v3482
        %3775 = vmatprep.subr.bf16.mxu0 0
        %3776 = vmatpush1.bf16.msra.mxu0 %v3481
        %3777 = vmatprep.subr.bf16.mxu0 0
        %3778 = vmatpush1.bf16.msra.mxu0 %v3480
        %3779 = vmatprep.subr.bf16.mxu0 0
        %3780 = vmatpush1.bf16.msra.mxu0 %v3479
        %3781 = vmatprep.subr.bf16.mxu0 0
        %3782 = vmatpush1.bf16.msra.mxu0 %v3478
        %3783 = vmatprep.subr.bf16.mxu0 0
        %3784 = vmatpush2.bf16.msra.mxu0 %v3493
        %3785 = vmatprep.subr.bf16.mxu0 0
        %3786 = vmatpush2.bf16.msra.mxu0 %v3492
        %3787 = vmatprep.subr.bf16.mxu0 0
        %3788 = vmatpush2.bf16.msra.mxu0 %v3491
        %3789 = vmatprep.subr.bf16.mxu0 0
        %3790 = vmatpush2.bf16.msra.mxu0 %v3490
        %3791 = vmatprep.subr.bf16.mxu0 0
        %3792 = vmatpush2.bf16.msra.mxu0 %v3489
        %3793 = vmatprep.subr.bf16.mxu0 0
        %3794 = vmatpush2.bf16.msra.mxu0 %v3488
        %3795 = vmatprep.subr.bf16.mxu0 0
        %3796 = vmatpush2.bf16.msra.mxu0 %v3487
        %3797 = vmatprep.subr.bf16.mxu0 0
        %3798 = vmatpush2.bf16.msra.mxu0 %v3486
        %3799 = vmatprep.mubr.bf16.mxu0 %v2889
        %3800 = vmatmul.mubr.bf16.gmra.mxu0 %v2888
        %v3801 = vpop.f32.mrf.mxu0
        %v3802 = vadd.f32 %v3641, %v3801
        %v3803 = vpop.f32.mrf.mxu0
        %v3804 = vpop.f32.mrf.mxu0
        %v3805 = vadd.f32 %v3644, %v3804
        %v3806 = vpop.f32.mrf.mxu0
        %3807 = vmatprep.mubr.bf16.mxu0 %v2898
        %3808 = vmatmul.mubr.bf16.gmra.mxu0 %v2897
        %v3809 = vpop.f32.mrf.mxu0
        %v3810 = vadd.f32 %v3649, %v3809
        %v3811 = vpop.f32.mrf.mxu0
        %v3812 = vpop.f32.mrf.mxu0
        %v3813 = vadd.f32 %v3652, %v3812
        %v3814 = vpop.f32.mrf.mxu0
        %3815 = vmatprep.mubr.bf16.mxu0 %v2907
        %3816 = vmatmul.mubr.bf16.gmra.mxu0 %v2906
        %v3817 = vpop.f32.mrf.mxu0
        %v3818 = vadd.f32 %v3657, %v3817
        %v3819 = vpop.f32.mrf.mxu0
        %v3820 = vpop.f32.mrf.mxu0
        %v3821 = vadd.f32 %v3660, %v3820
        %v3822 = vpop.f32.mrf.mxu0
        %3823 = vmatprep.mubr.bf16.mxu0 %v2916
        %3824 = vmatmul.mubr.bf16.gmra.mxu0 %v2915
        %v3825 = vpop.f32.mrf.mxu0
        %v3826 = vadd.f32 %v3665, %v3825
        %v3827 = vpop.f32.mrf.mxu0
        %v3828 = vpop.f32.mrf.mxu0
        %v3829 = vadd.f32 %v3668, %v3828
        %v3830 = vpop.f32.mrf.mxu0
        %3831 = vmatprep.mubr.bf16.mxu0 %v2925
        %3832 = vmatmul.mubr.bf16.gmra.mxu0 %v2924
        %v3833 = vpop.f32.mrf.mxu0
        %v3834 = vadd.f32 %v3673, %v3833
        %v3835 = vpop.f32.mrf.mxu0
        %v3836 = vpop.f32.mrf.mxu0
        %v3837 = vadd.f32 %v3676, %v3836
        %v3838 = vpop.f32.mrf.mxu0
        %3839 = vmatprep.mubr.bf16.mxu0 %v2934
        %3840 = vmatmul.mubr.bf16.gmra.mxu0 %v2933
        %v3841 = vpop.f32.mrf.mxu0
        %v3842 = vadd.f32 %v3681, %v3841
        %v3843 = vpop.f32.mrf.mxu0
        %v3844 = vpop.f32.mrf.mxu0
        %v3845 = vadd.f32 %v3684, %v3844
        %v3846 = vpop.f32.mrf.mxu0
        %3847 = vmatprep.mubr.bf16.mxu0 %v2943
        %3848 = vmatmul.mubr.bf16.gmra.mxu0 %v2942
        %v3849 = vpop.f32.mrf.mxu0
        %v3850 = vadd.f32 %v3689, %v3849
        %v3851 = vpop.f32.mrf.mxu0
        %v3852 = vpop.f32.mrf.mxu0
        %v3853 = vadd.f32 %v3692, %v3852
        %v3854 = vpop.f32.mrf.mxu0
        %3855 = vmatprep.mubr.bf16.mxu0 %v2952
        %3856 = vmatmul.mubr.bf16.gmra.mxu0 %v2951
        %v3857 = vpop.f32.mrf.mxu0
        %v3858 = vadd.f32 %v3697, %v3857
        %v3859 = vpop.f32.mrf.mxu0
        %v3860 = vpop.f32.mrf.mxu0
        %v3861 = vadd.f32 %v3700, %v3860
        %v3862 = vpop.f32.mrf.mxu0
        %3863 = vmatprep.mubr.bf16.mxu0 %v2961
        %3864 = vmatmul.mubr.bf16.gmra.mxu0 %v2960
        %v3865 = vpop.f32.mrf.mxu0
        %v3866 = vadd.f32 %v3705, %v3865
        %v3867 = vpop.f32.mrf.mxu0
        %v3868 = vpop.f32.mrf.mxu0
        %v3869 = vadd.f32 %v3708, %v3868
        %v3870 = vpop.f32.mrf.mxu0
        %3871 = vmatprep.mubr.bf16.mxu0 %v2970
        %3872 = vmatmul.mubr.bf16.gmra.mxu0 %v2969
        %v3873 = vpop.f32.mrf.mxu0
        %v3874 = vadd.f32 %v3713, %v3873
        %v3875 = vpop.f32.mrf.mxu0
        %v3876 = vpop.f32.mrf.mxu0
        %v3877 = vadd.f32 %v3716, %v3876
        %v3878 = vpop.f32.mrf.mxu0
        %3879 = vmatprep.mubr.bf16.mxu0 %v2979
        %3880 = vmatmul.mubr.bf16.gmra.mxu0 %v2978
        %v3881 = vpop.f32.mrf.mxu0
        %v3882 = vadd.f32 %v3721, %v3881
        %v3883 = vpop.f32.mrf.mxu0
        %v3884 = vpop.f32.mrf.mxu0
        %v3885 = vadd.f32 %v3724, %v3884
        %v3886 = vpop.f32.mrf.mxu0
        %3887 = vmatprep.mubr.bf16.mxu0 %v2988
        %3888 = vmatmul.mubr.bf16.gmra.mxu0 %v2987
        %v3889 = vpop.f32.mrf.mxu0
        %v3890 = vadd.f32 %v3729, %v3889
        %v3891 = vpop.f32.mrf.mxu0
        %v3892 = vpop.f32.mrf.mxu0
        %v3893 = vadd.f32 %v3732, %v3892
        %v3894 = vpop.f32.mrf.mxu0
        %3895 = vmatprep.mubr.bf16.mxu0 %v2997
        %3896 = vmatmul.mubr.bf16.gmra.mxu0 %v2996
        %v3897 = vpop.f32.mrf.mxu0
        %v3898 = vadd.f32 %v3737, %v3897
        %v3899 = vpop.f32.mrf.mxu0
        %v3900 = vpop.f32.mrf.mxu0
        %v3901 = vadd.f32 %v3740, %v3900
        %v3902 = vpop.f32.mrf.mxu0
        %3903 = vmatprep.mubr.bf16.mxu0 %v3006
        %3904 = vmatmul.mubr.bf16.gmra.mxu0 %v3005
        %v3905 = vpop.f32.mrf.mxu0
        %v3906 = vadd.f32 %v3745, %v3905
        %v3907 = vpop.f32.mrf.mxu0
        %v3908 = vpop.f32.mrf.mxu0
        %v3909 = vadd.f32 %v3748, %v3908
        %v3910 = vpop.f32.mrf.mxu0
        %3911 = vmatprep.mubr.bf16.mxu0 %v3015
        %3912 = vmatmul.mubr.bf16.gmra.mxu0 %v3014
        %v3913 = vpop.f32.mrf.mxu0
        %v3914 = vadd.f32 %v3753, %v3913
        %v3915 = vpop.f32.mrf.mxu0
        %v3916 = vpop.f32.mrf.mxu0
        %v3917 = vadd.f32 %v3756, %v3916
        %v3918 = vpop.f32.mrf.mxu0
        %3919 = vmatprep.mubr.bf16.mxu0 %v3024
        %3920 = vmatmul.mubr.bf16.gmra.mxu0 %v3023
        %v3921 = vpop.f32.mrf.mxu0
        %v3922 = vadd.f32 %v3761, %v3921
        %v3923 = vpop.f32.mrf.mxu0
        %v3924 = vpop.f32.mrf.mxu0
        %v3925 = vadd.f32 %v3764, %v3924
        %v3926 = vpop.f32.mrf.mxu0
        %3927 = vdwg.mxu0
        %3928 = vmatprep.subr.bf16.mxu0 0
        %3929 = vmatpush1.bf16.msra.mxu0 %v3501
        %3930 = vmatprep.subr.bf16.mxu0 0
        %3931 = vmatpush1.bf16.msra.mxu0 %v3500
        %3932 = vmatprep.subr.bf16.mxu0 0
        %3933 = vmatpush1.bf16.msra.mxu0 %v3499
        %3934 = vmatprep.subr.bf16.mxu0 0
        %3935 = vmatpush1.bf16.msra.mxu0 %v3498
        %3936 = vmatprep.subr.bf16.mxu0 0
        %3937 = vmatpush1.bf16.msra.mxu0 %v3497
        %3938 = vmatprep.subr.bf16.mxu0 0
        %3939 = vmatpush1.bf16.msra.mxu0 %v3496
        %3940 = vmatprep.subr.bf16.mxu0 0
        %3941 = vmatpush1.bf16.msra.mxu0 %v3495
        %3942 = vmatprep.subr.bf16.mxu0 0
        %3943 = vmatpush1.bf16.msra.mxu0 %v3494
        %3944 = vmatprep.subr.bf16.mxu0 0
        %3945 = vmatpush2.bf16.msra.mxu0 %v3509
        %3946 = vmatprep.subr.bf16.mxu0 0
        %3947 = vmatpush2.bf16.msra.mxu0 %v3508
        %3948 = vmatprep.subr.bf16.mxu0 0
        %3949 = vmatpush2.bf16.msra.mxu0 %v3507
        %3950 = vmatprep.subr.bf16.mxu0 0
        %3951 = vmatpush2.bf16.msra.mxu0 %v3506
        %3952 = vmatprep.subr.bf16.mxu0 0
        %3953 = vmatpush2.bf16.msra.mxu0 %v3505
        %3954 = vmatprep.subr.bf16.mxu0 0
        %3955 = vmatpush2.bf16.msra.mxu0 %v3504
        %3956 = vmatprep.subr.bf16.mxu0 0
        %3957 = vmatpush2.bf16.msra.mxu0 %v3503
        %3958 = vmatprep.subr.bf16.mxu0 0
        %3959 = vmatpush2.bf16.msra.mxu0 %v3502
        %3960 = vmatprep.mubr.bf16.mxu0 %v2891
        %3961 = vmatmul.mubr.bf16.gmra.mxu0 %v2890
        %v3962 = vpop.f32.mrf.mxu0
        %v3963 = vadd.f32 %v3802, %v3962
        %v3964 = vpop.f32.mrf.mxu0
        %v3965 = vpop.f32.mrf.mxu0
        %v3966 = vadd.f32 %v3805, %v3965
        %v3967 = vpop.f32.mrf.mxu0
        %3968 = vmatprep.mubr.bf16.mxu0 %v2900
        %3969 = vmatmul.mubr.bf16.gmra.mxu0 %v2899
        %v3970 = vpop.f32.mrf.mxu0
        %v3971 = vadd.f32 %v3810, %v3970
        %v3972 = vpop.f32.mrf.mxu0
        %v3973 = vpop.f32.mrf.mxu0
        %v3974 = vadd.f32 %v3813, %v3973
        %v3975 = vpop.f32.mrf.mxu0
        %3976 = vmatprep.mubr.bf16.mxu0 %v2909
        %3977 = vmatmul.mubr.bf16.gmra.mxu0 %v2908
        %v3978 = vpop.f32.mrf.mxu0
        %v3979 = vadd.f32 %v3818, %v3978
        %v3980 = vpop.f32.mrf.mxu0
        %v3981 = vpop.f32.mrf.mxu0
        %v3982 = vadd.f32 %v3821, %v3981
        %v3983 = vpop.f32.mrf.mxu0
        %3984 = vmatprep.mubr.bf16.mxu0 %v2918
        %3985 = vmatmul.mubr.bf16.gmra.mxu0 %v2917
        %v3986 = vpop.f32.mrf.mxu0
        %v3987 = vadd.f32 %v3826, %v3986
        %v3988 = vpop.f32.mrf.mxu0
        %v3989 = vpop.f32.mrf.mxu0
        %v3990 = vadd.f32 %v3829, %v3989
        %v3991 = vpop.f32.mrf.mxu0
        %3992 = vmatprep.mubr.bf16.mxu0 %v2927
        %3993 = vmatmul.mubr.bf16.gmra.mxu0 %v2926
        %v3994 = vpop.f32.mrf.mxu0
        %v3995 = vadd.f32 %v3834, %v3994
        %v3996 = vpop.f32.mrf.mxu0
        %v3997 = vpop.f32.mrf.mxu0
        %v3998 = vadd.f32 %v3837, %v3997
        %v3999 = vpop.f32.mrf.mxu0
        %4000 = vmatprep.mubr.bf16.mxu0 %v2936
        %4001 = vmatmul.mubr.bf16.gmra.mxu0 %v2935
        %v4002 = vpop.f32.mrf.mxu0
        %v4003 = vadd.f32 %v3842, %v4002
        %v4004 = vpop.f32.mrf.mxu0
        %v4005 = vpop.f32.mrf.mxu0
        %v4006 = vadd.f32 %v3845, %v4005
        %v4007 = vpop.f32.mrf.mxu0
        %4008 = vmatprep.mubr.bf16.mxu0 %v2945
        %4009 = vmatmul.mubr.bf16.gmra.mxu0 %v2944
        %v4010 = vpop.f32.mrf.mxu0
        %v4011 = vadd.f32 %v3850, %v4010
        %v4012 = vpop.f32.mrf.mxu0
        %v4013 = vpop.f32.mrf.mxu0
        %v4014 = vadd.f32 %v3853, %v4013
        %v4015 = vpop.f32.mrf.mxu0
        %4016 = vmatprep.mubr.bf16.mxu0 %v2954
        %4017 = vmatmul.mubr.bf16.gmra.mxu0 %v2953
        %v4018 = vpop.f32.mrf.mxu0
        %v4019 = vadd.f32 %v3858, %v4018
        %v4020 = vpop.f32.mrf.mxu0
        %v4021 = vpop.f32.mrf.mxu0
        %v4022 = vadd.f32 %v3861, %v4021
        %v4023 = vpop.f32.mrf.mxu0
        %4024 = vmatprep.mubr.bf16.mxu0 %v2963
        %4025 = vmatmul.mubr.bf16.gmra.mxu0 %v2962
        %v4026 = vpop.f32.mrf.mxu0
        %v4027 = vadd.f32 %v3866, %v4026
        %v4028 = vpop.f32.mrf.mxu0
        %v4029 = vpop.f32.mrf.mxu0
        %v4030 = vadd.f32 %v3869, %v4029
        %v4031 = vpop.f32.mrf.mxu0
        %4032 = vmatprep.mubr.bf16.mxu0 %v2972
        %4033 = vmatmul.mubr.bf16.gmra.mxu0 %v2971
        %v4034 = vpop.f32.mrf.mxu0
        %v4035 = vadd.f32 %v3874, %v4034
        %v4036 = vpop.f32.mrf.mxu0
        %v4037 = vpop.f32.mrf.mxu0
        %v4038 = vadd.f32 %v3877, %v4037
        %v4039 = vpop.f32.mrf.mxu0
        %4040 = vmatprep.mubr.bf16.mxu0 %v2981
        %4041 = vmatmul.mubr.bf16.gmra.mxu0 %v2980
        %v4042 = vpop.f32.mrf.mxu0
        %v4043 = vadd.f32 %v3882, %v4042
        %v4044 = vpop.f32.mrf.mxu0
        %v4045 = vpop.f32.mrf.mxu0
        %v4046 = vadd.f32 %v3885, %v4045
        %v4047 = vpop.f32.mrf.mxu0
        %4048 = vmatprep.mubr.bf16.mxu0 %v2990
        %4049 = vmatmul.mubr.bf16.gmra.mxu0 %v2989
        %v4050 = vpop.f32.mrf.mxu0
        %v4051 = vadd.f32 %v3890, %v4050
        %v4052 = vpop.f32.mrf.mxu0
        %v4053 = vpop.f32.mrf.mxu0
        %v4054 = vadd.f32 %v3893, %v4053
        %v4055 = vpop.f32.mrf.mxu0
        %4056 = vmatprep.mubr.bf16.mxu0 %v2999
        %4057 = vmatmul.mubr.bf16.gmra.mxu0 %v2998
        %v4058 = vpop.f32.mrf.mxu0
        %v4059 = vadd.f32 %v3898, %v4058
        %v4060 = vpop.f32.mrf.mxu0
        %v4061 = vpop.f32.mrf.mxu0
        %v4062 = vadd.f32 %v3901, %v4061
        %v4063 = vpop.f32.mrf.mxu0
        %4064 = vmatprep.mubr.bf16.mxu0 %v3008
        %4065 = vmatmul.mubr.bf16.gmra.mxu0 %v3007
        %v4066 = vpop.f32.mrf.mxu0
        %v4067 = vadd.f32 %v3906, %v4066
        %v4068 = vpop.f32.mrf.mxu0
        %v4069 = vpop.f32.mrf.mxu0
        %v4070 = vadd.f32 %v3909, %v4069
        %v4071 = vpop.f32.mrf.mxu0
        %4072 = vmatprep.mubr.bf16.mxu0 %v3017
        %4073 = vmatmul.mubr.bf16.gmra.mxu0 %v3016
        %v4074 = vpop.f32.mrf.mxu0
        %v4075 = vadd.f32 %v3914, %v4074
        %v4076 = vpop.f32.mrf.mxu0
        %v4077 = vpop.f32.mrf.mxu0
        %v4078 = vadd.f32 %v3917, %v4077
        %v4079 = vpop.f32.mrf.mxu0
        %4080 = vmatprep.mubr.bf16.mxu0 %v3026
        %4081 = vmatmul.mubr.bf16.gmra.mxu0 %v3025
        %v4082 = vpop.f32.mrf.mxu0
        %v4083 = vadd.f32 %v3922, %v4082
        %v4084 = vpop.f32.mrf.mxu0
        %v4085 = vpop.f32.mrf.mxu0
        %v4086 = vadd.f32 %v3925, %v4085
        %v4087 = vpop.f32.mrf.mxu0
        %4088 = vdwg.mxu0
        %4089 = vmatprep.subr.bf16.mxu0 0
        %4090 = vmatpush1.bf16.msra.mxu0 %v3517
        %4091 = vmatprep.subr.bf16.mxu0 0
        %4092 = vmatpush1.bf16.msra.mxu0 %v3516
        %4093 = vmatprep.subr.bf16.mxu0 0
        %4094 = vmatpush1.bf16.msra.mxu0 %v3515
        %4095 = vmatprep.subr.bf16.mxu0 0
        %4096 = vmatpush1.bf16.msra.mxu0 %v3514
        %4097 = vmatprep.subr.bf16.mxu0 0
        %4098 = vmatpush1.bf16.msra.mxu0 %v3513
        %4099 = vmatprep.subr.bf16.mxu0 0
        %4100 = vmatpush1.bf16.msra.mxu0 %v3512
        %4101 = vmatprep.subr.bf16.mxu0 0
        %4102 = vmatpush1.bf16.msra.mxu0 %v3511
        %4103 = vmatprep.subr.bf16.mxu0 0
        %4104 = vmatpush1.bf16.msra.mxu0 %v3510
        %4105 = vmatprep.subr.bf16.mxu0 0
        %4106 = vmatpush2.bf16.msra.mxu0 %v3525
        %4107 = vmatprep.subr.bf16.mxu0 0
        %4108 = vmatpush2.bf16.msra.mxu0 %v3524
        %4109 = vmatprep.subr.bf16.mxu0 0
        %4110 = vmatpush2.bf16.msra.mxu0 %v3523
        %4111 = vmatprep.subr.bf16.mxu0 0
        %4112 = vmatpush2.bf16.msra.mxu0 %v3522
        %4113 = vmatprep.subr.bf16.mxu0 0
        %4114 = vmatpush2.bf16.msra.mxu0 %v3521
        %4115 = vmatprep.subr.bf16.mxu0 0
        %4116 = vmatpush2.bf16.msra.mxu0 %v3520
        %4117 = vmatprep.subr.bf16.mxu0 0
        %4118 = vmatpush2.bf16.msra.mxu0 %v3519
        %4119 = vmatprep.subr.bf16.mxu0 0
        %4120 = vmatpush2.bf16.msra.mxu0 %v3518
        %4121 = vmatprep.mubr.bf16.mxu0 %v2893
        %4122 = vmatmul.mubr.bf16.gmra.mxu0 %v2892
        %v4123 = vpop.f32.mrf.mxu0
        %v4124 = vadd.f32 %v3963, %v4123
        %v4125 = vpop.f32.mrf.mxu0
        %v4126 = vpop.f32.mrf.mxu0
        %v4127 = vadd.f32 %v3966, %v4126
        %v4128 = vpop.f32.mrf.mxu0
        %4129 = vmatprep.mubr.bf16.mxu0 %v2902
        %4130 = vmatmul.mubr.bf16.gmra.mxu0 %v2901
        %v4131 = vpop.f32.mrf.mxu0
        %v4132 = vadd.f32 %v3971, %v4131
        %v4133 = vpop.f32.mrf.mxu0
        %v4134 = vpop.f32.mrf.mxu0
        %v4135 = vadd.f32 %v3974, %v4134
        %v4136 = vpop.f32.mrf.mxu0
        %4137 = vmatprep.mubr.bf16.mxu0 %v2911
        %4138 = vmatmul.mubr.bf16.gmra.mxu0 %v2910
        %v4139 = vpop.f32.mrf.mxu0
        %v4140 = vadd.f32 %v3979, %v4139
        %v4141 = vpop.f32.mrf.mxu0
        %v4142 = vpop.f32.mrf.mxu0
        %v4143 = vadd.f32 %v3982, %v4142
        %v4144 = vpop.f32.mrf.mxu0
        %4145 = vmatprep.mubr.bf16.mxu0 %v2920
        %4146 = vmatmul.mubr.bf16.gmra.mxu0 %v2919
        %v4147 = vpop.f32.mrf.mxu0
        %v4148 = vadd.f32 %v3987, %v4147
        %v4149 = vpop.f32.mrf.mxu0
        %v4150 = vpop.f32.mrf.mxu0
        %v4151 = vadd.f32 %v3990, %v4150
        %v4152 = vpop.f32.mrf.mxu0
        %4153 = vmatprep.mubr.bf16.mxu0 %v2929
        %4154 = vmatmul.mubr.bf16.gmra.mxu0 %v2928
        %v4155 = vpop.f32.mrf.mxu0
        %v4156 = vadd.f32 %v3995, %v4155
        %v4157 = vpop.f32.mrf.mxu0
        %v4158 = vpop.f32.mrf.mxu0
        %v4159 = vadd.f32 %v3998, %v4158
        %v4160 = vpop.f32.mrf.mxu0
        %4161 = vmatprep.mubr.bf16.mxu0 %v2938
        %4162 = vmatmul.mubr.bf16.gmra.mxu0 %v2937
        %v4163 = vpop.f32.mrf.mxu0
        %v4164 = vadd.f32 %v4003, %v4163
        %v4165 = vpop.f32.mrf.mxu0
        %v4166 = vpop.f32.mrf.mxu0
        %v4167 = vadd.f32 %v4006, %v4166
        %v4168 = vpop.f32.mrf.mxu0
        %4169 = vmatprep.mubr.bf16.mxu0 %v2947
        %4170 = vmatmul.mubr.bf16.gmra.mxu0 %v2946
        %v4171 = vpop.f32.mrf.mxu0
        %v4172 = vadd.f32 %v4011, %v4171
        %v4173 = vpop.f32.mrf.mxu0
        %v4174 = vpop.f32.mrf.mxu0
        %v4175 = vadd.f32 %v4014, %v4174
        %v4176 = vpop.f32.mrf.mxu0
        %4177 = vmatprep.mubr.bf16.mxu0 %v2956
        %4178 = vmatmul.mubr.bf16.gmra.mxu0 %v2955
        %v4179 = vpop.f32.mrf.mxu0
        %v4180 = vadd.f32 %v4019, %v4179
        %v4181 = vpop.f32.mrf.mxu0
        %v4182 = vpop.f32.mrf.mxu0
        %v4183 = vadd.f32 %v4022, %v4182
        %v4184 = vpop.f32.mrf.mxu0
        %4185 = vmatprep.mubr.bf16.mxu0 %v2965
        %4186 = vmatmul.mubr.bf16.gmra.mxu0 %v2964
        %v4187 = vpop.f32.mrf.mxu0
        %v4188 = vadd.f32 %v4027, %v4187
        %v4189 = vpop.f32.mrf.mxu0
        %v4190 = vpop.f32.mrf.mxu0
        %v4191 = vadd.f32 %v4030, %v4190
        %v4192 = vpop.f32.mrf.mxu0
        %4193 = vmatprep.mubr.bf16.mxu0 %v2974
        %4194 = vmatmul.mubr.bf16.gmra.mxu0 %v2973
        %v4195 = vpop.f32.mrf.mxu0
        %v4196 = vadd.f32 %v4035, %v4195
        %v4197 = vpop.f32.mrf.mxu0
        %v4198 = vpop.f32.mrf.mxu0
        %v4199 = vadd.f32 %v4038, %v4198
        %v4200 = vpop.f32.mrf.mxu0
        %4201 = vmatprep.mubr.bf16.mxu0 %v2983
        %4202 = vmatmul.mubr.bf16.gmra.mxu0 %v2982
        %v4203 = vpop.f32.mrf.mxu0
        %v4204 = vadd.f32 %v4043, %v4203
        %v4205 = vpop.f32.mrf.mxu0
        %v4206 = vpop.f32.mrf.mxu0
        %v4207 = vadd.f32 %v4046, %v4206
        %v4208 = vpop.f32.mrf.mxu0
        %4209 = vmatprep.mubr.bf16.mxu0 %v2992
        %4210 = vmatmul.mubr.bf16.gmra.mxu0 %v2991
        %v4211 = vpop.f32.mrf.mxu0
        %v4212 = vadd.f32 %v4051, %v4211
        %v4213 = vpop.f32.mrf.mxu0
        %v4214 = vpop.f32.mrf.mxu0
        %v4215 = vadd.f32 %v4054, %v4214
        %v4216 = vpop.f32.mrf.mxu0
        %4217 = vmatprep.mubr.bf16.mxu0 %v3001
        %4218 = vmatmul.mubr.bf16.gmra.mxu0 %v3000
        %v4219 = vpop.f32.mrf.mxu0
        %v4220 = vadd.f32 %v4059, %v4219
        %v4221 = vpop.f32.mrf.mxu0
        %v4222 = vpop.f32.mrf.mxu0
        %v4223 = vadd.f32 %v4062, %v4222
        %v4224 = vpop.f32.mrf.mxu0
        %4225 = vmatprep.mubr.bf16.mxu0 %v3010
        %4226 = vmatmul.mubr.bf16.gmra.mxu0 %v3009
        %v4227 = vpop.f32.mrf.mxu0
        %v4228 = vadd.f32 %v4067, %v4227
        %v4229 = vpop.f32.mrf.mxu0
        %v4230 = vpop.f32.mrf.mxu0
        %v4231 = vadd.f32 %v4070, %v4230
        %v4232 = vpop.f32.mrf.mxu0
        %4233 = vmatprep.mubr.bf16.mxu0 %v3019
        %4234 = vmatmul.mubr.bf16.gmra.mxu0 %v3018
        %v4235 = vpop.f32.mrf.mxu0
        %v4236 = vadd.f32 %v4075, %v4235
        %v4237 = vpop.f32.mrf.mxu0
        %v4238 = vpop.f32.mrf.mxu0
        %v4239 = vadd.f32 %v4078, %v4238
        %v4240 = vpop.f32.mrf.mxu0
        %4241 = vmatprep.mubr.bf16.mxu0 %v3028
        %4242 = vmatmul.mubr.bf16.gmra.mxu0 %v3027
        %v4243 = vpop.f32.mrf.mxu0
        %v4244 = vadd.f32 %v4083, %v4243
        %v4245 = vpop.f32.mrf.mxu0
        %v4246 = vpop.f32.mrf.mxu0
        %v4247 = vadd.f32 %v4086, %v4246
        %v4248 = vpop.f32.mrf.mxu0
        %4249 = vdwg.mxu0
        %4250 = vmatprep.subr.bf16.mxu0 0
        %4251 = vmatpush1.bf16.msra.mxu0 %v3533
        %4252 = vmatprep.subr.bf16.mxu0 0
        %4253 = vmatpush1.bf16.msra.mxu0 %v3532
        %4254 = vmatprep.subr.bf16.mxu0 0
        %4255 = vmatpush1.bf16.msra.mxu0 %v3531
        %4256 = vmatprep.subr.bf16.mxu0 0
        %4257 = vmatpush1.bf16.msra.mxu0 %v3530
        %4258 = vmatprep.subr.bf16.mxu0 0
        %4259 = vmatpush1.bf16.msra.mxu0 %v3529
        %4260 = vmatprep.subr.bf16.mxu0 0
        %4261 = vmatpush1.bf16.msra.mxu0 %v3528
        %4262 = vmatprep.subr.bf16.mxu0 0
        %4263 = vmatpush1.bf16.msra.mxu0 %v3527
        %4264 = vmatprep.subr.bf16.mxu0 0
        %4265 = vmatpush1.bf16.msra.mxu0 %v3526
        %4266 = vmatprep.subr.bf16.mxu0 0
        %4267 = vmatpush2.bf16.msra.mxu0 0
        %4268 = vmatprep.subr.bf16.mxu0 0
        %4269 = vmatpush2.bf16.msra.mxu0 0
        %4270 = vmatprep.subr.bf16.mxu0 0
        %4271 = vmatpush2.bf16.msra.mxu0 0
        %4272 = vmatprep.subr.bf16.mxu0 0
        %4273 = vmatpush2.bf16.msra.mxu0 0
        %4274 = vmatprep.subr.bf16.mxu0 0
        %4275 = vmatpush2.bf16.msra.mxu0 0
        %4276 = vmatprep.subr.bf16.mxu0 0
        %4277 = vmatpush2.bf16.msra.mxu0 0
        %4278 = vmatprep.subr.bf16.mxu0 0
        %4279 = vmatpush2.bf16.msra.mxu0 0
        %4280 = vmatprep.subr.bf16.mxu0 0
        %4281 = vmatpush2.bf16.msra.mxu0 0
        %4282 = vmatprep.mubr.bf16.mxu0 0
        %4283 = vmatmul.mubr.bf16.gmra.mxu0 %v2894
        %v4284 = vpop.f32.mrf.mxu0
        %v4285 = vadd.f32 %v4124, %v4284
        %v4286 = vpop.f32.mrf.mxu0
        %v4287 = vpop.f32.mrf.mxu0
        %v4288 = vadd.f32 %v4127, %v4287
        %v4289 = vpop.f32.mrf.mxu0
        %4290 = vmatprep.mubr.bf16.mxu0 0
        %4291 = vmatmul.mubr.bf16.gmra.mxu0 %v2903
        %v4292 = vpop.f32.mrf.mxu0
        %v4293 = vadd.f32 %v4132, %v4292
        %v4294 = vpop.f32.mrf.mxu0
        %v4295 = vpop.f32.mrf.mxu0
        %v4296 = vadd.f32 %v4135, %v4295
        %v4297 = vpop.f32.mrf.mxu0
        %4298 = vmatprep.mubr.bf16.mxu0 0
        %4299 = vmatmul.mubr.bf16.gmra.mxu0 %v2912
        %v4300 = vpop.f32.mrf.mxu0
        %v4301 = vadd.f32 %v4140, %v4300
        %v4302 = vpop.f32.mrf.mxu0
        %v4303 = vpop.f32.mrf.mxu0
        %v4304 = vadd.f32 %v4143, %v4303
        %v4305 = vpop.f32.mrf.mxu0
        %4306 = vmatprep.mubr.bf16.mxu0 0
        %4307 = vmatmul.mubr.bf16.gmra.mxu0 %v2921
        %v4308 = vpop.f32.mrf.mxu0
        %v4309 = vadd.f32 %v4148, %v4308
        %v4310 = vpop.f32.mrf.mxu0
        %v4311 = vpop.f32.mrf.mxu0
        %v4312 = vadd.f32 %v4151, %v4311
        %v4313 = vpop.f32.mrf.mxu0
        %4314 = vmatprep.mubr.bf16.mxu0 0
        %4315 = vmatmul.mubr.bf16.gmra.mxu0 %v2930
        %v4316 = vpop.f32.mrf.mxu0
        %v4317 = vadd.f32 %v4156, %v4316
        %v4318 = vpop.f32.mrf.mxu0
        %v4319 = vpop.f32.mrf.mxu0
        %v4320 = vadd.f32 %v4159, %v4319
        %v4321 = vpop.f32.mrf.mxu0
        %4322 = vmatprep.mubr.bf16.mxu0 0
        %4323 = vmatmul.mubr.bf16.gmra.mxu0 %v2939
        %v4324 = vpop.f32.mrf.mxu0
        %v4325 = vadd.f32 %v4164, %v4324
        %v4326 = vpop.f32.mrf.mxu0
        %v4327 = vpop.f32.mrf.mxu0
        %v4328 = vadd.f32 %v4167, %v4327
        %v4329 = vpop.f32.mrf.mxu0
        %4330 = vmatprep.mubr.bf16.mxu0 0
        %4331 = vmatmul.mubr.bf16.gmra.mxu0 %v2948
        %v4332 = vpop.f32.mrf.mxu0
        %v4333 = vadd.f32 %v4172, %v4332
        %v4334 = vpop.f32.mrf.mxu0
        %v4335 = vpop.f32.mrf.mxu0
        %v4336 = vadd.f32 %v4175, %v4335
        %v4337 = vpop.f32.mrf.mxu0
        %4338 = vmatprep.mubr.bf16.mxu0 0
        %4339 = vmatmul.mubr.bf16.gmra.mxu0 %v2957
        %v4340 = vpop.f32.mrf.mxu0
        %v4341 = vadd.f32 %v4180, %v4340
        %v4342 = vpop.f32.mrf.mxu0
        %v4343 = vpop.f32.mrf.mxu0
        %v4344 = vadd.f32 %v4183, %v4343
        %v4345 = vpop.f32.mrf.mxu0
        %4346 = vmatprep.mubr.bf16.mxu0 0
        %4347 = vmatmul.mubr.bf16.gmra.mxu0 %v2966
        %v4348 = vpop.f32.mrf.mxu0
        %v4349 = vadd.f32 %v4188, %v4348
        %v4350 = vpop.f32.mrf.mxu0
        %v4351 = vpop.f32.mrf.mxu0
        %v4352 = vadd.f32 %v4191, %v4351
        %v4353 = vpop.f32.mrf.mxu0
        %4354 = vmatprep.mubr.bf16.mxu0 0
        %4355 = vmatmul.mubr.bf16.gmra.mxu0 %v2975
        %v4356 = vpop.f32.mrf.mxu0
        %v4357 = vadd.f32 %v4196, %v4356
        %v4358 = vpop.f32.mrf.mxu0
        %v4359 = vpop.f32.mrf.mxu0
        %v4360 = vadd.f32 %v4199, %v4359
        %v4361 = vpop.f32.mrf.mxu0
        %4362 = vmatprep.mubr.bf16.mxu0 0
        %4363 = vmatmul.mubr.bf16.gmra.mxu0 %v2984
        %v4364 = vpop.f32.mrf.mxu0
        %v4365 = vadd.f32 %v4204, %v4364
        %v4366 = vpop.f32.mrf.mxu0
        %v4367 = vpop.f32.mrf.mxu0
        %v4368 = vadd.f32 %v4207, %v4367
        %v4369 = vpop.f32.mrf.mxu0
        %4370 = vmatprep.mubr.bf16.mxu0 0
        %4371 = vmatmul.mubr.bf16.gmra.mxu0 %v2993
        %v4372 = vpop.f32.mrf.mxu0
        %v4373 = vadd.f32 %v4212, %v4372
        %v4374 = vpop.f32.mrf.mxu0
        %v4375 = vpop.f32.mrf.mxu0
        %v4376 = vadd.f32 %v4215, %v4375
        %v4377 = vpop.f32.mrf.mxu0
        %4378 = vmatprep.mubr.bf16.mxu0 0
        %4379 = vmatmul.mubr.bf16.gmra.mxu0 %v3002
        %v4380 = vpop.f32.mrf.mxu0
        %v4381 = vadd.f32 %v4220, %v4380
        %v4382 = vpop.f32.mrf.mxu0
        %v4383 = vpop.f32.mrf.mxu0
        %v4384 = vadd.f32 %v4223, %v4383
        %v4385 = vpop.f32.mrf.mxu0
        %4386 = vmatprep.mubr.bf16.mxu0 0
        %4387 = vmatmul.mubr.bf16.gmra.mxu0 %v3011
        %v4388 = vpop.f32.mrf.mxu0
        %v4389 = vadd.f32 %v4228, %v4388
        %v4390 = vpop.f32.mrf.mxu0
        %v4391 = vpop.f32.mrf.mxu0
        %v4392 = vadd.f32 %v4231, %v4391
        %v4393 = vpop.f32.mrf.mxu0
        %4394 = vmatprep.mubr.bf16.mxu0 0
        %4395 = vmatmul.mubr.bf16.gmra.mxu0 %v3020
        %v4396 = vpop.f32.mrf.mxu0
        %v4397 = vadd.f32 %v4236, %v4396
        %v4398 = vpop.f32.mrf.mxu0
        %v4399 = vpop.f32.mrf.mxu0
        %v4400 = vadd.f32 %v4239, %v4399
        %v4401 = vpop.f32.mrf.mxu0
        %4402 = vmatprep.mubr.bf16.mxu0 0
        %4403 = vmatmul.mubr.bf16.gmra.mxu0 %v3029
        %v4404 = vpop.f32.mrf.mxu0
        %v4405 = vadd.f32 %v4244, %v4404
        %v4406 = vpop.f32.mrf.mxu0
        %v4407 = vpop.f32.mrf.mxu0
        %v4408 = vadd.f32 %v4247, %v4407
        %v4409 = vpop.f32.mrf.mxu0
        %4410 = vdwg.mxu0
        %v4411 = vlaneseq
        %v4412 = vshrl.u32 %v4411, 7
        %v4413 = vadd.s32 %v4412, 8
        %v4414 = vadd.s32 %v4412, 16
        %v4415 = vadd.s32 %v4412, 24
        %v4416 = vadd.s32 %v4412, 32
        %v4417 = vadd.s32 %v4412, 40
        %v4418 = vadd.s32 %v4412, 48
        %v4419 = vadd.s32 %v4412, 56
        %v4420 = vadd.s32 %v4412, 64
        %v4421 = vadd.s32 %v4412, 72
        %v4422 = vadd.s32 %v4412, 80
        %v4423 = vadd.s32 %v4412, 88
        %v4424 = vadd.s32 %v4412, 96
        %v4425 = vadd.s32 %v4412, 104
        %v4426 = vadd.s32 %v4412, 112
        %v4427 = vadd.s32 %v4412, 120
        %v4428 = vadd.s32 %v4412, 128
        %v4429 = vadd.s32 %v4412, 136
        %v4430 = vadd.s32 %v4412, 144
        %v4431 = vadd.s32 %v4412, 152
        %v4432 = vadd.s32 %v4412, 160
        %v4433 = vadd.s32 %v4412, 168
        %v4434 = vadd.s32 %v4412, 176
        %v4435 = vadd.s32 %v4412, 184
        %v4436 = vadd.s32 %v4412, 192
        %v4437 = vadd.s32 %v4412, 200
        %v4438 = vadd.s32 %v4412, 208
        %v4439 = vadd.s32 %v4412, 216
        %v4440 = vadd.s32 %v4412, 224
        %v4441 = vadd.s32 %v4412, 232
        %v4442 = vadd.s32 %v4412, 240
        %v4443 = vadd.s32 %v4412, 248
        %v4444 = vstv %s223
        %v4445 = vadd.s32 %v4444, %v4412
        %v4446 = vadd.s32 %v4444, %v4413
        %v4447 = vadd.s32 %v4444, %v4414
        %v4448 = vadd.s32 %v4444, %v4415
        %v4449 = vadd.s32 %v4444, %v4416
        %v4450 = vadd.s32 %v4444, %v4417
        %v4451 = vadd.s32 %v4444, %v4418
        %v4452 = vadd.s32 %v4444, %v4419
        %v4453 = vadd.s32 %v4444, %v4420
        %v4454 = vadd.s32 %v4444, %v4421
        %v4455 = vadd.s32 %v4444, %v4422
        %v4456 = vadd.s32 %v4444, %v4423
        %v4457 = vadd.s32 %v4444, %v4424
        %v4458 = vadd.s32 %v4444, %v4425
        %v4459 = vadd.s32 %v4444, %v4426
        %v4460 = vadd.s32 %v4444, %v4427
        %v4461 = vadd.s32 %v4444, %v4428
        %v4462 = vadd.s32 %v4444, %v4429
        %v4463 = vadd.s32 %v4444, %v4430
        %v4464 = vadd.s32 %v4444, %v4431
        %v4465 = vadd.s32 %v4444, %v4432
        %v4466 = vadd.s32 %v4444, %v4433
        %v4467 = vadd.s32 %v4444, %v4434
        %v4468 = vadd.s32 %v4444, %v4435
        %v4469 = vadd.s32 %v4444, %v4436
        %v4470 = vadd.s32 %v4444, %v4437
        %v4471 = vadd.s32 %v4444, %v4438
        %v4472 = vadd.s32 %v4444, %v4439
        %v4473 = vadd.s32 %v4444, %v4440
        %v4474 = vadd.s32 %v4444, %v4441
        %v4475 = vadd.s32 %v4444, %v4442
        %v4476 = vadd.s32 %v4444, %v4443
        %vm4477 = vcmp.lt.s32.totalorder %v4445, 288
        %vm4478 = vcmp.lt.s32.totalorder %v4446, 288
        %vm4479 = vcmp.lt.s32.totalorder %v4447, 288
        %vm4480 = vcmp.lt.s32.totalorder %v4448, 288
        %vm4481 = vcmp.lt.s32.totalorder %v4449, 288
        %vm4482 = vcmp.lt.s32.totalorder %v4450, 288
        %vm4483 = vcmp.lt.s32.totalorder %v4451, 288
        %vm4484 = vcmp.lt.s32.totalorder %v4452, 288
        %vm4485 = vcmp.lt.s32.totalorder %v4453, 288
        %vm4486 = vcmp.lt.s32.totalorder %v4454, 288
        %vm4487 = vcmp.lt.s32.totalorder %v4455, 288
        %vm4488 = vcmp.lt.s32.totalorder %v4456, 288
        %vm4489 = vcmp.lt.s32.totalorder %v4457, 288
        %vm4490 = vcmp.lt.s32.totalorder %v4458, 288
        %vm4491 = vcmp.lt.s32.totalorder %v4459, 288
        %vm4492 = vcmp.lt.s32.totalorder %v4460, 288
        %vm4493 = vcmp.lt.s32.totalorder %v4461, 288
        %vm4494 = vcmp.lt.s32.totalorder %v4462, 288
        %vm4495 = vcmp.lt.s32.totalorder %v4463, 288
        %vm4496 = vcmp.lt.s32.totalorder %v4464, 288
        %vm4497 = vcmp.lt.s32.totalorder %v4465, 288
        %vm4498 = vcmp.lt.s32.totalorder %v4466, 288
        %vm4499 = vcmp.lt.s32.totalorder %v4467, 288
        %vm4500 = vcmp.lt.s32.totalorder %v4468, 288
        %vm4501 = vcmp.lt.s32.totalorder %v4469, 288
        %vm4502 = vcmp.lt.s32.totalorder %v4470, 288
        %vm4503 = vcmp.lt.s32.totalorder %v4471, 288
        %vm4504 = vcmp.lt.s32.totalorder %v4472, 288
        %vm4505 = vcmp.lt.s32.totalorder %v4473, 288
        %vm4506 = vcmp.lt.s32.totalorder %v4474, 288
        %vm4507 = vcmp.lt.s32.totalorder %v4475, 288
        %vm4508 = vcmp.lt.s32.totalorder %v4476, 288
        %vm4509 = vcmp.lt.s32.totalorder %v4445, 0
        %v4510 = vsub.s32 0, %v4445
        %v4511 = vsel %vm4509, %v4510, %v4445
        %v4512 = vmul.u32.u64.compose %v4511, 3817748708
        %v4513 = vextract.low.u32 %v4512
        %v4514 = vextract.high.u32 %v4512
        %v4515 = vshrl.u32 %v4514, 4
        %v4516 = vmul.u32 %v4515, 18
        %v4517 = vsub.s32 %v4511, %v4516
        %v4518 = vsub.s32 0, %v4517
        %v4519 = vsel %vm4509, %v4518, %v4517
        %vm4520 = vcmp.lt.s32.totalorder %v4446, 0
        %v4521 = vsub.s32 0, %v4446
        %v4522 = vsel %vm4520, %v4521, %v4446
        %v4523 = vmul.u32.u64.compose %v4522, 3817748708
        %v4524 = vextract.low.u32 %v4523
        %v4525 = vextract.high.u32 %v4523
        %v4526 = vshrl.u32 %v4525, 4
        %v4527 = vmul.u32 %v4526, 18
        %v4528 = vsub.s32 %v4522, %v4527
        %v4529 = vsub.s32 0, %v4528
        %v4530 = vsel %vm4520, %v4529, %v4528
        %vm4531 = vcmp.lt.s32.totalorder %v4447, 0
        %v4532 = vsub.s32 0, %v4447
        %v4533 = vsel %vm4531, %v4532, %v4447
        %v4534 = vmul.u32.u64.compose %v4533, 3817748708
        %v4535 = vextract.low.u32 %v4534
        %v4536 = vextract.high.u32 %v4534
        %v4537 = vshrl.u32 %v4536, 4
        %v4538 = vmul.u32 %v4537, 18
        %v4539 = vsub.s32 %v4533, %v4538
        %v4540 = vsub.s32 0, %v4539
        %v4541 = vsel %vm4531, %v4540, %v4539
        %vm4542 = vcmp.lt.s32.totalorder %v4448, 0
        %v4543 = vsub.s32 0, %v4448
        %v4544 = vsel %vm4542, %v4543, %v4448
        %v4545 = vmul.u32.u64.compose %v4544, 3817748708
        %v4546 = vextract.low.u32 %v4545
        %v4547 = vextract.high.u32 %v4545
        %v4548 = vshrl.u32 %v4547, 4
        %v4549 = vmul.u32 %v4548, 18
        %v4550 = vsub.s32 %v4544, %v4549
        %v4551 = vsub.s32 0, %v4550
        %v4552 = vsel %vm4542, %v4551, %v4550
        %vm4553 = vcmp.lt.s32.totalorder %v4449, 0
        %v4554 = vsub.s32 0, %v4449
        %v4555 = vsel %vm4553, %v4554, %v4449
        %v4556 = vmul.u32.u64.compose %v4555, 3817748708
        %v4557 = vextract.low.u32 %v4556
        %v4558 = vextract.high.u32 %v4556
        %v4559 = vshrl.u32 %v4558, 4
        %v4560 = vmul.u32 %v4559, 18
        %v4561 = vsub.s32 %v4555, %v4560
        %v4562 = vsub.s32 0, %v4561
        %v4563 = vsel %vm4553, %v4562, %v4561
        %vm4564 = vcmp.lt.s32.totalorder %v4450, 0
        %v4565 = vsub.s32 0, %v4450
        %v4566 = vsel %vm4564, %v4565, %v4450
        %v4567 = vmul.u32.u64.compose %v4566, 3817748708
        %v4568 = vextract.low.u32 %v4567
        %v4569 = vextract.high.u32 %v4567
        %v4570 = vshrl.u32 %v4569, 4
        %v4571 = vmul.u32 %v4570, 18
        %v4572 = vsub.s32 %v4566, %v4571
        %v4573 = vsub.s32 0, %v4572
        %v4574 = vsel %vm4564, %v4573, %v4572
        %vm4575 = vcmp.lt.s32.totalorder %v4451, 0
        %v4576 = vsub.s32 0, %v4451
        %v4577 = vsel %vm4575, %v4576, %v4451
        %v4578 = vmul.u32.u64.compose %v4577, 3817748708
        %v4579 = vextract.low.u32 %v4578
        %v4580 = vextract.high.u32 %v4578
        %v4581 = vshrl.u32 %v4580, 4
        %v4582 = vmul.u32 %v4581, 18
        %v4583 = vsub.s32 %v4577, %v4582
        %v4584 = vsub.s32 0, %v4583
        %v4585 = vsel %vm4575, %v4584, %v4583
        %vm4586 = vcmp.lt.s32.totalorder %v4452, 0
        %v4587 = vsub.s32 0, %v4452
        %v4588 = vsel %vm4586, %v4587, %v4452
        %v4589 = vmul.u32.u64.compose %v4588, 3817748708
        %v4590 = vextract.low.u32 %v4589
        %v4591 = vextract.high.u32 %v4589
        %v4592 = vshrl.u32 %v4591, 4
        %v4593 = vmul.u32 %v4592, 18
        %v4594 = vsub.s32 %v4588, %v4593
        %v4595 = vsub.s32 0, %v4594
        %v4596 = vsel %vm4586, %v4595, %v4594
        %vm4597 = vcmp.lt.s32.totalorder %v4453, 0
        %v4598 = vsub.s32 0, %v4453
        %v4599 = vsel %vm4597, %v4598, %v4453
        %v4600 = vmul.u32.u64.compose %v4599, 3817748708
        %v4601 = vextract.low.u32 %v4600
        %v4602 = vextract.high.u32 %v4600
        %v4603 = vshrl.u32 %v4602, 4
        %v4604 = vmul.u32 %v4603, 18
        %v4605 = vsub.s32 %v4599, %v4604
        %v4606 = vsub.s32 0, %v4605
        %v4607 = vsel %vm4597, %v4606, %v4605
        %vm4608 = vcmp.lt.s32.totalorder %v4454, 0
        %v4609 = vsub.s32 0, %v4454
        %v4610 = vsel %vm4608, %v4609, %v4454
        %v4611 = vmul.u32.u64.compose %v4610, 3817748708
        %v4612 = vextract.low.u32 %v4611
        %v4613 = vextract.high.u32 %v4611
        %v4614 = vshrl.u32 %v4613, 4
        %v4615 = vmul.u32 %v4614, 18
        %v4616 = vsub.s32 %v4610, %v4615
        %v4617 = vsub.s32 0, %v4616
        %v4618 = vsel %vm4608, %v4617, %v4616
        %vm4619 = vcmp.lt.s32.totalorder %v4455, 0
        %v4620 = vsub.s32 0, %v4455
        %v4621 = vsel %vm4619, %v4620, %v4455
        %v4622 = vmul.u32.u64.compose %v4621, 3817748708
        %v4623 = vextract.low.u32 %v4622
        %v4624 = vextract.high.u32 %v4622
        %v4625 = vshrl.u32 %v4624, 4
        %v4626 = vmul.u32 %v4625, 18
        %v4627 = vsub.s32 %v4621, %v4626
        %v4628 = vsub.s32 0, %v4627
        %v4629 = vsel %vm4619, %v4628, %v4627
        %vm4630 = vcmp.lt.s32.totalorder %v4456, 0
        %v4631 = vsub.s32 0, %v4456
        %v4632 = vsel %vm4630, %v4631, %v4456
        %v4633 = vmul.u32.u64.compose %v4632, 3817748708
        %v4634 = vextract.low.u32 %v4633
        %v4635 = vextract.high.u32 %v4633
        %v4636 = vshrl.u32 %v4635, 4
        %v4637 = vmul.u32 %v4636, 18
        %v4638 = vsub.s32 %v4632, %v4637
        %v4639 = vsub.s32 0, %v4638
        %v4640 = vsel %vm4630, %v4639, %v4638
        %vm4641 = vcmp.lt.s32.totalorder %v4457, 0
        %v4642 = vsub.s32 0, %v4457
        %v4643 = vsel %vm4641, %v4642, %v4457
        %v4644 = vmul.u32.u64.compose %v4643, 3817748708
        %v4645 = vextract.low.u32 %v4644
        %v4646 = vextract.high.u32 %v4644
        %v4647 = vshrl.u32 %v4646, 4
        %v4648 = vmul.u32 %v4647, 18
        %v4649 = vsub.s32 %v4643, %v4648
        %v4650 = vsub.s32 0, %v4649
        %v4651 = vsel %vm4641, %v4650, %v4649
        %vm4652 = vcmp.lt.s32.totalorder %v4458, 0
        %v4653 = vsub.s32 0, %v4458
        %v4654 = vsel %vm4652, %v4653, %v4458
        %v4655 = vmul.u32.u64.compose %v4654, 3817748708
        %v4656 = vextract.low.u32 %v4655
        %v4657 = vextract.high.u32 %v4655
        %v4658 = vshrl.u32 %v4657, 4
        %v4659 = vmul.u32 %v4658, 18
        %v4660 = vsub.s32 %v4654, %v4659
        %v4661 = vsub.s32 0, %v4660
        %v4662 = vsel %vm4652, %v4661, %v4660
        %vm4663 = vcmp.lt.s32.totalorder %v4459, 0
        %v4664 = vsub.s32 0, %v4459
        %v4665 = vsel %vm4663, %v4664, %v4459
        %v4666 = vmul.u32.u64.compose %v4665, 3817748708
        %v4667 = vextract.low.u32 %v4666
        %v4668 = vextract.high.u32 %v4666
        %v4669 = vshrl.u32 %v4668, 4
        %v4670 = vmul.u32 %v4669, 18
        %v4671 = vsub.s32 %v4665, %v4670
        %v4672 = vsub.s32 0, %v4671
        %v4673 = vsel %vm4663, %v4672, %v4671
        %vm4674 = vcmp.lt.s32.totalorder %v4460, 0
        %v4675 = vsub.s32 0, %v4460
        %v4676 = vsel %vm4674, %v4675, %v4460
        %v4677 = vmul.u32.u64.compose %v4676, 3817748708
        %v4678 = vextract.low.u32 %v4677
        %v4679 = vextract.high.u32 %v4677
        %v4680 = vshrl.u32 %v4679, 4
        %v4681 = vmul.u32 %v4680, 18
        %v4682 = vsub.s32 %v4676, %v4681
        %v4683 = vsub.s32 0, %v4682
        %v4684 = vsel %vm4674, %v4683, %v4682
        %vm4685 = vcmp.lt.s32.totalorder %v4461, 0
        %v4686 = vsub.s32 0, %v4461
        %v4687 = vsel %vm4685, %v4686, %v4461
        %v4688 = vmul.u32.u64.compose %v4687, 3817748708
        %v4689 = vextract.low.u32 %v4688
        %v4690 = vextract.high.u32 %v4688
        %v4691 = vshrl.u32 %v4690, 4
        %v4692 = vmul.u32 %v4691, 18
        %v4693 = vsub.s32 %v4687, %v4692
        %v4694 = vsub.s32 0, %v4693
        %v4695 = vsel %vm4685, %v4694, %v4693
        %vm4696 = vcmp.lt.s32.totalorder %v4462, 0
        %v4697 = vsub.s32 0, %v4462
        %v4698 = vsel %vm4696, %v4697, %v4462
        %v4699 = vmul.u32.u64.compose %v4698, 3817748708
        %v4700 = vextract.low.u32 %v4699
        %v4701 = vextract.high.u32 %v4699
        %v4702 = vshrl.u32 %v4701, 4
        %v4703 = vmul.u32 %v4702, 18
        %v4704 = vsub.s32 %v4698, %v4703
        %v4705 = vsub.s32 0, %v4704
        %v4706 = vsel %vm4696, %v4705, %v4704
        %vm4707 = vcmp.lt.s32.totalorder %v4463, 0
        %v4708 = vsub.s32 0, %v4463
        %v4709 = vsel %vm4707, %v4708, %v4463
        %v4710 = vmul.u32.u64.compose %v4709, 3817748708
        %v4711 = vextract.low.u32 %v4710
        %v4712 = vextract.high.u32 %v4710
        %v4713 = vshrl.u32 %v4712, 4
        %v4714 = vmul.u32 %v4713, 18
        %v4715 = vsub.s32 %v4709, %v4714
        %v4716 = vsub.s32 0, %v4715
        %v4717 = vsel %vm4707, %v4716, %v4715
        %vm4718 = vcmp.lt.s32.totalorder %v4464, 0
        %v4719 = vsub.s32 0, %v4464
        %v4720 = vsel %vm4718, %v4719, %v4464
        %v4721 = vmul.u32.u64.compose %v4720, 3817748708
        %v4722 = vextract.low.u32 %v4721
        %v4723 = vextract.high.u32 %v4721
        %v4724 = vshrl.u32 %v4723, 4
        %v4725 = vmul.u32 %v4724, 18
        %v4726 = vsub.s32 %v4720, %v4725
        %v4727 = vsub.s32 0, %v4726
        %v4728 = vsel %vm4718, %v4727, %v4726
        %vm4729 = vcmp.lt.s32.totalorder %v4465, 0
        %v4730 = vsub.s32 0, %v4465
        %v4731 = vsel %vm4729, %v4730, %v4465
        %v4732 = vmul.u32.u64.compose %v4731, 3817748708
        %v4733 = vextract.low.u32 %v4732
        %v4734 = vextract.high.u32 %v4732
        %v4735 = vshrl.u32 %v4734, 4
        %v4736 = vmul.u32 %v4735, 18
        %v4737 = vsub.s32 %v4731, %v4736
        %v4738 = vsub.s32 0, %v4737
        %v4739 = vsel %vm4729, %v4738, %v4737
        %vm4740 = vcmp.lt.s32.totalorder %v4466, 0
        %v4741 = vsub.s32 0, %v4466
        %v4742 = vsel %vm4740, %v4741, %v4466
        %v4743 = vmul.u32.u64.compose %v4742, 3817748708
        %v4744 = vextract.low.u32 %v4743
        %v4745 = vextract.high.u32 %v4743
        %v4746 = vshrl.u32 %v4745, 4
        %v4747 = vmul.u32 %v4746, 18
        %v4748 = vsub.s32 %v4742, %v4747
        %v4749 = vsub.s32 0, %v4748
        %v4750 = vsel %vm4740, %v4749, %v4748
        %vm4751 = vcmp.lt.s32.totalorder %v4467, 0
        %v4752 = vsub.s32 0, %v4467
        %v4753 = vsel %vm4751, %v4752, %v4467
        %v4754 = vmul.u32.u64.compose %v4753, 3817748708
        %v4755 = vextract.low.u32 %v4754
        %v4756 = vextract.high.u32 %v4754
        %v4757 = vshrl.u32 %v4756, 4
        %v4758 = vmul.u32 %v4757, 18
        %v4759 = vsub.s32 %v4753, %v4758
        %v4760 = vsub.s32 0, %v4759
        %v4761 = vsel %vm4751, %v4760, %v4759
        %vm4762 = vcmp.lt.s32.totalorder %v4468, 0
        %v4763 = vsub.s32 0, %v4468
        %v4764 = vsel %vm4762, %v4763, %v4468
        %v4765 = vmul.u32.u64.compose %v4764, 3817748708
        %v4766 = vextract.low.u32 %v4765
        %v4767 = vextract.high.u32 %v4765
        %v4768 = vshrl.u32 %v4767, 4
        %v4769 = vmul.u32 %v4768, 18
        %v4770 = vsub.s32 %v4764, %v4769
        %v4771 = vsub.s32 0, %v4770
        %v4772 = vsel %vm4762, %v4771, %v4770
        %vm4773 = vcmp.lt.s32.totalorder %v4469, 0
        %v4774 = vsub.s32 0, %v4469
        %v4775 = vsel %vm4773, %v4774, %v4469
        %v4776 = vmul.u32.u64.compose %v4775, 3817748708
        %v4777 = vextract.low.u32 %v4776
        %v4778 = vextract.high.u32 %v4776
        %v4779 = vshrl.u32 %v4778, 4
        %v4780 = vmul.u32 %v4779, 18
        %v4781 = vsub.s32 %v4775, %v4780
        %v4782 = vsub.s32 0, %v4781
        %v4783 = vsel %vm4773, %v4782, %v4781
        %vm4784 = vcmp.lt.s32.totalorder %v4470, 0
        %v4785 = vsub.s32 0, %v4470
        %v4786 = vsel %vm4784, %v4785, %v4470
        %v4787 = vmul.u32.u64.compose %v4786, 3817748708
        %v4788 = vextract.low.u32 %v4787
        %v4789 = vextract.high.u32 %v4787
        %v4790 = vshrl.u32 %v4789, 4
        %v4791 = vmul.u32 %v4790, 18
        %v4792 = vsub.s32 %v4786, %v4791
        %v4793 = vsub.s32 0, %v4792
        %v4794 = vsel %vm4784, %v4793, %v4792
        %vm4795 = vcmp.lt.s32.totalorder %v4471, 0
        %v4796 = vsub.s32 0, %v4471
        %v4797 = vsel %vm4795, %v4796, %v4471
        %v4798 = vmul.u32.u64.compose %v4797, 3817748708
        %v4799 = vextract.low.u32 %v4798
        %v4800 = vextract.high.u32 %v4798
        %v4801 = vshrl.u32 %v4800, 4
        %v4802 = vmul.u32 %v4801, 18
        %v4803 = vsub.s32 %v4797, %v4802
        %v4804 = vsub.s32 0, %v4803
        %v4805 = vsel %vm4795, %v4804, %v4803
        %vm4806 = vcmp.lt.s32.totalorder %v4472, 0
        %v4807 = vsub.s32 0, %v4472
        %v4808 = vsel %vm4806, %v4807, %v4472
        %v4809 = vmul.u32.u64.compose %v4808, 3817748708
        %v4810 = vextract.low.u32 %v4809
        %v4811 = vextract.high.u32 %v4809
        %v4812 = vshrl.u32 %v4811, 4
        %v4813 = vmul.u32 %v4812, 18
        %v4814 = vsub.s32 %v4808, %v4813
        %v4815 = vsub.s32 0, %v4814
        %v4816 = vsel %vm4806, %v4815, %v4814
        %vm4817 = vcmp.lt.s32.totalorder %v4473, 0
        %v4818 = vsub.s32 0, %v4473
        %v4819 = vsel %vm4817, %v4818, %v4473
        %v4820 = vmul.u32.u64.compose %v4819, 3817748708
        %v4821 = vextract.low.u32 %v4820
        %v4822 = vextract.high.u32 %v4820
        %v4823 = vshrl.u32 %v4822, 4
        %v4824 = vmul.u32 %v4823, 18
        %v4825 = vsub.s32 %v4819, %v4824
        %v4826 = vsub.s32 0, %v4825
        %v4827 = vsel %vm4817, %v4826, %v4825
        %vm4828 = vcmp.lt.s32.totalorder %v4474, 0
        %v4829 = vsub.s32 0, %v4474
        %v4830 = vsel %vm4828, %v4829, %v4474
        %v4831 = vmul.u32.u64.compose %v4830, 3817748708
        %v4832 = vextract.low.u32 %v4831
        %v4833 = vextract.high.u32 %v4831
        %v4834 = vshrl.u32 %v4833, 4
        %v4835 = vmul.u32 %v4834, 18
        %v4836 = vsub.s32 %v4830, %v4835
        %v4837 = vsub.s32 0, %v4836
        %v4838 = vsel %vm4828, %v4837, %v4836
        %vm4839 = vcmp.lt.s32.totalorder %v4475, 0
        %v4840 = vsub.s32 0, %v4475
        %v4841 = vsel %vm4839, %v4840, %v4475
        %v4842 = vmul.u32.u64.compose %v4841, 3817748708
        %v4843 = vextract.low.u32 %v4842
        %v4844 = vextract.high.u32 %v4842
        %v4845 = vshrl.u32 %v4844, 4
        %v4846 = vmul.u32 %v4845, 18
        %v4847 = vsub.s32 %v4841, %v4846
        %v4848 = vsub.s32 0, %v4847
        %v4849 = vsel %vm4839, %v4848, %v4847
        %vm4850 = vcmp.lt.s32.totalorder %v4476, 0
        %v4851 = vsub.s32 0, %v4476
        %v4852 = vsel %vm4850, %v4851, %v4476
        %v4853 = vmul.u32.u64.compose %v4852, 3817748708
        %v4854 = vextract.low.u32 %v4853
        %v4855 = vextract.high.u32 %v4853
        %v4856 = vshrl.u32 %v4855, 4
        %v4857 = vmul.u32 %v4856, 18
        %v4858 = vsub.s32 %v4852, %v4857
        %v4859 = vsub.s32 0, %v4858
        %v4860 = vsel %vm4850, %v4859, %v4858
        %vm4861 = vcmp.ne.s32.totalorder %v4519, 0
        %vm4862 = vcmp.ne.s32.totalorder %v4530, 0
        %vm4863 = vcmp.ne.s32.totalorder %v4541, 0
        %vm4864 = vcmp.ne.s32.totalorder %v4552, 0
        %vm4865 = vcmp.ne.s32.totalorder %v4563, 0
        %vm4866 = vcmp.ne.s32.totalorder %v4574, 0
        %vm4867 = vcmp.ne.s32.totalorder %v4585, 0
        %vm4868 = vcmp.ne.s32.totalorder %v4596, 0
        %vm4869 = vcmp.ne.s32.totalorder %v4607, 0
        %vm4870 = vcmp.ne.s32.totalorder %v4618, 0
        %vm4871 = vcmp.ne.s32.totalorder %v4629, 0
        %vm4872 = vcmp.ne.s32.totalorder %v4640, 0
        %vm4873 = vcmp.ne.s32.totalorder %v4651, 0
        %vm4874 = vcmp.ne.s32.totalorder %v4662, 0
        %vm4875 = vcmp.ne.s32.totalorder %v4673, 0
        %vm4876 = vcmp.ne.s32.totalorder %v4684, 0
        %vm4877 = vcmp.ne.s32.totalorder %v4695, 0
        %vm4878 = vcmp.ne.s32.totalorder %v4706, 0
        %vm4879 = vcmp.ne.s32.totalorder %v4717, 0
        %vm4880 = vcmp.ne.s32.totalorder %v4728, 0
        %vm4881 = vcmp.ne.s32.totalorder %v4739, 0
        %vm4882 = vcmp.ne.s32.totalorder %v4750, 0
        %vm4883 = vcmp.ne.s32.totalorder %v4761, 0
        %vm4884 = vcmp.ne.s32.totalorder %v4772, 0
        %vm4885 = vcmp.ne.s32.totalorder %v4783, 0
        %vm4886 = vcmp.ne.s32.totalorder %v4794, 0
        %vm4887 = vcmp.ne.s32.totalorder %v4805, 0
        %vm4888 = vcmp.ne.s32.totalorder %v4816, 0
        %vm4889 = vcmp.ne.s32.totalorder %v4827, 0
        %vm4890 = vcmp.ne.s32.totalorder %v4838, 0
        %vm4891 = vcmp.ne.s32.totalorder %v4849, 0
        %vm4892 = vcmp.ne.s32.totalorder %v4860, 0
        %vm4893 = vcmp.lt.s32.totalorder %v4519, 0
        %vm4894 = vcmp.lt.s32.totalorder %v4530, 0
        %vm4895 = vcmp.lt.s32.totalorder %v4541, 0
        %vm4896 = vcmp.lt.s32.totalorder %v4552, 0
        %vm4897 = vcmp.lt.s32.totalorder %v4563, 0
        %vm4898 = vcmp.lt.s32.totalorder %v4574, 0
        %vm4899 = vcmp.lt.s32.totalorder %v4585, 0
        %vm4900 = vcmp.lt.s32.totalorder %v4596, 0
        %vm4901 = vcmp.lt.s32.totalorder %v4607, 0
        %vm4902 = vcmp.lt.s32.totalorder %v4618, 0
        %vm4903 = vcmp.lt.s32.totalorder %v4629, 0
        %vm4904 = vcmp.lt.s32.totalorder %v4640, 0
        %vm4905 = vcmp.lt.s32.totalorder %v4651, 0
        %vm4906 = vcmp.lt.s32.totalorder %v4662, 0
        %vm4907 = vcmp.lt.s32.totalorder %v4673, 0
        %vm4908 = vcmp.lt.s32.totalorder %v4684, 0
        %vm4909 = vcmp.lt.s32.totalorder %v4695, 0
        %vm4910 = vcmp.lt.s32.totalorder %v4706, 0
        %vm4911 = vcmp.lt.s32.totalorder %v4717, 0
        %vm4912 = vcmp.lt.s32.totalorder %v4728, 0
        %vm4913 = vcmp.lt.s32.totalorder %v4739, 0
        %vm4914 = vcmp.lt.s32.totalorder %v4750, 0
        %vm4915 = vcmp.lt.s32.totalorder %v4761, 0
        %vm4916 = vcmp.lt.s32.totalorder %v4772, 0
        %vm4917 = vcmp.lt.s32.totalorder %v4783, 0
        %vm4918 = vcmp.lt.s32.totalorder %v4794, 0
        %vm4919 = vcmp.lt.s32.totalorder %v4805, 0
        %vm4920 = vcmp.lt.s32.totalorder %v4816, 0
        %vm4921 = vcmp.lt.s32.totalorder %v4827, 0
        %vm4922 = vcmp.lt.s32.totalorder %v4838, 0
        %vm4923 = vcmp.lt.s32.totalorder %v4849, 0
        %vm4924 = vcmp.lt.s32.totalorder %v4860, 0
        %vm4925 = vmand %vm4893, %vm4861
        %vm4926 = vmand %vm4894, %vm4862
        %vm4927 = vmand %vm4895, %vm4863
        %vm4928 = vmand %vm4896, %vm4864
        %vm4929 = vmand %vm4897, %vm4865
        %vm4930 = vmand %vm4898, %vm4866
        %vm4931 = vmand %vm4899, %vm4867
        %vm4932 = vmand %vm4900, %vm4868
        %vm4933 = vmand %vm4901, %vm4869
        %vm4934 = vmand %vm4902, %vm4870
        %vm4935 = vmand %vm4903, %vm4871
        %vm4936 = vmand %vm4904, %vm4872
        %vm4937 = vmand %vm4905, %vm4873
        %vm4938 = vmand %vm4906, %vm4874
        %vm4939 = vmand %vm4907, %vm4875
        %vm4940 = vmand %vm4908, %vm4876
        %vm4941 = vmand %vm4909, %vm4877
        %vm4942 = vmand %vm4910, %vm4878
        %vm4943 = vmand %vm4911, %vm4879
        %vm4944 = vmand %vm4912, %vm4880
        %vm4945 = vmand %vm4913, %vm4881
        %vm4946 = vmand %vm4914, %vm4882
        %vm4947 = vmand %vm4915, %vm4883
        %vm4948 = vmand %vm4916, %vm4884
        %vm4949 = vmand %vm4917, %vm4885
        %vm4950 = vmand %vm4918, %vm4886
        %vm4951 = vmand %vm4919, %vm4887
        %vm4952 = vmand %vm4920, %vm4888
        %vm4953 = vmand %vm4921, %vm4889
        %vm4954 = vmand %vm4922, %vm4890
        %vm4955 = vmand %vm4923, %vm4891
        %vm4956 = vmand %vm4924, %vm4892
        %v4957 = vadd.s32 %v4519, 18
        %v4958 = vadd.s32 %v4530, 18
        %v4959 = vadd.s32 %v4541, 18
        %v4960 = vadd.s32 %v4552, 18
        %v4961 = vadd.s32 %v4563, 18
        %v4962 = vadd.s32 %v4574, 18
        %v4963 = vadd.s32 %v4585, 18
        %v4964 = vadd.s32 %v4596, 18
        %v4965 = vadd.s32 %v4607, 18
        %v4966 = vadd.s32 %v4618, 18
        %v4967 = vadd.s32 %v4629, 18
        %v4968 = vadd.s32 %v4640, 18
        %v4969 = vadd.s32 %v4651, 18
        %v4970 = vadd.s32 %v4662, 18
        %v4971 = vadd.s32 %v4673, 18
        %v4972 = vadd.s32 %v4684, 18
        %v4973 = vadd.s32 %v4695, 18
        %v4974 = vadd.s32 %v4706, 18
        %v4975 = vadd.s32 %v4717, 18
        %v4976 = vadd.s32 %v4728, 18
        %v4977 = vadd.s32 %v4739, 18
        %v4978 = vadd.s32 %v4750, 18
        %v4979 = vadd.s32 %v4761, 18
        %v4980 = vadd.s32 %v4772, 18
        %v4981 = vadd.s32 %v4783, 18
        %v4982 = vadd.s32 %v4794, 18
        %v4983 = vadd.s32 %v4805, 18
        %v4984 = vadd.s32 %v4816, 18
        %v4985 = vadd.s32 %v4827, 18
        %v4986 = vadd.s32 %v4838, 18
        %v4987 = vadd.s32 %v4849, 18
        %v4988 = vadd.s32 %v4860, 18
        %v4989 = vsel %vm4925, %v4957, %v4519
        %v4990 = vsel %vm4926, %v4958, %v4530
        %v4991 = vsel %vm4927, %v4959, %v4541
        %v4992 = vsel %vm4928, %v4960, %v4552
        %v4993 = vsel %vm4929, %v4961, %v4563
        %v4994 = vsel %vm4930, %v4962, %v4574
        %v4995 = vsel %vm4931, %v4963, %v4585
        %v4996 = vsel %vm4932, %v4964, %v4596
        %v4997 = vsel %vm4933, %v4965, %v4607
        %v4998 = vsel %vm4934, %v4966, %v4618
        %v4999 = vsel %vm4935, %v4967, %v4629
        %v5000 = vsel %vm4936, %v4968, %v4640
        %v5001 = vsel %vm4937, %v4969, %v4651
        %v5002 = vsel %vm4938, %v4970, %v4662
        %v5003 = vsel %vm4939, %v4971, %v4673
        %v5004 = vsel %vm4940, %v4972, %v4684
        %v5005 = vsel %vm4941, %v4973, %v4695
        %v5006 = vsel %vm4942, %v4974, %v4706
        %v5007 = vsel %vm4943, %v4975, %v4717
        %v5008 = vsel %vm4944, %v4976, %v4728
        %v5009 = vsel %vm4945, %v4977, %v4739
        %v5010 = vsel %vm4946, %v4978, %v4750
        %v5011 = vsel %vm4947, %v4979, %v4761
        %v5012 = vsel %vm4948, %v4980, %v4772
        %v5013 = vsel %vm4949, %v4981, %v4783
        %v5014 = vsel %vm4950, %v4982, %v4794
        %v5015 = vsel %vm4951, %v4983, %v4805
        %v5016 = vsel %vm4952, %v4984, %v4816
        %v5017 = vsel %vm4953, %v4985, %v4827
        %v5018 = vsel %vm4954, %v4986, %v4838
        %v5019 = vsel %vm4955, %v4987, %v4849
        %v5020 = vsel %vm4956, %v4988, %v4860
        %vm5021 = vcmp.lt.s32.totalorder %v4989, 16
        %vm5022 = vcmp.lt.s32.totalorder %v4990, 16
        %vm5023 = vcmp.lt.s32.totalorder %v4991, 16
        %vm5024 = vcmp.lt.s32.totalorder %v4992, 16
        %vm5025 = vcmp.lt.s32.totalorder %v4993, 16
        %vm5026 = vcmp.lt.s32.totalorder %v4994, 16
        %vm5027 = vcmp.lt.s32.totalorder %v4995, 16
        %vm5028 = vcmp.lt.s32.totalorder %v4996, 16
        %vm5029 = vcmp.lt.s32.totalorder %v4997, 16
        %vm5030 = vcmp.lt.s32.totalorder %v4998, 16
        %vm5031 = vcmp.lt.s32.totalorder %v4999, 16
        %vm5032 = vcmp.lt.s32.totalorder %v5000, 16
        %vm5033 = vcmp.lt.s32.totalorder %v5001, 16
        %vm5034 = vcmp.lt.s32.totalorder %v5002, 16
        %vm5035 = vcmp.lt.s32.totalorder %v5003, 16
        %vm5036 = vcmp.lt.s32.totalorder %v5004, 16
        %vm5037 = vcmp.lt.s32.totalorder %v5005, 16
        %vm5038 = vcmp.lt.s32.totalorder %v5006, 16
        %vm5039 = vcmp.lt.s32.totalorder %v5007, 16
        %vm5040 = vcmp.lt.s32.totalorder %v5008, 16
        %vm5041 = vcmp.lt.s32.totalorder %v5009, 16
        %vm5042 = vcmp.lt.s32.totalorder %v5010, 16
        %vm5043 = vcmp.lt.s32.totalorder %v5011, 16
        %vm5044 = vcmp.lt.s32.totalorder %v5012, 16
        %vm5045 = vcmp.lt.s32.totalorder %v5013, 16
        %vm5046 = vcmp.lt.s32.totalorder %v5014, 16
        %vm5047 = vcmp.lt.s32.totalorder %v5015, 16
        %vm5048 = vcmp.lt.s32.totalorder %v5016, 16
        %vm5049 = vcmp.lt.s32.totalorder %v5017, 16
        %vm5050 = vcmp.lt.s32.totalorder %v5018, 16
        %vm5051 = vcmp.lt.s32.totalorder %v5019, 16
        %vm5052 = vcmp.lt.s32.totalorder %v5020, 16
        %vm5053 = vmand %vm4477, %vm5021
        %vm5054 = vmand %vm4478, %vm5022
        %vm5055 = vmand %vm4479, %vm5023
        %vm5056 = vmand %vm4480, %vm5024
        %vm5057 = vmand %vm4481, %vm5025
        %vm5058 = vmand %vm4482, %vm5026
        %vm5059 = vmand %vm4483, %vm5027
        %vm5060 = vmand %vm4484, %vm5028
        %vm5061 = vmand %vm4485, %vm5029
        %vm5062 = vmand %vm4486, %vm5030
        %vm5063 = vmand %vm4487, %vm5031
        %vm5064 = vmand %vm4488, %vm5032
        %vm5065 = vmand %vm4489, %vm5033
        %vm5066 = vmand %vm4490, %vm5034
        %vm5067 = vmand %vm4491, %vm5035
        %vm5068 = vmand %vm4492, %vm5036
        %vm5069 = vmand %vm4493, %vm5037
        %vm5070 = vmand %vm4494, %vm5038
        %vm5071 = vmand %vm4495, %vm5039
        %vm5072 = vmand %vm4496, %vm5040
        %vm5073 = vmand %vm4497, %vm5041
        %vm5074 = vmand %vm4498, %vm5042
        %vm5075 = vmand %vm4499, %vm5043
        %vm5076 = vmand %vm4500, %vm5044
        %vm5077 = vmand %vm4501, %vm5045
        %vm5078 = vmand %vm4502, %vm5046
        %vm5079 = vmand %vm4503, %vm5047
        %vm5080 = vmand %vm4504, %vm5048
        %vm5081 = vmand %vm4505, %vm5049
        %vm5082 = vmand %vm4506, %vm5050
        %vm5083 = vmand %vm4507, %vm5051
        %vm5084 = vmand %vm4508, %vm5052
        %v5085 = vsel %vm5053, 1, 0
        %v5086 = vsel %vm5054, 1, 0
        %v5087 = vsel %vm5055, 1, 0
        %v5088 = vsel %vm5056, 1, 0
        %v5089 = vsel %vm5057, 1, 0
        %v5090 = vsel %vm5058, 1, 0
        %v5091 = vsel %vm5059, 1, 0
        %v5092 = vsel %vm5060, 1, 0
        %v5093 = vsel %vm5061, 1, 0
        %v5094 = vsel %vm5062, 1, 0
        %v5095 = vsel %vm5063, 1, 0
        %v5096 = vsel %vm5064, 1, 0
        %v5097 = vsel %vm5065, 1, 0
        %v5098 = vsel %vm5066, 1, 0
        %v5099 = vsel %vm5067, 1, 0
        %v5100 = vsel %vm5068, 1, 0
        %v5101 = vsel %vm5069, 1, 0
        %v5102 = vsel %vm5070, 1, 0
        %v5103 = vsel %vm5071, 1, 0
        %v5104 = vsel %vm5072, 1, 0
        %v5105 = vsel %vm5073, 1, 0
        %v5106 = vsel %vm5074, 1, 0
        %v5107 = vsel %vm5075, 1, 0
        %v5108 = vsel %vm5076, 1, 0
        %v5109 = vsel %vm5077, 1, 0
        %v5110 = vsel %vm5078, 1, 0
        %v5111 = vsel %vm5079, 1, 0
        %v5112 = vsel %vm5080, 1, 0
        %v5113 = vsel %vm5081, 1, 0
        %v5114 = vsel %vm5082, 1, 0
        %v5115 = vsel %vm5083, 1, 0
        %v5116 = vsel %vm5084, 1, 0
        %vm5117 = vcmp.eq.s32.totalorder %v5085, 1
        %vm5118 = vcmp.eq.s32.totalorder %v5086, 1
        %vm5119 = vcmp.eq.s32.totalorder %v5087, 1
        %vm5120 = vcmp.eq.s32.totalorder %v5088, 1
        %vm5121 = vcmp.eq.s32.totalorder %v5089, 1
        %vm5122 = vcmp.eq.s32.totalorder %v5090, 1
        %vm5123 = vcmp.eq.s32.totalorder %v5091, 1
        %vm5124 = vcmp.eq.s32.totalorder %v5092, 1
        %vm5125 = vcmp.eq.s32.totalorder %v5093, 1
        %vm5126 = vcmp.eq.s32.totalorder %v5094, 1
        %vm5127 = vcmp.eq.s32.totalorder %v5095, 1
        %vm5128 = vcmp.eq.s32.totalorder %v5096, 1
        %vm5129 = vcmp.eq.s32.totalorder %v5097, 1
        %vm5130 = vcmp.eq.s32.totalorder %v5098, 1
        %vm5131 = vcmp.eq.s32.totalorder %v5099, 1
        %vm5132 = vcmp.eq.s32.totalorder %v5100, 1
        %vm5133 = vcmp.eq.s32.totalorder %v5101, 1
        %vm5134 = vcmp.eq.s32.totalorder %v5102, 1
        %vm5135 = vcmp.eq.s32.totalorder %v5103, 1
        %vm5136 = vcmp.eq.s32.totalorder %v5104, 1
        %vm5137 = vcmp.eq.s32.totalorder %v5105, 1
        %vm5138 = vcmp.eq.s32.totalorder %v5106, 1
        %vm5139 = vcmp.eq.s32.totalorder %v5107, 1
        %vm5140 = vcmp.eq.s32.totalorder %v5108, 1
        %vm5141 = vcmp.eq.s32.totalorder %v5109, 1
        %vm5142 = vcmp.eq.s32.totalorder %v5110, 1
        %vm5143 = vcmp.eq.s32.totalorder %v5111, 1
        %vm5144 = vcmp.eq.s32.totalorder %v5112, 1
        %vm5145 = vcmp.eq.s32.totalorder %v5113, 1
        %vm5146 = vcmp.eq.s32.totalorder %v5114, 1
        %vm5147 = vcmp.eq.s32.totalorder %v5115, 1
        %vm5148 = vcmp.eq.s32.totalorder %v5116, 1
        %v5149 = vsel %vm5117, %v4285, 0.0
        %v5150 = vsel %vm5118, %v4288, 0.0
        %v5151 = vsel %vm5119, %v4293, 0.0
        %v5152 = vsel %vm5120, %v4296, 0.0
        %v5153 = vsel %vm5121, %v4301, 0.0
        %v5154 = vsel %vm5122, %v4304, 0.0
        %v5155 = vsel %vm5123, %v4309, 0.0
        %v5156 = vsel %vm5124, %v4312, 0.0
        %v5157 = vsel %vm5125, %v4317, 0.0
        %v5158 = vsel %vm5126, %v4320, 0.0
        %v5159 = vsel %vm5127, %v4325, 0.0
        %v5160 = vsel %vm5128, %v4328, 0.0
        %v5161 = vsel %vm5129, %v4333, 0.0
        %v5162 = vsel %vm5130, %v4336, 0.0
        %v5163 = vsel %vm5131, %v4341, 0.0
        %v5164 = vsel %vm5132, %v4344, 0.0
        %v5165 = vsel %vm5133, %v4349, 0.0
        %v5166 = vsel %vm5134, %v4352, 0.0
        %v5167 = vsel %vm5135, %v4357, 0.0
        %v5168 = vsel %vm5136, %v4360, 0.0
        %v5169 = vsel %vm5137, %v4365, 0.0
        %v5170 = vsel %vm5138, %v4368, 0.0
        %v5171 = vsel %vm5139, %v4373, 0.0
        %v5172 = vsel %vm5140, %v4376, 0.0
        %v5173 = vsel %vm5141, %v4381, 0.0
        %v5174 = vsel %vm5142, %v4384, 0.0
        %v5175 = vsel %vm5143, %v4389, 0.0
        %v5176 = vsel %vm5144, %v4392, 0.0
        %v5177 = vsel %vm5145, %v4397, 0.0
        %v5178 = vsel %vm5146, %v4400, 0.0
        %v5179 = vsel %vm5147, %v4405, 0.0
        %v5180 = vsel %vm5148, %v4408, 0.0
        %v5181 = vadd.f32 %v5149, %v5150
        %v5182 = vadd.f32 %v5181, %v5151
        %v5183 = vadd.f32 %v5182, %v5152
        %v5184 = vadd.f32 %v5183, %v5153
        %v5185 = vadd.f32 %v5184, %v5154
        %v5186 = vadd.f32 %v5185, %v5155
        %v5187 = vadd.f32 %v5186, %v5156
        %v5188 = vadd.f32 %v5187, %v5157
        %v5189 = vadd.f32 %v5188, %v5158
        %v5190 = vadd.f32 %v5189, %v5159
        %v5191 = vadd.f32 %v5190, %v5160
        %v5192 = vadd.f32 %v5191, %v5161
        %v5193 = vadd.f32 %v5192, %v5162
        %v5194 = vadd.f32 %v5193, %v5163
        %v5195 = vadd.f32 %v5194, %v5164
        %v5196 = vadd.f32 %v5195, %v5165
        %v5197 = vadd.f32 %v5196, %v5166
        %v5198 = vadd.f32 %v5197, %v5167
        %v5199 = vadd.f32 %v5198, %v5168
        %v5200 = vadd.f32 %v5199, %v5169
        %v5201 = vadd.f32 %v5200, %v5170
        %v5202 = vadd.f32 %v5201, %v5171
        %v5203 = vadd.f32 %v5202, %v5172
        %v5204 = vadd.f32 %v5203, %v5173
        %v5205 = vadd.f32 %v5204, %v5174
        %v5206 = vadd.f32 %v5205, %v5175
        %v5207 = vadd.f32 %v5206, %v5176
        %v5208 = vadd.f32 %v5207, %v5177
        %v5209 = vadd.f32 %v5208, %v5178
        %v5210 = vadd.f32 %v5209, %v5179
        %v5211 = vadd.f32 %v5210, %v5180
        %v5212 = vrot.slane %v5211, 4
        %v5213 = vadd.f32 %v5211, %v5212
        %v5214 = vrot.slane %v5213, 2
        %v5215 = vadd.f32 %v5213, %v5214
        %v5216 = vrot.slane %v5215, 1
        %v5217 = vadd.f32 %v5215, %v5216
        %5218 = vst [vmem:[%s206] sm:$0x1] %v5217
        %v5219 = vmul.f32 %v5149, %v5149
        %v5220 = vmul.f32 %v5150, %v5150
        %v5221 = vmul.f32 %v5151, %v5151
        %v5222 = vmul.f32 %v5152, %v5152
        %v5223 = vmul.f32 %v5153, %v5153
        %v5224 = vmul.f32 %v5154, %v5154
        %v5225 = vmul.f32 %v5155, %v5155
        %v5226 = vmul.f32 %v5156, %v5156
        %v5227 = vmul.f32 %v5157, %v5157
        %v5228 = vmul.f32 %v5158, %v5158
        %v5229 = vmul.f32 %v5159, %v5159
        %v5230 = vmul.f32 %v5160, %v5160
        %v5231 = vmul.f32 %v5161, %v5161
        %v5232 = vmul.f32 %v5162, %v5162
        %v5233 = vmul.f32 %v5163, %v5163
        %v5234 = vmul.f32 %v5164, %v5164
        %v5235 = vmul.f32 %v5165, %v5165
        %v5236 = vmul.f32 %v5166, %v5166
        %v5237 = vmul.f32 %v5167, %v5167
        %v5238 = vmul.f32 %v5168, %v5168
        %v5239 = vmul.f32 %v5169, %v5169
        %v5240 = vmul.f32 %v5170, %v5170
        %v5241 = vmul.f32 %v5171, %v5171
        %v5242 = vmul.f32 %v5172, %v5172
        %v5243 = vmul.f32 %v5173, %v5173
        %v5244 = vmul.f32 %v5174, %v5174
        %v5245 = vmul.f32 %v5175, %v5175
        %v5246 = vmul.f32 %v5176, %v5176
        %v5247 = vmul.f32 %v5177, %v5177
        %v5248 = vmul.f32 %v5178, %v5178
        %v5249 = vmul.f32 %v5179, %v5179
        %v5250 = vmul.f32 %v5180, %v5180
        %v5251 = vadd.f32 %v5219, %v5220
        %v5252 = vadd.f32 %v5251, %v5221
        %v5253 = vadd.f32 %v5252, %v5222
        %v5254 = vadd.f32 %v5253, %v5223
        %v5255 = vadd.f32 %v5254, %v5224
        %v5256 = vadd.f32 %v5255, %v5225
        %v5257 = vadd.f32 %v5256, %v5226
        %v5258 = vadd.f32 %v5257, %v5227
        %v5259 = vadd.f32 %v5258, %v5228
        %v5260 = vadd.f32 %v5259, %v5229
        %v5261 = vadd.f32 %v5260, %v5230
        %v5262 = vadd.f32 %v5261, %v5231
        %v5263 = vadd.f32 %v5262, %v5232
        %v5264 = vadd.f32 %v5263, %v5233
        %v5265 = vadd.f32 %v5264, %v5234
        %v5266 = vadd.f32 %v5265, %v5235
        %v5267 = vadd.f32 %v5266, %v5236
        %v5268 = vadd.f32 %v5267, %v5237
        %v5269 = vadd.f32 %v5268, %v5238
        %v5270 = vadd.f32 %v5269, %v5239
        %v5271 = vadd.f32 %v5270, %v5240
        %v5272 = vadd.f32 %v5271, %v5241
        %v5273 = vadd.f32 %v5272, %v5242
        %v5274 = vadd.f32 %v5273, %v5243
        %v5275 = vadd.f32 %v5274, %v5244
        %v5276 = vadd.f32 %v5275, %v5245
        %v5277 = vadd.f32 %v5276, %v5246
        %v5278 = vadd.f32 %v5277, %v5247
        %v5279 = vadd.f32 %v5278, %v5248
        %v5280 = vadd.f32 %v5279, %v5249
        %v5281 = vadd.f32 %v5280, %v5250
        %v5282 = vrot.slane %v5281, 4
        %v5283 = vadd.f32 %v5281, %v5282
        %v5284 = vrot.slane %v5283, 2
        %v5285 = vadd.f32 %v5283, %v5284
        %v5286 = vrot.slane %v5285, 1
        %v5287 = vadd.f32 %v5285, %v5286
        %5288 = vst [vmem:[%s212] sm:$0x1] %v5287
        %s5289 = sand.u32 %s104, 1
        %s5290 = scalar_lea.sflag [#allocation4], %s5289
        %s5291 = sand.u32 %s104, 1
        %s5292 = scalar_lea.vmem [#allocation3], %s5291
        %s5293 = sand.u32 %s134, 1
        %s5294 = scalar_lea.sflag [#allocation6], %s5293
        %s5295 = sand.u32 %s134, 1
        %s5296 = scalar_lea.vmem [#allocation5], %s5295
        // Predicated region
        $region33: #{tpu_custom_call.1} parent=27 // pred_check
          %p5297 = pneg %p114
        $region34: #{tpu_custom_call.1} parent=27 // pred_check_branch
          %5299 = sbr.rel (%p5297) target = $region36
        $region35: #{tpu_custom_call.1} parent=27 // pred_region
          %s5301 = ssub.s32 16, 16
          %5302 = vsyncadd %s5290, %s5301
          %s5303 = sadd.s32 %s28, %s27
          %s5304 = smul.addr %s26, 2
          %s5305 = sadd.s32 %s5303, %s5304
          %s5306 = smul.addr %s5305, 16
          %s5307 = scalar_lea.hbm %s2, %s5306
          %s5309 = sshll.u32 %s5292, 4
          %s5310 = int_to_ptr.vmem [resolvable:$true] %s5309
          %5312 = dma.vmem_to_hbm [thread:$0]  %s5310, 16, %s5307, %s5290
        $region36: #{tpu_custom_call.1} parent=27 // pred_fallthru
          _
        // Predicated region
        $region37: #{tpu_custom_call.1} parent=27 // pred_check
          %p5313 = pneg %p144
        $region38: #{tpu_custom_call.1} parent=27 // pred_check_branch
          %5315 = sbr.rel (%p5313) target = $region40
        $region39: #{tpu_custom_call.1} parent=27 // pred_region
          %s5317 = ssub.s32 16, 16
          %5318 = vsyncadd %s5294, %s5317
          %s5319 = sadd.s32 %s28, %s27
          %s5320 = smul.addr %s26, 2
          %s5321 = sadd.s32 %s5319, %s5320
          %s5322 = smul.addr %s5321, 16
          %s5323 = scalar_lea.hbm %s3, %s5322
          %s5325 = sshll.u32 %s5296, 4
          %s5326 = int_to_ptr.vmem [resolvable:$true] %s5325
          %5328 = dma.vmem_to_hbm [thread:$0]  %s5326, 16, %s5323, %s5294
        $region40: #{tpu_custom_call.1} parent=27 // pred_fallthru
          _
      $region28: #{tpu_custom_call.1} parent=5 // pred_fallthru
        _
      %p5329 = scmp.le.s32.totalorder 2, %s16
      // Predicated region
      $region41: #{tpu_custom_call.1} parent=5 // pred_check
        %p5330 = pneg %p5329
      $region42: #{tpu_custom_call.1} parent=5 // pred_check_branch
        %5332 = sbr.rel (%p5330) target = $region44
      $region43: #{tpu_custom_call.1} parent=5 // pred_region
        %s5333 = ssub.s32 %s16, 2
        // Predicated region
        $region45: #{tpu_custom_call.1} parent=43 // pred_check
          %p5334 = pneg %p120
        $region46: #{tpu_custom_call.1} parent=43 // pred_check_branch
          %5336 = sbr.rel (%p5334) target = $region48
        $region47: #{tpu_custom_call.1} parent=43 // pred_region
          %s5337 = sand.u32 %s105, 1
          %s5338 = scalar_lea.sflag [#allocation4], %s5337
          %s5339 = sand.u32 %s105, 1
          %s5340 = scalar_lea.vmem [#allocation3], %s5339
          %5341 = dma.done %s5338, 16
        $region48: #{tpu_custom_call.1} parent=43 // pred_fallthru
          _
        // Predicated region
        $region49: #{tpu_custom_call.1} parent=43 // pred_check
          %p5342 = pneg %p150
        $region50: #{tpu_custom_call.1} parent=43 // pred_check_branch
          %5344 = sbr.rel (%p5342) target = $region52
        $region51: #{tpu_custom_call.1} parent=43 // pred_region
          %s5345 = sand.u32 %s135, 1
          %s5346 = scalar_lea.sflag [#allocation6], %s5345
          %s5347 = sand.u32 %s135, 1
          %s5348 = scalar_lea.vmem [#allocation5], %s5347
          %5349 = dma.done %s5346, 16
        $region52: #{tpu_custom_call.1} parent=43 // pred_fallthru
          _
      $region44: #{tpu_custom_call.1} parent=5 // pred_fallthru
        _
    $region6: #{tpu_custom_call.1} parent=1 // loop_footer
      %s20 = sadd.s32 1, %s16
    $region7: #{tpu_custom_call.1} parent=1 // loop_footer_branch
      %15 = sbr.rel target = $region3
    $region8: #{tpu_custom_call.1} parent=1 // loop_exit
      _
    %5350 = vsyncpa [#allocation4], 1
    %s5351 = scalar_lea.sflag [#allocation4], 1
    %5352 = vsyncpa %s5351, 1
    %5353 = vsyncpa [#allocation6], 1
    %s5354 = scalar_lea.sflag [#allocation6], 1
    %5355 = vsyncpa %s5354, 1

</llo_original>
